<compile_context>
chip_gen: v7x
topology: tpu7x:2x2x1
jax: 0.10.0
libtpu: 0.0.40
codegen_flags: <defaults>
</compile_context>

<pallas_src>
from functools import partial

import jax
import jax.numpy as jnp
from jax import lax
from jax.experimental import pallas as pl
from jax.experimental.pallas import tpu as pltpu

K = 7          # spatial-attention conv kernel size
PAD = 3        # conv padding
CIN = 2        # [avg, max] channels fed to the conv


def _tpu_vmem_capacity_bytes():
    try:
        return int(pltpu.get_tpu_info().vmem_capacity_bytes)
    except Exception:
        return 64 * 1024 * 1024   # conservative fallback (v7x per-TensorCore VMEM)


_VMEM_CAP = _tpu_vmem_capacity_bytes()
_VMEM_LIMIT = (_VMEM_CAP * 3) // 4      # scoped-VMEM limit handed to Mosaic
_VMEM_BUDGET = _VMEM_CAP // 2           # cap on the double-buffered block footprint


def _pick_block_batch(n, bytes_per_image, budget_bytes):
    """Largest divisor of n whose block fits the VMEM budget, preferring a grid of
    >= 2 (ideally even) steps so both v7x TensorCores get work."""
    fits = [d for d in range(1, n + 1)
            if n % d == 0 and d * bytes_per_image <= budget_bytes]
    if not fits:
        # TODO(synk): spatial-tiling fallback when a single image exceeds the VMEM budget.
        raise ValueError("CBAM Pallas kernel: a single image exceeds the VMEM block budget")
    multi = [d for d in fits if (n // d) >= 2]
    even = [d for d in multi if (n // d) % 2 == 0]
    if even:
        return max(even)
    if multi:
        return max(multi)
    return max(fits)


def _cbam_kernel(x_ref, w1t_ref, w2_ref, sw_ref, sb_ref, o_ref, pad_ref, saf_ref, *, H, W):
    """x_ref/o_ref: (Nb, C, H*W) VMEM (lane-dense).  w1t_ref: (C, CR) f32 VMEM (W1^T).
    w2_ref: (C, CR) f32 VMEM.  sw_ref: (98,) f32 SMEM.  sb_ref: (1,) f32 SMEM.
    pad_ref: (2, H+6, W+6) f32 VMEM scratch.  saf_ref: (1, H*W) f32 VMEM scratch."""
    Nb, C, HW = x_ref.shape
    CR = w1t_ref.shape[1]
    inv_hw = 1.0 / HW
    inv_c = 1.0 / C

    w1t = w1t_ref[...]                      # (C, CR)
    w2 = w2_ref[...]                        # (C, CR)
    bias = sb_ref[0]

    # Zero the padded conv buffer once per grid step (unconditionally: with
    # "parallel" megacore sharding each core owns its own uninitialized scratch).
    # The (H, W) interior is fully rewritten for every image; the halo stays zero.
    pad_ref[...] = jnp.zeros_like(pad_ref)

    for i in range(Nb):
        # ---- channel attention: global avg/max pool + shared MLP + sigmoid ----
        x_i = x_ref[i].astype(jnp.float32)                         # (C, HW) lane-dense
        avg_col = jnp.sum(x_i, axis=1, keepdims=True) * inv_hw     # (C, 1)
        max_col = jnp.max(x_i, axis=1, keepdims=True)              # (C, 1)

        # Tiny shared MLP (two bias-free 1x1 convs, ReLU in between), unrolled over
        # the small hidden dim:  sigmoid(W2 relu(W1 a) + W2 relu(W1 m))
        #   = sigmoid( sum_r w2[:, r] * (relu(<w1_r, a>) + relu(<w1_r, m>)) ).
        # Pure VPU/XLU ops (no tiny-shape MXU matmuls); negligible vs the C*HW work.
        z = jnp.zeros((C, 1), jnp.float32)
        for r in range(CR):
            w1r = w1t[:, r:r + 1]                                                    # (C, 1)
            ha = jnp.maximum(jnp.sum(w1r * avg_col, axis=0, keepdims=True), 0.0)     # (1, 1)
            hm = jnp.maximum(jnp.sum(w1r * max_col, axis=0, keepdims=True), 0.0)     # (1, 1)
            z = z + w2[:, r:r + 1] * (ha + hm)
        ca_col = jax.nn.sigmoid(z)                                  # (C, 1)

        # ---- channel-scaled features + channel mean/max, lane-dense (C, HW) ----
        xc = x_i * ca_col                                           # (C, HW)
        cmean = jnp.sum(xc, axis=0, keepdims=True) * inv_c          # (1, HW)
        cmax = jnp.max(xc, axis=0, keepdims=True)                   # (1, HW)

        # Bridge the flat reductions into the zero-padded 2-D conv buffer (row stores).
        # TODO(synk): switch to a fori_loop with ref-based slicing for very large H.
        for h in range(H):
            pad_ref[0, PAD + h:PAD + h + 1, PAD:PAD + W] = cmean[:, h * W:(h + 1) * W]
            pad_ref[1, PAD + h:PAD + h + 1, PAD:PAD + W] = cmax[:, h * W:(h + 1) * W]

        # ---- 7x7 spatial-attention conv; kw lane shift hoisted per (c, kw) slab ----
        acc = jnp.full((H, W), bias, dtype=jnp.float32)
        for kw in range(K):
            for c in range(CIN):
                colc = pad_ref[c, :, kw:kw + W]                     # (H+6, W), one realign
                for kh in range(K):
                    wv = sw_ref[c * K * K + kh * K + kw]            # SMEM scalar
                    acc = acc + wv * colc[kh:kh + H, :]
        sa2d = jax.nn.sigmoid(acc)                                  # (H, W)

        # Bridge sa back to the lane-dense flat layout.
        for h in range(H):
            saf_ref[:, h * W:(h + 1) * W] = sa2d[h:h + 1, :]
        sa_flat = saf_ref[...]                                      # (1, HW)

        # ---- out = x * ca * sa, recomputed from x in f32 (single rounding) ----
        o_ref[i] = (x_ref[i].astype(jnp.float32) * ca_col * sa_flat).astype(o_ref.dtype)


@jax.jit
def cbam_forward(x, ca_w1, ca_w2, sa_w, sa_b):
    """x: (N, C, H, W); ca_w1: (C//r, C); ca_w2: (C, C//r); sa_w: (1, 2, 7, 7); sa_b: (1,)."""
    N, C, H, W = x.shape
    HW = H * W
    isz = jnp.dtype(x.dtype).itemsize
    CR = ca_w1.shape[0]

    scratch_bytes = (CIN * (H + 2 * PAD) * (W + 2 * PAD) + HW) * 4
    per_image = 2 * 2 * C * HW * isz          # in + out blocks, double-buffered
    nb = _pick_block_batch(N, per_image, _VMEM_BUDGET - scratch_bytes)

    x_flat = x.reshape(N, C, HW)
    w1t = ca_w1.T.astype(jnp.float32)         # (C, CR)
    w2 = ca_w2.astype(jnp.float32)            # (C, CR)
    sw = sa_w.reshape(-1).astype(jnp.float32) # (98,)
    sb = sa_b.reshape(-1).astype(jnp.float32) # (1,)

    out_flat = pl.pallas_call(
        partial(_cbam_kernel, H=H, W=W),
        out_shape=jax.ShapeDtypeStruct((N, C, HW), x.dtype),
        grid_spec=pltpu.PrefetchScalarGridSpec(
            num_scalar_prefetch=0,
            grid=(N // nb,),
            in_specs=[
                pl.BlockSpec((nb, C, HW), lambda n: (n, 0, 0)),
                pl.BlockSpec((C, CR), lambda n: (0, 0)),               # W1^T (VMEM)
                pl.BlockSpec((C, CR), lambda n: (0, 0)),               # W2   (VMEM)
                pl.BlockSpec(memory_space=pltpu.MemorySpace.SMEM),     # conv weights (98,)
                pl.BlockSpec(memory_space=pltpu.MemorySpace.SMEM),     # conv bias (1,)
            ],
            out_specs=pl.BlockSpec((nb, C, HW), lambda n: (n, 0, 0)),
            scratch_shapes=[
                pltpu.VMEM((CIN, H + 2 * PAD, W + 2 * PAD), jnp.float32),
                pltpu.VMEM((1, HW), jnp.float32),
            ],
        ),
        compiler_params=pltpu.CompilerParams(
            dimension_semantics=("parallel",),
            vmem_limit_bytes=_VMEM_LIMIT,
        ),
    )(x_flat, w1t, w2, sw, sb)
    return out_flat.reshape(N, C, H, W)


def _reference(x, ca_w1, ca_w2, sa_w, sa_b):
    """Pure-JAX reference matching the PyTorch CBAM forward."""
    avg = jnp.mean(x, axis=(2, 3))
    mx = jnp.max(x, axis=(2, 3))

    def mlp(v):
        return jnp.maximum(v @ ca_w1.T, 0.0) @ ca_w2.T

    ca = jax.nn.sigmoid(mlp(avg) + mlp(mx))[:, :, None, None]
    x_ca = x * ca
    avg_c = jnp.mean(x_ca, axis=1, keepdims=True)
    max_c = jnp.max(x_ca, axis=1, keepdims=True)
    feat = jnp.concatenate([avg_c, max_c], axis=1)
    conv = lax.conv_general_dilated(
        feat, sa_w, window_strides=(1, 1), padding=((PAD, PAD), (PAD, PAD)),
        dimension_numbers=("NCHW", "OIHW", "NCHW"))
    sa = jax.nn.sigmoid(conv + sa_b.reshape(1, 1, 1, 1))
    return x_ca * sa


if __name__ == "__main__":
    key = jax.random.PRNGKey(0)
    kx, k1, k2, k3, k4 = jax.random.split(key, 5)

    # channels=32 so the default ratio=16 gives a valid 2-unit MLP hidden layer.
    N, C, H, W = 2, 32, 16, 16
    RATIO = 16
    CR = C // RATIO

    x = jax.random.normal(kx, (N, C, H, W), dtype=jnp.float32)

    b1 = 1.0 / (C ** 0.5)
    ca_w1 = jax.random.uniform(k1, (CR, C), jnp.float32, -b1, b1)
    b2 = 1.0 / (CR ** 0.5)
    ca_w2 = jax.random.uniform(k2, (C, CR), jnp.float32, -b2, b2)
    b3 = 1.0 / ((CIN * K * K) ** 0.5)
    sa_w = jax.random.uniform(k3, (1, CIN, K, K), jnp.float32, -b3, b3)
    sa_b = jax.random.uniform(k4, (1,), jnp.float32, -b3, b3)

    out = cbam_forward(x, ca_w1, ca_w2, sa_w, sa_b)
    out = jax.block_until_ready(out)

    ref = _reference(x, ca_w1, ca_w2, sa_w, sa_b)
    assert out.shape == (N, C, H, W)
    err = float(jnp.max(jnp.abs(out - ref)))
    assert jnp.allclose(out, ref, atol=5e-5, rtol=1e-4), f"mismatch vs reference: {err}"

    print("KERNEL_OK")
</pallas_src>

<mosaic_0001>
module attributes {stable_mosaic.version = 11 : i64} {
  func.func @_cbam_kernel(%arg0: i32, %arg1: memref<1x32x256xf32, #tpu.memory_space<vmem>>, %arg2: memref<32x2xf32, #tpu.memory_space<vmem>>, %arg3: memref<32x2xf32, #tpu.memory_space<vmem>>, %arg4: memref<98xf32, #tpu.memory_space<smem>>, %arg5: memref<1xf32, #tpu.memory_space<smem>>, %arg6: memref<1x32x256xf32, #tpu.memory_space<vmem>>, %arg7: memref<2x22x22xf32, #tpu.memory_space<vmem>>, %arg8: memref<1x256xf32, #tpu.memory_space<vmem>>) attributes {dimension_semantics = [#tpu.dimension_semantics<parallel>], iteration_bounds = array<i64: 2>, scalar_prefetch = 0 : i64, scratch_operands = 2 : i64, tpu.core_type = #tpu.core_type<tc>, window_params = [{transform_indices = @transform_0, window_bounds = array<i64: 1, 32, 256>}, {pipeline_mode = #tpu.pipeline_mode<synchronous>, transform_indices = @transform_1, window_bounds = array<i64: 32, 2>}, {pipeline_mode = #tpu.pipeline_mode<synchronous>, transform_indices = @transform_2, window_bounds = array<i64: 32, 2>}, {transform_indices = @transform_3, window_bounds = array<i64: 98>}, {transform_indices = @transform_4, window_bounds = array<i64: 1>}, {transform_indices = @transform_5, window_bounds = array<i64: 1, 32, 256>}]} {
    %c0 = arith.constant 0 : index
    %c0_0 = arith.constant 0 : index
    %0 = vector.load %arg2[%c0, %c0_0] : memref<32x2xf32, #tpu.memory_space<vmem>>, vector<32x2xf32>
    %c0_1 = arith.constant 0 : index
    %c0_2 = arith.constant 0 : index
    %1 = vector.load %arg3[%c0_1, %c0_2] : memref<32x2xf32, #tpu.memory_space<vmem>>, vector<32x2xf32>
    %c0_3 = arith.constant 0 : index
    %2 = memref.load %arg5[%c0_3] : memref<1xf32, #tpu.memory_space<smem>>
    %cst = arith.constant 0.000000e+00 : f32
    %3 = vector.broadcast %cst : f32 to vector<2x22x22xf32>
    %c0_4 = arith.constant 0 : index
    %c0_5 = arith.constant 0 : index
    %c0_6 = arith.constant 0 : index
    %4 = vector.load %arg7[%c0_4, %c0_5, %c0_6] : memref<2x22x22xf32, #tpu.memory_space<vmem>>, vector<2x22x22xf32>
    tpu.vector_store %arg7[%c0_4, %c0_5, %c0_6], %3 {strides = array<i32>} : memref<2x22x22xf32, #tpu.memory_space<vmem>>, vector<2x22x22xf32>,
    %c0_7 = arith.constant 0 : index
    %c0_8 = arith.constant 0 : index
    %c0_9 = arith.constant 0 : index
    %5 = vector.load %arg1[%c0_7, %c0_8, %c0_9] : memref<1x32x256xf32, #tpu.memory_space<vmem>>, vector<1x32x256xf32>
    %6 = vector.shape_cast %5 : vector<1x32x256xf32> to vector<32x256xf32>
    %cst_10 = arith.constant dense<0.000000e+00> : vector<32xf32>
    %7 = vector.multi_reduction <add>, %6, %cst_10 [1] : vector<32x256xf32> to vector<32xf32>
    %8 = vector.shape_cast %7 : vector<32xf32> to vector<32x1xf32>
    %cst_11 = arith.constant 3.906250e-03 : f32
    %9 = vector.broadcast %cst_11 : f32 to vector<32x1xf32>
    %10 = arith.mulf %8, %9 : vector<32x1xf32>
    %cst_12 = arith.constant dense<0xFF800000> : vector<32xf32>
    %11 = vector.multi_reduction <maximumf>, %6, %cst_12 [1] : vector<32x256xf32> to vector<32xf32>
    %12 = vector.shape_cast %11 : vector<32xf32> to vector<32x1xf32>
    %cst_13 = arith.constant 0.000000e+00 : f32
    %13 = vector.broadcast %cst_13 : f32 to vector<32x1xf32>
    %14 = vector.extract_strided_slice %0 {offsets = [0, 0], sizes = [32, 1], strides = [1, 1]} : vector<32x2xf32> to vector<32x1xf32>
    %15 = arith.mulf %14, %10 : vector<32x1xf32>
    %cst_14 = arith.constant dense<0.000000e+00> : vector<1xf32>
    %16 = vector.multi_reduction <add>, %15, %cst_14 [0] : vector<32x1xf32> to vector<1xf32>
    %17 = vector.shape_cast %16 : vector<1xf32> to vector<1x1xf32>
    %cst_15 = arith.constant 0.000000e+00 : f32
    %18 = vector.broadcast %cst_15 : f32 to vector<1x1xf32>
    %19 = arith.maximumf %17, %18 : vector<1x1xf32>
    %20 = arith.mulf %14, %12 : vector<32x1xf32>
    %cst_16 = arith.constant dense<0.000000e+00> : vector<1xf32>
    %21 = vector.multi_reduction <add>, %20, %cst_16 [0] : vector<32x1xf32> to vector<1xf32>
    %22 = vector.shape_cast %21 : vector<1xf32> to vector<1x1xf32>
    %cst_17 = arith.constant 0.000000e+00 : f32
    %23 = vector.broadcast %cst_17 : f32 to vector<1x1xf32>
    %24 = arith.maximumf %22, %23 : vector<1x1xf32>
    %25 = vector.extract_strided_slice %1 {offsets = [0, 0], sizes = [32, 1], strides = [1, 1]} : vector<32x2xf32> to vector<32x1xf32>
    %26 = arith.addf %19, %24 : vector<1x1xf32>
    %27 = vector.broadcast %26 : vector<1x1xf32> to vector<32x1xf32>
    %28 = arith.mulf %25, %27 : vector<32x1xf32>
    %29 = arith.addf %13, %28 : vector<32x1xf32>
    %30 = vector.extract_strided_slice %0 {offsets = [0, 1], sizes = [32, 1], strides = [1, 1]} : vector<32x2xf32> to vector<32x1xf32>
    %31 = arith.mulf %30, %10 : vector<32x1xf32>
    %cst_18 = arith.constant dense<0.000000e+00> : vector<1xf32>
    %32 = vector.multi_reduction <add>, %31, %cst_18 [0] : vector<32x1xf32> to vector<1xf32>
    %33 = vector.shape_cast %32 : vector<1xf32> to vector<1x1xf32>
    %cst_19 = arith.constant 0.000000e+00 : f32
    %34 = vector.broadcast %cst_19 : f32 to vector<1x1xf32>
    %35 = arith.maximumf %33, %34 : vector<1x1xf32>
    %36 = arith.mulf %30, %12 : vector<32x1xf32>
    %cst_20 = arith.constant dense<0.000000e+00> : vector<1xf32>
    %37 = vector.multi_reduction <add>, %36, %cst_20 [0] : vector<32x1xf32> to vector<1xf32>
    %38 = vector.shape_cast %37 : vector<1xf32> to vector<1x1xf32>
    %cst_21 = arith.constant 0.000000e+00 : f32
    %39 = vector.broadcast %cst_21 : f32 to vector<1x1xf32>
    %40 = arith.maximumf %38, %39 : vector<1x1xf32>
    %41 = vector.extract_strided_slice %1 {offsets = [0, 1], sizes = [32, 1], strides = [1, 1]} : vector<32x2xf32> to vector<32x1xf32>
    %42 = arith.addf %35, %40 : vector<1x1xf32>
    %43 = vector.broadcast %42 : vector<1x1xf32> to vector<32x1xf32>
    %44 = arith.mulf %41, %43 : vector<32x1xf32>
    %45 = arith.addf %29, %44 : vector<32x1xf32>
    %46 = arith.negf %45 : vector<32x1xf32>
    %47 = math.exp %46 : vector<32x1xf32>
    %cst_22 = arith.constant 1.000000e+00 : f32
    %48 = vector.broadcast %cst_22 : f32 to vector<32x1xf32>
    %49 = arith.addf %48, %47 : vector<32x1xf32>
    %50 = arith.divf %48, %49 : vector<32x1xf32>
    %51 = vector.broadcast %50 : vector<32x1xf32> to vector<32x256xf32>
    %52 = arith.mulf %6, %51 : vector<32x256xf32>
    %cst_23 = arith.constant dense<0.000000e+00> : vector<256xf32>
    %53 = vector.multi_reduction <add>, %52, %cst_23 [0] : vector<32x256xf32> to vector<256xf32>
    %54 = vector.shape_cast %53 : vector<256xf32> to vector<1x256xf32>
    %cst_24 = arith.constant 3.125000e-02 : f32
    %55 = vector.broadcast %cst_24 : f32 to vector<1x256xf32>
    %56 = arith.mulf %54, %55 : vector<1x256xf32>
    %cst_25 = arith.constant dense<0xFF800000> : vector<256xf32>
    %57 = vector.multi_reduction <maximumf>, %52, %cst_25 [0] : vector<32x256xf32> to vector<256xf32>
    %58 = vector.shape_cast %57 : vector<256xf32> to vector<1x256xf32>
    %59 = vector.extract_strided_slice %56 {offsets = [0, 0], sizes = [1, 16], strides = [1, 1]} : vector<1x256xf32> to vector<1x16xf32>
    %c0_26 = arith.constant 0 : index
    %c3 = arith.constant 3 : index
    %c3_27 = arith.constant 3 : index
    %60 = vector.load %arg7[%c0_26, %c3, %c3_27] : memref<2x22x22xf32, #tpu.memory_space<vmem>>, vector<1x1x16xf32>
    %61 = vector.shape_cast %60 : vector<1x1x16xf32> to vector<1x16xf32>
    %62 = vector.shape_cast %59 : vector<1x16xf32> to vector<1x1x16xf32>
    tpu.vector_store %arg7[%c0_26, %c3, %c3_27], %62 {strides = array<i32>} : memref<2x22x22xf32, #tpu.memory_space<vmem>>, vector<1x1x16xf32>,
    %63 = vector.extract_strided_slice %58 {offsets = [0, 0], sizes = [1, 16], strides = [1, 1]} : vector<1x256xf32> to vector<1x16xf32>
    %c1 = arith.constant 1 : index
    %c3_28 = arith.constant 3 : index
    %c3_29 = arith.constant 3 : index
    %64 = vector.load %arg7[%c1, %c3_28, %c3_29] : memref<2x22x22xf32, #tpu.memory_space<vmem>>, vector<1x1x16xf32>
    %65 = vector.shape_cast %64 : vector<1x1x16xf32> to vector<1x16xf32>
    %66 = vector.shape_cast %63 : vector<1x16xf32> to vector<1x1x16xf32>
    tpu.vector_store %arg7[%c1, %c3_28, %c3_29], %66 {strides = array<i32>} : memref<2x22x22xf32, #tpu.memory_space<vmem>>, vector<1x1x16xf32>,
    %67 = vector.extract_strided_slice %56 {offsets = [0, 16], sizes = [1, 16], strides = [1, 1]} : vector<1x256xf32> to vector<1x16xf32>
    %c0_30 = arith.constant 0 : index
    %c4 = arith.constant 4 : index
    %c3_31 = arith.constant 3 : index
    %68 = vector.load %arg7[%c0_30, %c4, %c3_31] : memref<2x22x22xf32, #tpu.memory_space<vmem>>, vector<1x1x16xf32>
    %69 = vector.shape_cast %68 : vector<1x1x16xf32> to vector<1x16xf32>
    %70 = vector.shape_cast %67 : vector<1x16xf32> to vector<1x1x16xf32>
    tpu.vector_store %arg7[%c0_30, %c4, %c3_31], %70 {strides = array<i32>} : memref<2x22x22xf32, #tpu.memory_space<vmem>>, vector<1x1x16xf32>,
    %71 = vector.extract_strided_slice %58 {offsets = [0, 16], sizes = [1, 16], strides = [1, 1]} : vector<1x256xf32> to vector<1x16xf32>
    %c1_32 = arith.constant 1 : index
    %c4_33 = arith.constant 4 : index
    %c3_34 = arith.constant 3 : index
    %72 = vector.load %arg7[%c1_32, %c4_33, %c3_34] : memref<2x22x22xf32, #tpu.memory_space<vmem>>, vector<1x1x16xf32>
    %73 = vector.shape_cast %72 : vector<1x1x16xf32> to vector<1x16xf32>
    %74 = vector.shape_cast %71 : vector<1x16xf32> to vector<1x1x16xf32>
    tpu.vector_store %arg7[%c1_32, %c4_33, %c3_34], %74 {strides = array<i32>} : memref<2x22x22xf32, #tpu.memory_space<vmem>>, vector<1x1x16xf32>,
    %75 = vector.extract_strided_slice %56 {offsets = [0, 32], sizes = [1, 16], strides = [1, 1]} : vector<1x256xf32> to vector<1x16xf32>
    %c0_35 = arith.constant 0 : index
    %c5 = arith.constant 5 : index
    %c3_36 = arith.constant 3 : index
    %76 = vector.load %arg7[%c0_35, %c5, %c3_36] : memref<2x22x22xf32, #tpu.memory_space<vmem>>, vector<1x1x16xf32>
    %77 = vector.shape_cast %76 : vector<1x1x16xf32> to vector<1x16xf32>
    %78 = vector.shape_cast %75 : vector<1x16xf32> to vector<1x1x16xf32>
    tpu.vector_store %arg7[%c0_35, %c5, %c3_36], %78 {strides = array<i32>} : memref<2x22x22xf32, #tpu.memory_space<vmem>>, vector<1x1x16xf32>,
    %79 = vector.extract_strided_slice %58 {offsets = [0, 32], sizes = [1, 16], strides = [1, 1]} : vector<1x256xf32> to vector<1x16xf32>
    %c1_37 = arith.constant 1 : index
    %c5_38 = arith.constant 5 : index
    %c3_39 = arith.constant 3 : index
    %80 = vector.load %arg7[%c1_37, %c5_38, %c3_39] : memref<2x22x22xf32, #tpu.memory_space<vmem>>, vector<1x1x16xf32>
    %81 = vector.shape_cast %80 : vector<1x1x16xf32> to vector<1x16xf32>
    %82 = vector.shape_cast %79 : vector<1x16xf32> to vector<1x1x16xf32>
    tpu.vector_store %arg7[%c1_37, %c5_38, %c3_39], %82 {strides = array<i32>} : memref<2x22x22xf32, #tpu.memory_space<vmem>>, vector<1x1x16xf32>,
    %83 = vector.extract_strided_slice %56 {offsets = [0, 48], sizes = [1, 16], strides = [1, 1]} : vector<1x256xf32> to vector<1x16xf32>
    %c0_40 = arith.constant 0 : index
    %c6 = arith.constant 6 : index
    %c3_41 = arith.constant 3 : index
    %84 = vector.load %arg7[%c0_40, %c6, %c3_41] : memref<2x22x22xf32, #tpu.memory_space<vmem>>, vector<1x1x16xf32>
    %85 = vector.shape_cast %84 : vector<1x1x16xf32> to vector<1x16xf32>
    %86 = vector.shape_cast %83 : vector<1x16xf32> to vector<1x1x16xf32>
    tpu.vector_store %arg7[%c0_40, %c6, %c3_41], %86 {strides = array<i32>} : memref<2x22x22xf32, #tpu.memory_space<vmem>>, vector<1x1x16xf32>,
    %87 = vector.extract_strided_slice %58 {offsets = [0, 48], sizes = [1, 16], strides = [1, 1]} : vector<1x256xf32> to vector<1x16xf32>
    %c1_42 = arith.constant 1 : index
    %c6_43 = arith.constant 6 : index
    %c3_44 = arith.constant 3 : index
    %88 = vector.load %arg7[%c1_42, %c6_43, %c3_44] : memref<2x22x22xf32, #tpu.memory_space<vmem>>, vector<1x1x16xf32>
    %89 = vector.shape_cast %88 : vector<1x1x16xf32> to vector<1x16xf32>
    %90 = vector.shape_cast %87 : vector<1x16xf32> to vector<1x1x16xf32>
    tpu.vector_store %arg7[%c1_42, %c6_43, %c3_44], %90 {strides = array<i32>} : memref<2x22x22xf32, #tpu.memory_space<vmem>>, vector<1x1x16xf32>,
    %91 = vector.extract_strided_slice %56 {offsets = [0, 64], sizes = [1, 16], strides = [1, 1]} : vector<1x256xf32> to vector<1x16xf32>
    %c0_45 = arith.constant 0 : index
    %c7 = arith.constant 7 : index
    %c3_46 = arith.constant 3 : index
    %92 = vector.load %arg7[%c0_45, %c7, %c3_46] : memref<2x22x22xf32, #tpu.memory_space<vmem>>, vector<1x1x16xf32>
    %93 = vector.shape_cast %92 : vector<1x1x16xf32> to vector<1x16xf32>
    %94 = vector.shape_cast %91 : vector<1x16xf32> to vector<1x1x16xf32>
    tpu.vector_store %arg7[%c0_45, %c7, %c3_46], %94 {strides = array<i32>} : memref<2x22x22xf32, #tpu.memory_space<vmem>>, vector<1x1x16xf32>,
    %95 = vector.extract_strided_slice %58 {offsets = [0, 64], sizes = [1, 16], strides = [1, 1]} : vector<1x256xf32> to vector<1x16xf32>
    %c1_47 = arith.constant 1 : index
    %c7_48 = arith.constant 7 : index
    %c3_49 = arith.constant 3 : index
    %96 = vector.load %arg7[%c1_47, %c7_48, %c3_49] : memref<2x22x22xf32, #tpu.memory_space<vmem>>, vector<1x1x16xf32>
    %97 = vector.shape_cast %96 : vector<1x1x16xf32> to vector<1x16xf32>
    %98 = vector.shape_cast %95 : vector<1x16xf32> to vector<1x1x16xf32>
    tpu.vector_store %arg7[%c1_47, %c7_48, %c3_49], %98 {strides = array<i32>} : memref<2x22x22xf32, #tpu.memory_space<vmem>>, vector<1x1x16xf32>,
    %99 = vector.extract_strided_slice %56 {offsets = [0, 80], sizes = [1, 16], strides = [1, 1]} : vector<1x256xf32> to vector<1x16xf32>
    %c0_50 = arith.constant 0 : index
    %c8 = arith.constant 8 : index
    %c3_51 = arith.constant 3 : index
    %100 = vector.load %arg7[%c0_50, %c8, %c3_51] : memref<2x22x22xf32, #tpu.memory_space<vmem>>, vector<1x1x16xf32>
    %101 = vector.shape_cast %100 : vector<1x1x16xf32> to vector<1x16xf32>
    %102 = vector.shape_cast %99 : vector<1x16xf32> to vector<1x1x16xf32>
    tpu.vector_store %arg7[%c0_50, %c8, %c3_51], %102 {strides = array<i32>} : memref<2x22x22xf32, #tpu.memory_space<vmem>>, vector<1x1x16xf32>,
    %103 = vector.extract_strided_slice %58 {offsets = [0, 80], sizes = [1, 16], strides = [1, 1]} : vector<1x256xf32> to vector<1x16xf32>
    %c1_52 = arith.constant 1 : index
    %c8_53 = arith.constant 8 : index
    %c3_54 = arith.constant 3 : index
    %104 = vector.load %arg7[%c1_52, %c8_53, %c3_54] : memref<2x22x22xf32, #tpu.memory_space<vmem>>, vector<1x1x16xf32>
    %105 = vector.shape_cast %104 : vector<1x1x16xf32> to vector<1x16xf32>
    %106 = vector.shape_cast %103 : vector<1x16xf32> to vector<1x1x16xf32>
    tpu.vector_store %arg7[%c1_52, %c8_53, %c3_54], %106 {strides = array<i32>} : memref<2x22x22xf32, #tpu.memory_space<vmem>>, vector<1x1x16xf32>,
    %107 = vector.extract_strided_slice %56 {offsets = [0, 96], sizes = [1, 16], strides = [1, 1]} : vector<1x256xf32> to vector<1x16xf32>
    %c0_55 = arith.constant 0 : index
    %c9 = arith.constant 9 : index
    %c3_56 = arith.constant 3 : index
    %108 = vector.load %arg7[%c0_55, %c9, %c3_56] : memref<2x22x22xf32, #tpu.memory_space<vmem>>, vector<1x1x16xf32>
    %109 = vector.shape_cast %108 : vector<1x1x16xf32> to vector<1x16xf32>
    %110 = vector.shape_cast %107 : vector<1x16xf32> to vector<1x1x16xf32>
    tpu.vector_store %arg7[%c0_55, %c9, %c3_56], %110 {strides = array<i32>} : memref<2x22x22xf32, #tpu.memory_space<vmem>>, vector<1x1x16xf32>,
    %111 = vector.extract_strided_slice %58 {offsets = [0, 96], sizes = [1, 16], strides = [1, 1]} : vector<1x256xf32> to vector<1x16xf32>
    %c1_57 = arith.constant 1 : index
    %c9_58 = arith.constant 9 : index
    %c3_59 = arith.constant 3 : index
    %112 = vector.load %arg7[%c1_57, %c9_58, %c3_59] : memref<2x22x22xf32, #tpu.memory_space<vmem>>, vector<1x1x16xf32>
    %113 = vector.shape_cast %112 : vector<1x1x16xf32> to vector<1x16xf32>
    %114 = vector.shape_cast %111 : vector<1x16xf32> to vector<1x1x16xf32>
    tpu.vector_store %arg7[%c1_57, %c9_58, %c3_59], %114 {strides = array<i32>} : memref<2x22x22xf32, #tpu.memory_space<vmem>>, vector<1x1x16xf32>,
    %115 = vector.extract_strided_slice %56 {offsets = [0, 112], sizes = [1, 16], strides = [1, 1]} : vector<1x256xf32> to vector<1x16xf32>
    %c0_60 = arith.constant 0 : index
    %c10 = arith.constant 10 : index
    %c3_61 = arith.constant 3 : index
    %116 = vector.load %arg7[%c0_60, %c10, %c3_61] : memref<2x22x22xf32, #tpu.memory_space<vmem>>, vector<1x1x16xf32>
    %117 = vector.shape_cast %116 : vector<1x1x16xf32> to vector<1x16xf32>
    %118 = vector.shape_cast %115 : vector<1x16xf32> to vector<1x1x16xf32>
    tpu.vector_store %arg7[%c0_60, %c10, %c3_61], %118 {strides = array<i32>} : memref<2x22x22xf32, #tpu.memory_space<vmem>>, vector<1x1x16xf32>,
    %119 = vector.extract_strided_slice %58 {offsets = [0, 112], sizes = [1, 16], strides = [1, 1]} : vector<1x256xf32> to vector<1x16xf32>
    %c1_62 = arith.constant 1 : index
    %c10_63 = arith.constant 10 : index
    %c3_64 = arith.constant 3 : index
    %120 = vector.load %arg7[%c1_62, %c10_63, %c3_64] : memref<2x22x22xf32, #tpu.memory_space<vmem>>, vector<1x1x16xf32>
    %121 = vector.shape_cast %120 : vector<1x1x16xf32> to vector<1x16xf32>
    %122 = vector.shape_cast %119 : vector<1x16xf32> to vector<1x1x16xf32>
    tpu.vector_store %arg7[%c1_62, %c10_63, %c3_64], %122 {strides = array<i32>} : memref<2x22x22xf32, #tpu.memory_space<vmem>>, vector<1x1x16xf32>,
    %123 = vector.extract_strided_slice %56 {offsets = [0, 128], sizes = [1, 16], strides = [1, 1]} : vector<1x256xf32> to vector<1x16xf32>
    %c0_65 = arith.constant 0 : index
    %c11 = arith.constant 11 : index
    %c3_66 = arith.constant 3 : index
    %124 = vector.load %arg7[%c0_65, %c11, %c3_66] : memref<2x22x22xf32, #tpu.memory_space<vmem>>, vector<1x1x16xf32>
    %125 = vector.shape_cast %124 : vector<1x1x16xf32> to vector<1x16xf32>
    %126 = vector.shape_cast %123 : vector<1x16xf32> to vector<1x1x16xf32>
    tpu.vector_store %arg7[%c0_65, %c11, %c3_66], %126 {strides = array<i32>} : memref<2x22x22xf32, #tpu.memory_space<vmem>>, vector<1x1x16xf32>,
    %127 = vector.extract_strided_slice %58 {offsets = [0, 128], sizes = [1, 16], strides = [1, 1]} : vector<1x256xf32> to vector<1x16xf32>
    %c1_67 = arith.constant 1 : index
    %c11_68 = arith.constant 11 : index
    %c3_69 = arith.constant 3 : index
    %128 = vector.load %arg7[%c1_67, %c11_68, %c3_69] : memref<2x22x22xf32, #tpu.memory_space<vmem>>, vector<1x1x16xf32>
    %129 = vector.shape_cast %128 : vector<1x1x16xf32> to vector<1x16xf32>
    %130 = vector.shape_cast %127 : vector<1x16xf32> to vector<1x1x16xf32>
    tpu.vector_store %arg7[%c1_67, %c11_68, %c3_69], %130 {strides = array<i32>} : memref<2x22x22xf32, #tpu.memory_space<vmem>>, vector<1x1x16xf32>,
    %131 = vector.extract_strided_slice %56 {offsets = [0, 144], sizes = [1, 16], strides = [1, 1]} : vector<1x256xf32> to vector<1x16xf32>
    %c0_70 = arith.constant 0 : index
    %c12 = arith.constant 12 : index
    %c3_71 = arith.constant 3 : index
    %132 = vector.load %arg7[%c0_70, %c12, %c3_71] : memref<2x22x22xf32, #tpu.memory_space<vmem>>, vector<1x1x16xf32>
    %133 = vector.shape_cast %132 : vector<1x1x16xf32> to vector<1x16xf32>
    %134 = vector.shape_cast %131 : vector<1x16xf32> to vector<1x1x16xf32>
    tpu.vector_store %arg7[%c0_70, %c12, %c3_71], %134 {strides = array<i32>} : memref<2x22x22xf32, #tpu.memory_space<vmem>>, vector<1x1x16xf32>,
    %135 = vector.extract_strided_slice %58 {offsets = [0, 144], sizes = [1, 16], strides = [1, 1]} : vector<1x256xf32> to vector<1x16xf32>
    %c1_72 = arith.constant 1 : index
    %c12_73 = arith.constant 12 : index
    %c3_74 = arith.constant 3 : index
    %136 = vector.load %arg7[%c1_72, %c12_73, %c3_74] : memref<2x22x22xf32, #tpu.memory_space<vmem>>, vector<1x1x16xf32>
    %137 = vector.shape_cast %136 : vector<1x1x16xf32> to vector<1x16xf32>
    %138 = vector.shape_cast %135 : vector<1x16xf32> to vector<1x1x16xf32>
    tpu.vector_store %arg7[%c1_72, %c12_73, %c3_74], %138 {strides = array<i32>} : memref<2x22x22xf32, #tpu.memory_space<vmem>>, vector<1x1x16xf32>,
    %139 = vector.extract_strided_slice %56 {offsets = [0, 160], sizes = [1, 16], strides = [1, 1]} : vector<1x256xf32> to vector<1x16xf32>
    %c0_75 = arith.constant 0 : index
    %c13 = arith.constant 13 : index
    %c3_76 = arith.constant 3 : index
    %140 = vector.load %arg7[%c0_75, %c13, %c3_76] : memref<2x22x22xf32, #tpu.memory_space<vmem>>, vector<1x1x16xf32>
    %141 = vector.shape_cast %140 : vector<1x1x16xf32> to vector<1x16xf32>
    %142 = vector.shape_cast %139 : vector<1x16xf32> to vector<1x1x16xf32>
    tpu.vector_store %arg7[%c0_75, %c13, %c3_76], %142 {strides = array<i32>} : memref<2x22x22xf32, #tpu.memory_space<vmem>>, vector<1x1x16xf32>,
    %143 = vector.extract_strided_slice %58 {offsets = [0, 160], sizes = [1, 16], strides = [1, 1]} : vector<1x256xf32> to vector<1x16xf32>
    %c1_77 = arith.constant 1 : index
    %c13_78 = arith.constant 13 : index
    %c3_79 = arith.constant 3 : index
    %144 = vector.load %arg7[%c1_77, %c13_78, %c3_79] : memref<2x22x22xf32, #tpu.memory_space<vmem>>, vector<1x1x16xf32>
    %145 = vector.shape_cast %144 : vector<1x1x16xf32> to vector<1x16xf32>
    %146 = vector.shape_cast %143 : vector<1x16xf32> to vector<1x1x16xf32>
    tpu.vector_store %arg7[%c1_77, %c13_78, %c3_79], %146 {strides = array<i32>} : memref<2x22x22xf32, #tpu.memory_space<vmem>>, vector<1x1x16xf32>,
    %147 = vector.extract_strided_slice %56 {offsets = [0, 176], sizes = [1, 16], strides = [1, 1]} : vector<1x256xf32> to vector<1x16xf32>
    %c0_80 = arith.constant 0 : index
    %c14 = arith.constant 14 : index
    %c3_81 = arith.constant 3 : index
    %148 = vector.load %arg7[%c0_80, %c14, %c3_81] : memref<2x22x22xf32, #tpu.memory_space<vmem>>, vector<1x1x16xf32>
    %149 = vector.shape_cast %148 : vector<1x1x16xf32> to vector<1x16xf32>
    %150 = vector.shape_cast %147 : vector<1x16xf32> to vector<1x1x16xf32>
    tpu.vector_store %arg7[%c0_80, %c14, %c3_81], %150 {strides = array<i32>} : memref<2x22x22xf32, #tpu.memory_space<vmem>>, vector<1x1x16xf32>,
    %151 = vector.extract_strided_slice %58 {offsets = [0, 176], sizes = [1, 16], strides = [1, 1]} : vector<1x256xf32> to vector<1x16xf32>
    %c1_82 = arith.constant 1 : index
    %c14_83 = arith.constant 14 : index
    %c3_84 = arith.constant 3 : index
    %152 = vector.load %arg7[%c1_82, %c14_83, %c3_84] : memref<2x22x22xf32, #tpu.memory_space<vmem>>, vector<1x1x16xf32>
    %153 = vector.shape_cast %152 : vector<1x1x16xf32> to vector<1x16xf32>
    %154 = vector.shape_cast %151 : vector<1x16xf32> to vector<1x1x16xf32>
    tpu.vector_store %arg7[%c1_82, %c14_83, %c3_84], %154 {strides = array<i32>} : memref<2x22x22xf32, #tpu.memory_space<vmem>>, vector<1x1x16xf32>,
    %155 = vector.extract_strided_slice %56 {offsets = [0, 192], sizes = [1, 16], strides = [1, 1]} : vector<1x256xf32> to vector<1x16xf32>
    %c0_85 = arith.constant 0 : index
    %c15 = arith.constant 15 : index
    %c3_86 = arith.constant 3 : index
    %156 = vector.load %arg7[%c0_85, %c15, %c3_86] : memref<2x22x22xf32, #tpu.memory_space<vmem>>, vector<1x1x16xf32>
    %157 = vector.shape_cast %156 : vector<1x1x16xf32> to vector<1x16xf32>
    %158 = vector.shape_cast %155 : vector<1x16xf32> to vector<1x1x16xf32>
    tpu.vector_store %arg7[%c0_85, %c15, %c3_86], %158 {strides = array<i32>} : memref<2x22x22xf32, #tpu.memory_space<vmem>>, vector<1x1x16xf32>,
    %159 = vector.extract_strided_slice %58 {offsets = [0, 192], sizes = [1, 16], strides = [1, 1]} : vector<1x256xf32> to vector<1x16xf32>
    %c1_87 = arith.constant 1 : index
    %c15_88 = arith.constant 15 : index
    %c3_89 = arith.constant 3 : index
    %160 = vector.load %arg7[%c1_87, %c15_88, %c3_89] : memref<2x22x22xf32, #tpu.memory_space<vmem>>, vector<1x1x16xf32>
    %161 = vector.shape_cast %160 : vector<1x1x16xf32> to vector<1x16xf32>
    %162 = vector.shape_cast %159 : vector<1x16xf32> to vector<1x1x16xf32>
    tpu.vector_store %arg7[%c1_87, %c15_88, %c3_89], %162 {strides = array<i32>} : memref<2x22x22xf32, #tpu.memory_space<vmem>>, vector<1x1x16xf32>,
    %163 = vector.extract_strided_slice %56 {offsets = [0, 208], sizes = [1, 16], strides = [1, 1]} : vector<1x256xf32> to vector<1x16xf32>
    %c0_90 = arith.constant 0 : index
    %c16 = arith.constant 16 : index
    %c3_91 = arith.constant 3 : index
    %164 = vector.load %arg7[%c0_90, %c16, %c3_91] : memref<2x22x22xf32, #tpu.memory_space<vmem>>, vector<1x1x16xf32>
    %165 = vector.shape_cast %164 : vector<1x1x16xf32> to vector<1x16xf32>
    %166 = vector.shape_cast %163 : vector<1x16xf32> to vector<1x1x16xf32>
    tpu.vector_store %arg7[%c0_90, %c16, %c3_91], %166 {strides = array<i32>} : memref<2x22x22xf32, #tpu.memory_space<vmem>>, vector<1x1x16xf32>,
    %167 = vector.extract_strided_slice %58 {offsets = [0, 208], sizes = [1, 16], strides = [1, 1]} : vector<1x256xf32> to vector<1x16xf32>
    %c1_92 = arith.constant 1 : index
    %c16_93 = arith.constant 16 : index
    %c3_94 = arith.constant 3 : index
    %168 = vector.load %arg7[%c1_92, %c16_93, %c3_94] : memref<2x22x22xf32, #tpu.memory_space<vmem>>, vector<1x1x16xf32>
    %169 = vector.shape_cast %168 : vector<1x1x16xf32> to vector<1x16xf32>
    %170 = vector.shape_cast %167 : vector<1x16xf32> to vector<1x1x16xf32>
    tpu.vector_store %arg7[%c1_92, %c16_93, %c3_94], %170 {strides = array<i32>} : memref<2x22x22xf32, #tpu.memory_space<vmem>>, vector<1x1x16xf32>,
    %171 = vector.extract_strided_slice %56 {offsets = [0, 224], sizes = [1, 16], strides = [1, 1]} : vector<1x256xf32> to vector<1x16xf32>
    %c0_95 = arith.constant 0 : index
    %c17 = arith.constant 17 : index
    %c3_96 = arith.constant 3 : index
    %172 = vector.load %arg7[%c0_95, %c17, %c3_96] : memref<2x22x22xf32, #tpu.memory_space<vmem>>, vector<1x1x16xf32>
    %173 = vector.shape_cast %172 : vector<1x1x16xf32> to vector<1x16xf32>
    %174 = vector.shape_cast %171 : vector<1x16xf32> to vector<1x1x16xf32>
    tpu.vector_store %arg7[%c0_95, %c17, %c3_96], %174 {strides = array<i32>} : memref<2x22x22xf32, #tpu.memory_space<vmem>>, vector<1x1x16xf32>,
    %175 = vector.extract_strided_slice %58 {offsets = [0, 224], sizes = [1, 16], strides = [1, 1]} : vector<1x256xf32> to vector<1x16xf32>
    %c1_97 = arith.constant 1 : index
    %c17_98 = arith.constant 17 : index
    %c3_99 = arith.constant 3 : index
    %176 = vector.load %arg7[%c1_97, %c17_98, %c3_99] : memref<2x22x22xf32, #tpu.memory_space<vmem>>, vector<1x1x16xf32>
    %177 = vector.shape_cast %176 : vector<1x1x16xf32> to vector<1x16xf32>
    %178 = vector.shape_cast %175 : vector<1x16xf32> to vector<1x1x16xf32>
    tpu.vector_store %arg7[%c1_97, %c17_98, %c3_99], %178 {strides = array<i32>} : memref<2x22x22xf32, #tpu.memory_space<vmem>>, vector<1x1x16xf32>,
    %179 = vector.extract_strided_slice %56 {offsets = [0, 240], sizes = [1, 16], strides = [1, 1]} : vector<1x256xf32> to vector<1x16xf32>
    %c0_100 = arith.constant 0 : index
    %c18 = arith.constant 18 : index
    %c3_101 = arith.constant 3 : index
    %180 = vector.load %arg7[%c0_100, %c18, %c3_101] : memref<2x22x22xf32, #tpu.memory_space<vmem>>, vector<1x1x16xf32>
    %181 = vector.shape_cast %180 : vector<1x1x16xf32> to vector<1x16xf32>
    %182 = vector.shape_cast %179 : vector<1x16xf32> to vector<1x1x16xf32>
    tpu.vector_store %arg7[%c0_100, %c18, %c3_101], %182 {strides = array<i32>} : memref<2x22x22xf32, #tpu.memory_space<vmem>>, vector<1x1x16xf32>,
    %183 = vector.extract_strided_slice %58 {offsets = [0, 240], sizes = [1, 16], strides = [1, 1]} : vector<1x256xf32> to vector<1x16xf32>
    %c1_102 = arith.constant 1 : index
    %c18_103 = arith.constant 18 : index
    %c3_104 = arith.constant 3 : index
    %184 = vector.load %arg7[%c1_102, %c18_103, %c3_104] : memref<2x22x22xf32, #tpu.memory_space<vmem>>, vector<1x1x16xf32>
    %185 = vector.shape_cast %184 : vector<1x1x16xf32> to vector<1x16xf32>
    %186 = vector.shape_cast %183 : vector<1x16xf32> to vector<1x1x16xf32>
    tpu.vector_store %arg7[%c1_102, %c18_103, %c3_104], %186 {strides = array<i32>} : memref<2x22x22xf32, #tpu.memory_space<vmem>>, vector<1x1x16xf32>,
    %187 = vector.broadcast %2 : f32 to vector<16x16xf32>
    %c0_105 = arith.constant 0 : index
    %c0_106 = arith.constant 0 : index
    %c0_107 = arith.constant 0 : index
    %188 = vector.load %arg7[%c0_105, %c0_106, %c0_107] : memref<2x22x22xf32, #tpu.memory_space<vmem>>, vector<1x22x16xf32>
    %189 = vector.shape_cast %188 : vector<1x22x16xf32> to vector<22x16xf32>
    %c0_108 = arith.constant 0 : index
    %190 = memref.load %arg4[%c0_108] : memref<98xf32, #tpu.memory_space<smem>>
    %191 = vector.extract_strided_slice %189 {offsets = [0, 0], sizes = [16, 16], strides = [1, 1]} : vector<22x16xf32> to vector<16x16xf32>
    %192 = vector.broadcast %190 : f32 to vector<16x16xf32>
    %193 = arith.mulf %192, %191 : vector<16x16xf32>
    %194 = arith.addf %187, %193 : vector<16x16xf32>
    %c7_109 = arith.constant 7 : index
    %195 = memref.load %arg4[%c7_109] : memref<98xf32, #tpu.memory_space<smem>>
    %196 = vector.extract_strided_slice %189 {offsets = [1, 0], sizes = [16, 16], strides = [1, 1]} : vector<22x16xf32> to vector<16x16xf32>
    %197 = vector.broadcast %195 : f32 to vector<16x16xf32>
    %198 = arith.mulf %197, %196 : vector<16x16xf32>
    %199 = arith.addf %194, %198 : vector<16x16xf32>
    %c14_110 = arith.constant 14 : index
    %200 = memref.load %arg4[%c14_110] : memref<98xf32, #tpu.memory_space<smem>>
    %201 = vector.extract_strided_slice %189 {offsets = [2, 0], sizes = [16, 16], strides = [1, 1]} : vector<22x16xf32> to vector<16x16xf32>
    %202 = vector.broadcast %200 : f32 to vector<16x16xf32>
    %203 = arith.mulf %202, %201 : vector<16x16xf32>
    %204 = arith.addf %199, %203 : vector<16x16xf32>
    %c21 = arith.constant 21 : index
    %205 = memref.load %arg4[%c21] : memref<98xf32, #tpu.memory_space<smem>>
    %206 = vector.extract_strided_slice %189 {offsets = [3, 0], sizes = [16, 16], strides = [1, 1]} : vector<22x16xf32> to vector<16x16xf32>
    %207 = vector.broadcast %205 : f32 to vector<16x16xf32>
    %208 = arith.mulf %207, %206 : vector<16x16xf32>
    %209 = arith.addf %204, %208 : vector<16x16xf32>
    %c28 = arith.constant 28 : index
    %210 = memref.load %arg4[%c28] : memref<98xf32, #tpu.memory_space<smem>>
    %211 = vector.extract_strided_slice %189 {offsets = [4, 0], sizes = [16, 16], strides = [1, 1]} : vector<22x16xf32> to vector<16x16xf32>
    %212 = vector.broadcast %210 : f32 to vector<16x16xf32>
    %213 = arith.mulf %212, %211 : vector<16x16xf32>
    %214 = arith.addf %209, %213 : vector<16x16xf32>
    %c35 = arith.constant 35 : index
    %215 = memref.load %arg4[%c35] : memref<98xf32, #tpu.memory_space<smem>>
    %216 = vector.extract_strided_slice %189 {offsets = [5, 0], sizes = [16, 16], strides = [1, 1]} : vector<22x16xf32> to vector<16x16xf32>
    %217 = vector.broadcast %215 : f32 to vector<16x16xf32>
    %218 = arith.mulf %217, %216 : vector<16x16xf32>
    %219 = arith.addf %214, %218 : vector<16x16xf32>
    %c42 = arith.constant 42 : index
    %220 = memref.load %arg4[%c42] : memref<98xf32, #tpu.memory_space<smem>>
    %221 = vector.extract_strided_slice %189 {offsets = [6, 0], sizes = [16, 16], strides = [1, 1]} : vector<22x16xf32> to vector<16x16xf32>
    %222 = vector.broadcast %220 : f32 to vector<16x16xf32>
    %223 = arith.mulf %222, %221 : vector<16x16xf32>
    %224 = arith.addf %219, %223 : vector<16x16xf32>
    %c1_111 = arith.constant 1 : index
    %c0_112 = arith.constant 0 : index
    %c0_113 = arith.constant 0 : index
    %225 = vector.load %arg7[%c1_111, %c0_112, %c0_113] : memref<2x22x22xf32, #tpu.memory_space<vmem>>, vector<1x22x16xf32>
    %226 = vector.shape_cast %225 : vector<1x22x16xf32> to vector<22x16xf32>
    %c49 = arith.constant 49 : index
    %227 = memref.load %arg4[%c49] : memref<98xf32, #tpu.memory_space<smem>>
    %228 = vector.extract_strided_slice %226 {offsets = [0, 0], sizes = [16, 16], strides = [1, 1]} : vector<22x16xf32> to vector<16x16xf32>
    %229 = vector.broadcast %227 : f32 to vector<16x16xf32>
    %230 = arith.mulf %229, %228 : vector<16x16xf32>
    %231 = arith.addf %224, %230 : vector<16x16xf32>
    %c56 = arith.constant 56 : index
    %232 = memref.load %arg4[%c56] : memref<98xf32, #tpu.memory_space<smem>>
    %233 = vector.extract_strided_slice %226 {offsets = [1, 0], sizes = [16, 16], strides = [1, 1]} : vector<22x16xf32> to vector<16x16xf32>
    %234 = vector.broadcast %232 : f32 to vector<16x16xf32>
    %235 = arith.mulf %234, %233 : vector<16x16xf32>
    %236 = arith.addf %231, %235 : vector<16x16xf32>
    %c63 = arith.constant 63 : index
    %237 = memref.load %arg4[%c63] : memref<98xf32, #tpu.memory_space<smem>>
    %238 = vector.extract_strided_slice %226 {offsets = [2, 0], sizes = [16, 16], strides = [1, 1]} : vector<22x16xf32> to vector<16x16xf32>
    %239 = vector.broadcast %237 : f32 to vector<16x16xf32>
    %240 = arith.mulf %239, %238 : vector<16x16xf32>
    %241 = arith.addf %236, %240 : vector<16x16xf32>
    %c70 = arith.constant 70 : index
    %242 = memref.load %arg4[%c70] : memref<98xf32, #tpu.memory_space<smem>>
    %243 = vector.extract_strided_slice %226 {offsets = [3, 0], sizes = [16, 16], strides = [1, 1]} : vector<22x16xf32> to vector<16x16xf32>
    %244 = vector.broadcast %242 : f32 to vector<16x16xf32>
    %245 = arith.mulf %244, %243 : vector<16x16xf32>
    %246 = arith.addf %241, %245 : vector<16x16xf32>
    %c77 = arith.constant 77 : index
    %247 = memref.load %arg4[%c77] : memref<98xf32, #tpu.memory_space<smem>>
    %248 = vector.extract_strided_slice %226 {offsets = [4, 0], sizes = [16, 16], strides = [1, 1]} : vector<22x16xf32> to vector<16x16xf32>
    %249 = vector.broadcast %247 : f32 to vector<16x16xf32>
    %250 = arith.mulf %249, %248 : vector<16x16xf32>
    %251 = arith.addf %246, %250 : vector<16x16xf32>
    %c84 = arith.constant 84 : index
    %252 = memref.load %arg4[%c84] : memref<98xf32, #tpu.memory_space<smem>>
    %253 = vector.extract_strided_slice %226 {offsets = [5, 0], sizes = [16, 16], strides = [1, 1]} : vector<22x16xf32> to vector<16x16xf32>
    %254 = vector.broadcast %252 : f32 to vector<16x16xf32>
    %255 = arith.mulf %254, %253 : vector<16x16xf32>
    %256 = arith.addf %251, %255 : vector<16x16xf32>
    %c91 = arith.constant 91 : index
    %257 = memref.load %arg4[%c91] : memref<98xf32, #tpu.memory_space<smem>>
    %258 = vector.extract_strided_slice %226 {offsets = [6, 0], sizes = [16, 16], strides = [1, 1]} : vector<22x16xf32> to vector<16x16xf32>
    %259 = vector.broadcast %257 : f32 to vector<16x16xf32>
    %260 = arith.mulf %259, %258 : vector<16x16xf32>
    %261 = arith.addf %256, %260 : vector<16x16xf32>
    %c0_114 = arith.constant 0 : index
    %c0_115 = arith.constant 0 : index
    %c1_116 = arith.constant 1 : index
    %262 = vector.load %arg7[%c0_114, %c0_115, %c1_116] : memref<2x22x22xf32, #tpu.memory_space<vmem>>, vector<1x22x16xf32>
    %263 = vector.shape_cast %262 : vector<1x22x16xf32> to vector<22x16xf32>
    %c1_117 = arith.constant 1 : index
    %264 = memref.load %arg4[%c1_117] : memref<98xf32, #tpu.memory_space<smem>>
    %265 = vector.extract_strided_slice %263 {offsets = [0, 0], sizes = [16, 16], strides = [1, 1]} : vector<22x16xf32> to vector<16x16xf32>
    %266 = vector.broadcast %264 : f32 to vector<16x16xf32>
    %267 = arith.mulf %266, %265 : vector<16x16xf32>
    %268 = arith.addf %261, %267 : vector<16x16xf32>
    %c8_118 = arith.constant 8 : index
    %269 = memref.load %arg4[%c8_118] : memref<98xf32, #tpu.memory_space<smem>>
    %270 = vector.extract_strided_slice %263 {offsets = [1, 0], sizes = [16, 16], strides = [1, 1]} : vector<22x16xf32> to vector<16x16xf32>
    %271 = vector.broadcast %269 : f32 to vector<16x16xf32>
    %272 = arith.mulf %271, %270 : vector<16x16xf32>
    %273 = arith.addf %268, %272 : vector<16x16xf32>
    %c15_119 = arith.constant 15 : index
    %274 = memref.load %arg4[%c15_119] : memref<98xf32, #tpu.memory_space<smem>>
    %275 = vector.extract_strided_slice %263 {offsets = [2, 0], sizes = [16, 16], strides = [1, 1]} : vector<22x16xf32> to vector<16x16xf32>
    %276 = vector.broadcast %274 : f32 to vector<16x16xf32>
    %277 = arith.mulf %276, %275 : vector<16x16xf32>
    %278 = arith.addf %273, %277 : vector<16x16xf32>
    %c22 = arith.constant 22 : index
    %279 = memref.load %arg4[%c22] : memref<98xf32, #tpu.memory_space<smem>>
    %280 = vector.extract_strided_slice %263 {offsets = [3, 0], sizes = [16, 16], strides = [1, 1]} : vector<22x16xf32> to vector<16x16xf32>
    %281 = vector.broadcast %279 : f32 to vector<16x16xf32>
    %282 = arith.mulf %281, %280 : vector<16x16xf32>
    %283 = arith.addf %278, %282 : vector<16x16xf32>
    %c29 = arith.constant 29 : index
    %284 = memref.load %arg4[%c29] : memref<98xf32, #tpu.memory_space<smem>>
    %285 = vector.extract_strided_slice %263 {offsets = [4, 0], sizes = [16, 16], strides = [1, 1]} : vector<22x16xf32> to vector<16x16xf32>
    %286 = vector.broadcast %284 : f32 to vector<16x16xf32>
    %287 = arith.mulf %286, %285 : vector<16x16xf32>
    %288 = arith.addf %283, %287 : vector<16x16xf32>
    %c36 = arith.constant 36 : index
    %289 = memref.load %arg4[%c36] : memref<98xf32, #tpu.memory_space<smem>>
    %290 = vector.extract_strided_slice %263 {offsets = [5, 0], sizes = [16, 16], strides = [1, 1]} : vector<22x16xf32> to vector<16x16xf32>
    %291 = vector.broadcast %289 : f32 to vector<16x16xf32>
    %292 = arith.mulf %291, %290 : vector<16x16xf32>
    %293 = arith.addf %288, %292 : vector<16x16xf32>
    %c43 = arith.constant 43 : index
    %294 = memref.load %arg4[%c43] : memref<98xf32, #tpu.memory_space<smem>>
    %295 = vector.extract_strided_slice %263 {offsets = [6, 0], sizes = [16, 16], strides = [1, 1]} : vector<22x16xf32> to vector<16x16xf32>
    %296 = vector.broadcast %294 : f32 to vector<16x16xf32>
    %297 = arith.mulf %296, %295 : vector<16x16xf32>
    %298 = arith.addf %293, %297 : vector<16x16xf32>
    %c1_120 = arith.constant 1 : index
    %c0_121 = arith.constant 0 : index
    %c1_122 = arith.constant 1 : index
    %299 = vector.load %arg7[%c1_120, %c0_121, %c1_122] : memref<2x22x22xf32, #tpu.memory_space<vmem>>, vector<1x22x16xf32>
    %300 = vector.shape_cast %299 : vector<1x22x16xf32> to vector<22x16xf32>
    %c50 = arith.constant 50 : index
    %301 = memref.load %arg4[%c50] : memref<98xf32, #tpu.memory_space<smem>>
    %302 = vector.extract_strided_slice %300 {offsets = [0, 0], sizes = [16, 16], strides = [1, 1]} : vector<22x16xf32> to vector<16x16xf32>
    %303 = vector.broadcast %301 : f32 to vector<16x16xf32>
    %304 = arith.mulf %303, %302 : vector<16x16xf32>
    %305 = arith.addf %298, %304 : vector<16x16xf32>
    %c57 = arith.constant 57 : index
    %306 = memref.load %arg4[%c57] : memref<98xf32, #tpu.memory_space<smem>>
    %307 = vector.extract_strided_slice %300 {offsets = [1, 0], sizes = [16, 16], strides = [1, 1]} : vector<22x16xf32> to vector<16x16xf32>
    %308 = vector.broadcast %306 : f32 to vector<16x16xf32>
    %309 = arith.mulf %308, %307 : vector<16x16xf32>
    %310 = arith.addf %305, %309 : vector<16x16xf32>
    %c64 = arith.constant 64 : index
    %311 = memref.load %arg4[%c64] : memref<98xf32, #tpu.memory_space<smem>>
    %312 = vector.extract_strided_slice %300 {offsets = [2, 0], sizes = [16, 16], strides = [1, 1]} : vector<22x16xf32> to vector<16x16xf32>
    %313 = vector.broadcast %311 : f32 to vector<16x16xf32>
    %314 = arith.mulf %313, %312 : vector<16x16xf32>
    %315 = arith.addf %310, %314 : vector<16x16xf32>
    %c71 = arith.constant 71 : index
    %316 = memref.load %arg4[%c71] : memref<98xf32, #tpu.memory_space<smem>>
    %317 = vector.extract_strided_slice %300 {offsets = [3, 0], sizes = [16, 16], strides = [1, 1]} : vector<22x16xf32> to vector<16x16xf32>
    %318 = vector.broadcast %316 : f32 to vector<16x16xf32>
    %319 = arith.mulf %318, %317 : vector<16x16xf32>
    %320 = arith.addf %315, %319 : vector<16x16xf32>
    %c78 = arith.constant 78 : index
    %321 = memref.load %arg4[%c78] : memref<98xf32, #tpu.memory_space<smem>>
    %322 = vector.extract_strided_slice %300 {offsets = [4, 0], sizes = [16, 16], strides = [1, 1]} : vector<22x16xf32> to vector<16x16xf32>
    %323 = vector.broadcast %321 : f32 to vector<16x16xf32>
    %324 = arith.mulf %323, %322 : vector<16x16xf32>
    %325 = arith.addf %320, %324 : vector<16x16xf32>
    %c85 = arith.constant 85 : index
    %326 = memref.load %arg4[%c85] : memref<98xf32, #tpu.memory_space<smem>>
    %327 = vector.extract_strided_slice %300 {offsets = [5, 0], sizes = [16, 16], strides = [1, 1]} : vector<22x16xf32> to vector<16x16xf32>
    %328 = vector.broadcast %326 : f32 to vector<16x16xf32>
    %329 = arith.mulf %328, %327 : vector<16x16xf32>
    %330 = arith.addf %325, %329 : vector<16x16xf32>
    %c92 = arith.constant 92 : index
    %331 = memref.load %arg4[%c92] : memref<98xf32, #tpu.memory_space<smem>>
    %332 = vector.extract_strided_slice %300 {offsets = [6, 0], sizes = [16, 16], strides = [1, 1]} : vector<22x16xf32> to vector<16x16xf32>
    %333 = vector.broadcast %331 : f32 to vector<16x16xf32>
    %334 = arith.mulf %333, %332 : vector<16x16xf32>
    %335 = arith.addf %330, %334 : vector<16x16xf32>
    %c0_123 = arith.constant 0 : index
    %c0_124 = arith.constant 0 : index
    %c2 = arith.constant 2 : index
    %336 = vector.load %arg7[%c0_123, %c0_124, %c2] : memref<2x22x22xf32, #tpu.memory_space<vmem>>, vector<1x22x16xf32>
    %337 = vector.shape_cast %336 : vector<1x22x16xf32> to vector<22x16xf32>
    %c2_125 = arith.constant 2 : index
    %338 = memref.load %arg4[%c2_125] : memref<98xf32, #tpu.memory_space<smem>>
    %339 = vector.extract_strided_slice %337 {offsets = [0, 0], sizes = [16, 16], strides = [1, 1]} : vector<22x16xf32> to vector<16x16xf32>
    %340 = vector.broadcast %338 : f32 to vector<16x16xf32>
    %341 = arith.mulf %340, %339 : vector<16x16xf32>
    %342 = arith.addf %335, %341 : vector<16x16xf32>
    %c9_126 = arith.constant 9 : index
    %343 = memref.load %arg4[%c9_126] : memref<98xf32, #tpu.memory_space<smem>>
    %344 = vector.extract_strided_slice %337 {offsets = [1, 0], sizes = [16, 16], strides = [1, 1]} : vector<22x16xf32> to vector<16x16xf32>
    %345 = vector.broadcast %343 : f32 to vector<16x16xf32>
    %346 = arith.mulf %345, %344 : vector<16x16xf32>
    %347 = arith.addf %342, %346 : vector<16x16xf32>
    %c16_127 = arith.constant 16 : index
    %348 = memref.load %arg4[%c16_127] : memref<98xf32, #tpu.memory_space<smem>>
    %349 = vector.extract_strided_slice %337 {offsets = [2, 0], sizes = [16, 16], strides = [1, 1]} : vector<22x16xf32> to vector<16x16xf32>
    %350 = vector.broadcast %348 : f32 to vector<16x16xf32>
    %351 = arith.mulf %350, %349 : vector<16x16xf32>
    %352 = arith.addf %347, %351 : vector<16x16xf32>
    %c23 = arith.constant 23 : index
    %353 = memref.load %arg4[%c23] : memref<98xf32, #tpu.memory_space<smem>>
    %354 = vector.extract_strided_slice %337 {offsets = [3, 0], sizes = [16, 16], strides = [1, 1]} : vector<22x16xf32> to vector<16x16xf32>
    %355 = vector.broadcast %353 : f32 to vector<16x16xf32>
    %356 = arith.mulf %355, %354 : vector<16x16xf32>
    %357 = arith.addf %352, %356 : vector<16x16xf32>
    %c30 = arith.constant 30 : index
    %358 = memref.load %arg4[%c30] : memref<98xf32, #tpu.memory_space<smem>>
    %359 = vector.extract_strided_slice %337 {offsets = [4, 0], sizes = [16, 16], strides = [1, 1]} : vector<22x16xf32> to vector<16x16xf32>
    %360 = vector.broadcast %358 : f32 to vector<16x16xf32>
    %361 = arith.mulf %360, %359 : vector<16x16xf32>
    %362 = arith.addf %357, %361 : vector<16x16xf32>
    %c37 = arith.constant 37 : index
    %363 = memref.load %arg4[%c37] : memref<98xf32, #tpu.memory_space<smem>>
    %364 = vector.extract_strided_slice %337 {offsets = [5, 0], sizes = [16, 16], strides = [1, 1]} : vector<22x16xf32> to vector<16x16xf32>
    %365 = vector.broadcast %363 : f32 to vector<16x16xf32>
    %366 = arith.mulf %365, %364 : vector<16x16xf32>
    %367 = arith.addf %362, %366 : vector<16x16xf32>
    %c44 = arith.constant 44 : index
    %368 = memref.load %arg4[%c44] : memref<98xf32, #tpu.memory_space<smem>>
    %369 = vector.extract_strided_slice %337 {offsets = [6, 0], sizes = [16, 16], strides = [1, 1]} : vector<22x16xf32> to vector<16x16xf32>
    %370 = vector.broadcast %368 : f32 to vector<16x16xf32>
    %371 = arith.mulf %370, %369 : vector<16x16xf32>
    %372 = arith.addf %367, %371 : vector<16x16xf32>
    %c1_128 = arith.constant 1 : index
    %c0_129 = arith.constant 0 : index
    %c2_130 = arith.constant 2 : index
    %373 = vector.load %arg7[%c1_128, %c0_129, %c2_130] : memref<2x22x22xf32, #tpu.memory_space<vmem>>, vector<1x22x16xf32>
    %374 = vector.shape_cast %373 : vector<1x22x16xf32> to vector<22x16xf32>
    %c51 = arith.constant 51 : index
    %375 = memref.load %arg4[%c51] : memref<98xf32, #tpu.memory_space<smem>>
    %376 = vector.extract_strided_slice %374 {offsets = [0, 0], sizes = [16, 16], strides = [1, 1]} : vector<22x16xf32> to vector<16x16xf32>
    %377 = vector.broadcast %375 : f32 to vector<16x16xf32>
    %378 = arith.mulf %377, %376 : vector<16x16xf32>
    %379 = arith.addf %372, %378 : vector<16x16xf32>
    %c58 = arith.constant 58 : index
    %380 = memref.load %arg4[%c58] : memref<98xf32, #tpu.memory_space<smem>>
    %381 = vector.extract_strided_slice %374 {offsets = [1, 0], sizes = [16, 16], strides = [1, 1]} : vector<22x16xf32> to vector<16x16xf32>
    %382 = vector.broadcast %380 : f32 to vector<16x16xf32>
    %383 = arith.mulf %382, %381 : vector<16x16xf32>
    %384 = arith.addf %379, %383 : vector<16x16xf32>
    %c65 = arith.constant 65 : index
    %385 = memref.load %arg4[%c65] : memref<98xf32, #tpu.memory_space<smem>>
    %386 = vector.extract_strided_slice %374 {offsets = [2, 0], sizes = [16, 16], strides = [1, 1]} : vector<22x16xf32> to vector<16x16xf32>
    %387 = vector.broadcast %385 : f32 to vector<16x16xf32>
    %388 = arith.mulf %387, %386 : vector<16x16xf32>
    %389 = arith.addf %384, %388 : vector<16x16xf32>
    %c72 = arith.constant 72 : index
    %390 = memref.load %arg4[%c72] : memref<98xf32, #tpu.memory_space<smem>>
    %391 = vector.extract_strided_slice %374 {offsets = [3, 0], sizes = [16, 16], strides = [1, 1]} : vector<22x16xf32> to vector<16x16xf32>
    %392 = vector.broadcast %390 : f32 to vector<16x16xf32>
    %393 = arith.mulf %392, %391 : vector<16x16xf32>
    %394 = arith.addf %389, %393 : vector<16x16xf32>
    %c79 = arith.constant 79 : index
    %395 = memref.load %arg4[%c79] : memref<98xf32, #tpu.memory_space<smem>>
    %396 = vector.extract_strided_slice %374 {offsets = [4, 0], sizes = [16, 16], strides = [1, 1]} : vector<22x16xf32> to vector<16x16xf32>
    %397 = vector.broadcast %395 : f32 to vector<16x16xf32>
    %398 = arith.mulf %397, %396 : vector<16x16xf32>
    %399 = arith.addf %394, %398 : vector<16x16xf32>
    %c86 = arith.constant 86 : index
    %400 = memref.load %arg4[%c86] : memref<98xf32, #tpu.memory_space<smem>>
    %401 = vector.extract_strided_slice %374 {offsets = [5, 0], sizes = [16, 16], strides = [1, 1]} : vector<22x16xf32> to vector<16x16xf32>
    %402 = vector.broadcast %400 : f32 to vector<16x16xf32>
    %403 = arith.mulf %402, %401 : vector<16x16xf32>
    %404 = arith.addf %399, %403 : vector<16x16xf32>
    %c93 = arith.constant 93 : index
    %405 = memref.load %arg4[%c93] : memref<98xf32, #tpu.memory_space<smem>>
    %406 = vector.extract_strided_slice %374 {offsets = [6, 0], sizes = [16, 16], strides = [1, 1]} : vector<22x16xf32> to vector<16x16xf32>
    %407 = vector.broadcast %405 : f32 to vector<16x16xf32>
    %408 = arith.mulf %407, %406 : vector<16x16xf32>
    %409 = arith.addf %404, %408 : vector<16x16xf32>
    %c0_131 = arith.constant 0 : index
    %c0_132 = arith.constant 0 : index
    %c3_133 = arith.constant 3 : index
    %410 = vector.load %arg7[%c0_131, %c0_132, %c3_133] : memref<2x22x22xf32, #tpu.memory_space<vmem>>, vector<1x22x16xf32>
    %411 = vector.shape_cast %410 : vector<1x22x16xf32> to vector<22x16xf32>
    %c3_134 = arith.constant 3 : index
    %412 = memref.load %arg4[%c3_134] : memref<98xf32, #tpu.memory_space<smem>>
    %413 = vector.extract_strided_slice %411 {offsets = [0, 0], sizes = [16, 16], strides = [1, 1]} : vector<22x16xf32> to vector<16x16xf32>
    %414 = vector.broadcast %412 : f32 to vector<16x16xf32>
    %415 = arith.mulf %414, %413 : vector<16x16xf32>
    %416 = arith.addf %409, %415 : vector<16x16xf32>
    %c10_135 = arith.constant 10 : index
    %417 = memref.load %arg4[%c10_135] : memref<98xf32, #tpu.memory_space<smem>>
    %418 = vector.extract_strided_slice %411 {offsets = [1, 0], sizes = [16, 16], strides = [1, 1]} : vector<22x16xf32> to vector<16x16xf32>
    %419 = vector.broadcast %417 : f32 to vector<16x16xf32>
    %420 = arith.mulf %419, %418 : vector<16x16xf32>
    %421 = arith.addf %416, %420 : vector<16x16xf32>
    %c17_136 = arith.constant 17 : index
    %422 = memref.load %arg4[%c17_136] : memref<98xf32, #tpu.memory_space<smem>>
    %423 = vector.extract_strided_slice %411 {offsets = [2, 0], sizes = [16, 16], strides = [1, 1]} : vector<22x16xf32> to vector<16x16xf32>
    %424 = vector.broadcast %422 : f32 to vector<16x16xf32>
    %425 = arith.mulf %424, %423 : vector<16x16xf32>
    %426 = arith.addf %421, %425 : vector<16x16xf32>
    %c24 = arith.constant 24 : index
    %427 = memref.load %arg4[%c24] : memref<98xf32, #tpu.memory_space<smem>>
    %428 = vector.extract_strided_slice %411 {offsets = [3, 0], sizes = [16, 16], strides = [1, 1]} : vector<22x16xf32> to vector<16x16xf32>
    %429 = vector.broadcast %427 : f32 to vector<16x16xf32>
    %430 = arith.mulf %429, %428 : vector<16x16xf32>
    %431 = arith.addf %426, %430 : vector<16x16xf32>
    %c31 = arith.constant 31 : index
    %432 = memref.load %arg4[%c31] : memref<98xf32, #tpu.memory_space<smem>>
    %433 = vector.extract_strided_slice %411 {offsets = [4, 0], sizes = [16, 16], strides = [1, 1]} : vector<22x16xf32> to vector<16x16xf32>
    %434 = vector.broadcast %432 : f32 to vector<16x16xf32>
    %435 = arith.mulf %434, %433 : vector<16x16xf32>
    %436 = arith.addf %431, %435 : vector<16x16xf32>
    %c38 = arith.constant 38 : index
    %437 = memref.load %arg4[%c38] : memref<98xf32, #tpu.memory_space<smem>>
    %438 = vector.extract_strided_slice %411 {offsets = [5, 0], sizes = [16, 16], strides = [1, 1]} : vector<22x16xf32> to vector<16x16xf32>
    %439 = vector.broadcast %437 : f32 to vector<16x16xf32>
    %440 = arith.mulf %439, %438 : vector<16x16xf32>
    %441 = arith.addf %436, %440 : vector<16x16xf32>
    %c45 = arith.constant 45 : index
    %442 = memref.load %arg4[%c45] : memref<98xf32, #tpu.memory_space<smem>>
    %443 = vector.extract_strided_slice %411 {offsets = [6, 0], sizes = [16, 16], strides = [1, 1]} : vector<22x16xf32> to vector<16x16xf32>
    %444 = vector.broadcast %442 : f32 to vector<16x16xf32>
    %445 = arith.mulf %444, %443 : vector<16x16xf32>
    %446 = arith.addf %441, %445 : vector<16x16xf32>
    %c1_137 = arith.constant 1 : index
    %c0_138 = arith.constant 0 : index
    %c3_139 = arith.constant 3 : index
    %447 = vector.load %arg7[%c1_137, %c0_138, %c3_139] : memref<2x22x22xf32, #tpu.memory_space<vmem>>, vector<1x22x16xf32>
    %448 = vector.shape_cast %447 : vector<1x22x16xf32> to vector<22x16xf32>
    %c52 = arith.constant 52 : index
    %449 = memref.load %arg4[%c52] : memref<98xf32, #tpu.memory_space<smem>>
    %450 = vector.extract_strided_slice %448 {offsets = [0, 0], sizes = [16, 16], strides = [1, 1]} : vector<22x16xf32> to vector<16x16xf32>
    %451 = vector.broadcast %449 : f32 to vector<16x16xf32>
    %452 = arith.mulf %451, %450 : vector<16x16xf32>
    %453 = arith.addf %446, %452 : vector<16x16xf32>
    %c59 = arith.constant 59 : index
    %454 = memref.load %arg4[%c59] : memref<98xf32, #tpu.memory_space<smem>>
    %455 = vector.extract_strided_slice %448 {offsets = [1, 0], sizes = [16, 16], strides = [1, 1]} : vector<22x16xf32> to vector<16x16xf32>
    %456 = vector.broadcast %454 : f32 to vector<16x16xf32>
    %457 = arith.mulf %456, %455 : vector<16x16xf32>
    %458 = arith.addf %453, %457 : vector<16x16xf32>
    %c66 = arith.constant 66 : index
    %459 = memref.load %arg4[%c66] : memref<98xf32, #tpu.memory_space<smem>>
    %460 = vector.extract_strided_slice %448 {offsets = [2, 0], sizes = [16, 16], strides = [1, 1]} : vector<22x16xf32> to vector<16x16xf32>
    %461 = vector.broadcast %459 : f32 to vector<16x16xf32>
    %462 = arith.mulf %461, %460 : vector<16x16xf32>
    %463 = arith.addf %458, %462 : vector<16x16xf32>
    %c73 = arith.constant 73 : index
    %464 = memref.load %arg4[%c73] : memref<98xf32, #tpu.memory_space<smem>>
    %465 = vector.extract_strided_slice %448 {offsets = [3, 0], sizes = [16, 16], strides = [1, 1]} : vector<22x16xf32> to vector<16x16xf32>
    %466 = vector.broadcast %464 : f32 to vector<16x16xf32>
    %467 = arith.mulf %466, %465 : vector<16x16xf32>
    %468 = arith.addf %463, %467 : vector<16x16xf32>
    %c80 = arith.constant 80 : index
    %469 = memref.load %arg4[%c80] : memref<98xf32, #tpu.memory_space<smem>>
    %470 = vector.extract_strided_slice %448 {offsets = [4, 0], sizes = [16, 16], strides = [1, 1]} : vector<22x16xf32> to vector<16x16xf32>
    %471 = vector.broadcast %469 : f32 to vector<16x16xf32>
    %472 = arith.mulf %471, %470 : vector<16x16xf32>
    %473 = arith.addf %468, %472 : vector<16x16xf32>
    %c87 = arith.constant 87 : index
    %474 = memref.load %arg4[%c87] : memref<98xf32, #tpu.memory_space<smem>>
    %475 = vector.extract_strided_slice %448 {offsets = [5, 0], sizes = [16, 16], strides = [1, 1]} : vector<22x16xf32> to vector<16x16xf32>
    %476 = vector.broadcast %474 : f32 to vector<16x16xf32>
    %477 = arith.mulf %476, %475 : vector<16x16xf32>
    %478 = arith.addf %473, %477 : vector<16x16xf32>
    %c94 = arith.constant 94 : index
    %479 = memref.load %arg4[%c94] : memref<98xf32, #tpu.memory_space<smem>>
    %480 = vector.extract_strided_slice %448 {offsets = [6, 0], sizes = [16, 16], strides = [1, 1]} : vector<22x16xf32> to vector<16x16xf32>
    %481 = vector.broadcast %479 : f32 to vector<16x16xf32>
    %482 = arith.mulf %481, %480 : vector<16x16xf32>
    %483 = arith.addf %478, %482 : vector<16x16xf32>
    %c0_140 = arith.constant 0 : index
    %c0_141 = arith.constant 0 : index
    %c4_142 = arith.constant 4 : index
    %484 = vector.load %arg7[%c0_140, %c0_141, %c4_142] : memref<2x22x22xf32, #tpu.memory_space<vmem>>, vector<1x22x16xf32>
    %485 = vector.shape_cast %484 : vector<1x22x16xf32> to vector<22x16xf32>
    %c4_143 = arith.constant 4 : index
    %486 = memref.load %arg4[%c4_143] : memref<98xf32, #tpu.memory_space<smem>>
    %487 = vector.extract_strided_slice %485 {offsets = [0, 0], sizes = [16, 16], strides = [1, 1]} : vector<22x16xf32> to vector<16x16xf32>
    %488 = vector.broadcast %486 : f32 to vector<16x16xf32>
    %489 = arith.mulf %488, %487 : vector<16x16xf32>
    %490 = arith.addf %483, %489 : vector<16x16xf32>
    %c11_144 = arith.constant 11 : index
    %491 = memref.load %arg4[%c11_144] : memref<98xf32, #tpu.memory_space<smem>>
    %492 = vector.extract_strided_slice %485 {offsets = [1, 0], sizes = [16, 16], strides = [1, 1]} : vector<22x16xf32> to vector<16x16xf32>
    %493 = vector.broadcast %491 : f32 to vector<16x16xf32>
    %494 = arith.mulf %493, %492 : vector<16x16xf32>
    %495 = arith.addf %490, %494 : vector<16x16xf32>
    %c18_145 = arith.constant 18 : index
    %496 = memref.load %arg4[%c18_145] : memref<98xf32, #tpu.memory_space<smem>>
    %497 = vector.extract_strided_slice %485 {offsets = [2, 0], sizes = [16, 16], strides = [1, 1]} : vector<22x16xf32> to vector<16x16xf32>
    %498 = vector.broadcast %496 : f32 to vector<16x16xf32>
    %499 = arith.mulf %498, %497 : vector<16x16xf32>
    %500 = arith.addf %495, %499 : vector<16x16xf32>
    %c25 = arith.constant 25 : index
    %501 = memref.load %arg4[%c25] : memref<98xf32, #tpu.memory_space<smem>>
    %502 = vector.extract_strided_slice %485 {offsets = [3, 0], sizes = [16, 16], strides = [1, 1]} : vector<22x16xf32> to vector<16x16xf32>
    %503 = vector.broadcast %501 : f32 to vector<16x16xf32>
    %504 = arith.mulf %503, %502 : vector<16x16xf32>
    %505 = arith.addf %500, %504 : vector<16x16xf32>
    %c32 = arith.constant 32 : index
    %506 = memref.load %arg4[%c32] : memref<98xf32, #tpu.memory_space<smem>>
    %507 = vector.extract_strided_slice %485 {offsets = [4, 0], sizes = [16, 16], strides = [1, 1]} : vector<22x16xf32> to vector<16x16xf32>
    %508 = vector.broadcast %506 : f32 to vector<16x16xf32>
    %509 = arith.mulf %508, %507 : vector<16x16xf32>
    %510 = arith.addf %505, %509 : vector<16x16xf32>
    %c39 = arith.constant 39 : index
    %511 = memref.load %arg4[%c39] : memref<98xf32, #tpu.memory_space<smem>>
    %512 = vector.extract_strided_slice %485 {offsets = [5, 0], sizes = [16, 16], strides = [1, 1]} : vector<22x16xf32> to vector<16x16xf32>
    %513 = vector.broadcast %511 : f32 to vector<16x16xf32>
    %514 = arith.mulf %513, %512 : vector<16x16xf32>
    %515 = arith.addf %510, %514 : vector<16x16xf32>
    %c46 = arith.constant 46 : index
    %516 = memref.load %arg4[%c46] : memref<98xf32, #tpu.memory_space<smem>>
    %517 = vector.extract_strided_slice %485 {offsets = [6, 0], sizes = [16, 16], strides = [1, 1]} : vector<22x16xf32> to vector<16x16xf32>
    %518 = vector.broadcast %516 : f32 to vector<16x16xf32>
    %519 = arith.mulf %518, %517 : vector<16x16xf32>
    %520 = arith.addf %515, %519 : vector<16x16xf32>
    %c1_146 = arith.constant 1 : index
    %c0_147 = arith.constant 0 : index
    %c4_148 = arith.constant 4 : index
    %521 = vector.load %arg7[%c1_146, %c0_147, %c4_148] : memref<2x22x22xf32, #tpu.memory_space<vmem>>, vector<1x22x16xf32>
    %522 = vector.shape_cast %521 : vector<1x22x16xf32> to vector<22x16xf32>
    %c53 = arith.constant 53 : index
    %523 = memref.load %arg4[%c53] : memref<98xf32, #tpu.memory_space<smem>>
    %524 = vector.extract_strided_slice %522 {offsets = [0, 0], sizes = [16, 16], strides = [1, 1]} : vector<22x16xf32> to vector<16x16xf32>
    %525 = vector.broadcast %523 : f32 to vector<16x16xf32>
    %526 = arith.mulf %525, %524 : vector<16x16xf32>
    %527 = arith.addf %520, %526 : vector<16x16xf32>
    %c60 = arith.constant 60 : index
    %528 = memref.load %arg4[%c60] : memref<98xf32, #tpu.memory_space<smem>>
    %529 = vector.extract_strided_slice %522 {offsets = [1, 0], sizes = [16, 16], strides = [1, 1]} : vector<22x16xf32> to vector<16x16xf32>
    %530 = vector.broadcast %528 : f32 to vector<16x16xf32>
    %531 = arith.mulf %530, %529 : vector<16x16xf32>
    %532 = arith.addf %527, %531 : vector<16x16xf32>
    %c67 = arith.constant 67 : index
    %533 = memref.load %arg4[%c67] : memref<98xf32, #tpu.memory_space<smem>>
    %534 = vector.extract_strided_slice %522 {offsets = [2, 0], sizes = [16, 16], strides = [1, 1]} : vector<22x16xf32> to vector<16x16xf32>
    %535 = vector.broadcast %533 : f32 to vector<16x16xf32>
    %536 = arith.mulf %535, %534 : vector<16x16xf32>
    %537 = arith.addf %532, %536 : vector<16x16xf32>
    %c74 = arith.constant 74 : index
    %538 = memref.load %arg4[%c74] : memref<98xf32, #tpu.memory_space<smem>>
    %539 = vector.extract_strided_slice %522 {offsets = [3, 0], sizes = [16, 16], strides = [1, 1]} : vector<22x16xf32> to vector<16x16xf32>
    %540 = vector.broadcast %538 : f32 to vector<16x16xf32>
    %541 = arith.mulf %540, %539 : vector<16x16xf32>
    %542 = arith.addf %537, %541 : vector<16x16xf32>
    %c81 = arith.constant 81 : index
    %543 = memref.load %arg4[%c81] : memref<98xf32, #tpu.memory_space<smem>>
    %544 = vector.extract_strided_slice %522 {offsets = [4, 0], sizes = [16, 16], strides = [1, 1]} : vector<22x16xf32> to vector<16x16xf32>
    %545 = vector.broadcast %543 : f32 to vector<16x16xf32>
    %546 = arith.mulf %545, %544 : vector<16x16xf32>
    %547 = arith.addf %542, %546 : vector<16x16xf32>
    %c88 = arith.constant 88 : index
    %548 = memref.load %arg4[%c88] : memref<98xf32, #tpu.memory_space<smem>>
    %549 = vector.extract_strided_slice %522 {offsets = [5, 0], sizes = [16, 16], strides = [1, 1]} : vector<22x16xf32> to vector<16x16xf32>
    %550 = vector.broadcast %548 : f32 to vector<16x16xf32>
    %551 = arith.mulf %550, %549 : vector<16x16xf32>
    %552 = arith.addf %547, %551 : vector<16x16xf32>
    %c95 = arith.constant 95 : index
    %553 = memref.load %arg4[%c95] : memref<98xf32, #tpu.memory_space<smem>>
    %554 = vector.extract_strided_slice %522 {offsets = [6, 0], sizes = [16, 16], strides = [1, 1]} : vector<22x16xf32> to vector<16x16xf32>
    %555 = vector.broadcast %553 : f32 to vector<16x16xf32>
    %556 = arith.mulf %555, %554 : vector<16x16xf32>
    %557 = arith.addf %552, %556 : vector<16x16xf32>
    %c0_149 = arith.constant 0 : index
    %c0_150 = arith.constant 0 : index
    %c5_151 = arith.constant 5 : index
    %558 = vector.load %arg7[%c0_149, %c0_150, %c5_151] : memref<2x22x22xf32, #tpu.memory_space<vmem>>, vector<1x22x16xf32>
    %559 = vector.shape_cast %558 : vector<1x22x16xf32> to vector<22x16xf32>
    %c5_152 = arith.constant 5 : index
    %560 = memref.load %arg4[%c5_152] : memref<98xf32, #tpu.memory_space<smem>>
    %561 = vector.extract_strided_slice %559 {offsets = [0, 0], sizes = [16, 16], strides = [1, 1]} : vector<22x16xf32> to vector<16x16xf32>
    %562 = vector.broadcast %560 : f32 to vector<16x16xf32>
    %563 = arith.mulf %562, %561 : vector<16x16xf32>
    %564 = arith.addf %557, %563 : vector<16x16xf32>
    %c12_153 = arith.constant 12 : index
    %565 = memref.load %arg4[%c12_153] : memref<98xf32, #tpu.memory_space<smem>>
    %566 = vector.extract_strided_slice %559 {offsets = [1, 0], sizes = [16, 16], strides = [1, 1]} : vector<22x16xf32> to vector<16x16xf32>
    %567 = vector.broadcast %565 : f32 to vector<16x16xf32>
    %568 = arith.mulf %567, %566 : vector<16x16xf32>
    %569 = arith.addf %564, %568 : vector<16x16xf32>
    %c19 = arith.constant 19 : index
    %570 = memref.load %arg4[%c19] : memref<98xf32, #tpu.memory_space<smem>>
    %571 = vector.extract_strided_slice %559 {offsets = [2, 0], sizes = [16, 16], strides = [1, 1]} : vector<22x16xf32> to vector<16x16xf32>
    %572 = vector.broadcast %570 : f32 to vector<16x16xf32>
    %573 = arith.mulf %572, %571 : vector<16x16xf32>
    %574 = arith.addf %569, %573 : vector<16x16xf32>
    %c26 = arith.constant 26 : index
    %575 = memref.load %arg4[%c26] : memref<98xf32, #tpu.memory_space<smem>>
    %576 = vector.extract_strided_slice %559 {offsets = [3, 0], sizes = [16, 16], strides = [1, 1]} : vector<22x16xf32> to vector<16x16xf32>
    %577 = vector.broadcast %575 : f32 to vector<16x16xf32>
    %578 = arith.mulf %577, %576 : vector<16x16xf32>
    %579 = arith.addf %574, %578 : vector<16x16xf32>
    %c33 = arith.constant 33 : index
    %580 = memref.load %arg4[%c33] : memref<98xf32, #tpu.memory_space<smem>>
    %581 = vector.extract_strided_slice %559 {offsets = [4, 0], sizes = [16, 16], strides = [1, 1]} : vector<22x16xf32> to vector<16x16xf32>
    %582 = vector.broadcast %580 : f32 to vector<16x16xf32>
    %583 = arith.mulf %582, %581 : vector<16x16xf32>
    %584 = arith.addf %579, %583 : vector<16x16xf32>
    %c40 = arith.constant 40 : index
    %585 = memref.load %arg4[%c40] : memref<98xf32, #tpu.memory_space<smem>>
    %586 = vector.extract_strided_slice %559 {offsets = [5, 0], sizes = [16, 16], strides = [1, 1]} : vector<22x16xf32> to vector<16x16xf32>
    %587 = vector.broadcast %585 : f32 to vector<16x16xf32>
    %588 = arith.mulf %587, %586 : vector<16x16xf32>
    %589 = arith.addf %584, %588 : vector<16x16xf32>
    %c47 = arith.constant 47 : index
    %590 = memref.load %arg4[%c47] : memref<98xf32, #tpu.memory_space<smem>>
    %591 = vector.extract_strided_slice %559 {offsets = [6, 0], sizes = [16, 16], strides = [1, 1]} : vector<22x16xf32> to vector<16x16xf32>
    %592 = vector.broadcast %590 : f32 to vector<16x16xf32>
    %593 = arith.mulf %592, %591 : vector<16x16xf32>
    %594 = arith.addf %589, %593 : vector<16x16xf32>
    %c1_154 = arith.constant 1 : index
    %c0_155 = arith.constant 0 : index
    %c5_156 = arith.constant 5 : index
    %595 = vector.load %arg7[%c1_154, %c0_155, %c5_156] : memref<2x22x22xf32, #tpu.memory_space<vmem>>, vector<1x22x16xf32>
    %596 = vector.shape_cast %595 : vector<1x22x16xf32> to vector<22x16xf32>
    %c54 = arith.constant 54 : index
    %597 = memref.load %arg4[%c54] : memref<98xf32, #tpu.memory_space<smem>>
    %598 = vector.extract_strided_slice %596 {offsets = [0, 0], sizes = [16, 16], strides = [1, 1]} : vector<22x16xf32> to vector<16x16xf32>
    %599 = vector.broadcast %597 : f32 to vector<16x16xf32>
    %600 = arith.mulf %599, %598 : vector<16x16xf32>
    %601 = arith.addf %594, %600 : vector<16x16xf32>
    %c61 = arith.constant 61 : index
    %602 = memref.load %arg4[%c61] : memref<98xf32, #tpu.memory_space<smem>>
    %603 = vector.extract_strided_slice %596 {offsets = [1, 0], sizes = [16, 16], strides = [1, 1]} : vector<22x16xf32> to vector<16x16xf32>
    %604 = vector.broadcast %602 : f32 to vector<16x16xf32>
    %605 = arith.mulf %604, %603 : vector<16x16xf32>
    %606 = arith.addf %601, %605 : vector<16x16xf32>
    %c68 = arith.constant 68 : index
    %607 = memref.load %arg4[%c68] : memref<98xf32, #tpu.memory_space<smem>>
    %608 = vector.extract_strided_slice %596 {offsets = [2, 0], sizes = [16, 16], strides = [1, 1]} : vector<22x16xf32> to vector<16x16xf32>
    %609 = vector.broadcast %607 : f32 to vector<16x16xf32>
    %610 = arith.mulf %609, %608 : vector<16x16xf32>
    %611 = arith.addf %606, %610 : vector<16x16xf32>
    %c75 = arith.constant 75 : index
    %612 = memref.load %arg4[%c75] : memref<98xf32, #tpu.memory_space<smem>>
    %613 = vector.extract_strided_slice %596 {offsets = [3, 0], sizes = [16, 16], strides = [1, 1]} : vector<22x16xf32> to vector<16x16xf32>
    %614 = vector.broadcast %612 : f32 to vector<16x16xf32>
    %615 = arith.mulf %614, %613 : vector<16x16xf32>
    %616 = arith.addf %611, %615 : vector<16x16xf32>
    %c82 = arith.constant 82 : index
    %617 = memref.load %arg4[%c82] : memref<98xf32, #tpu.memory_space<smem>>
    %618 = vector.extract_strided_slice %596 {offsets = [4, 0], sizes = [16, 16], strides = [1, 1]} : vector<22x16xf32> to vector<16x16xf32>
    %619 = vector.broadcast %617 : f32 to vector<16x16xf32>
    %620 = arith.mulf %619, %618 : vector<16x16xf32>
    %621 = arith.addf %616, %620 : vector<16x16xf32>
    %c89 = arith.constant 89 : index
    %622 = memref.load %arg4[%c89] : memref<98xf32, #tpu.memory_space<smem>>
    %623 = vector.extract_strided_slice %596 {offsets = [5, 0], sizes = [16, 16], strides = [1, 1]} : vector<22x16xf32> to vector<16x16xf32>
    %624 = vector.broadcast %622 : f32 to vector<16x16xf32>
    %625 = arith.mulf %624, %623 : vector<16x16xf32>
    %626 = arith.addf %621, %625 : vector<16x16xf32>
    %c96 = arith.constant 96 : index
    %627 = memref.load %arg4[%c96] : memref<98xf32, #tpu.memory_space<smem>>
    %628 = vector.extract_strided_slice %596 {offsets = [6, 0], sizes = [16, 16], strides = [1, 1]} : vector<22x16xf32> to vector<16x16xf32>
    %629 = vector.broadcast %627 : f32 to vector<16x16xf32>
    %630 = arith.mulf %629, %628 : vector<16x16xf32>
    %631 = arith.addf %626, %630 : vector<16x16xf32>
    %c0_157 = arith.constant 0 : index
    %c0_158 = arith.constant 0 : index
    %c6_159 = arith.constant 6 : index
    %632 = vector.load %arg7[%c0_157, %c0_158, %c6_159] : memref<2x22x22xf32, #tpu.memory_space<vmem>>, vector<1x22x16xf32>
    %633 = vector.shape_cast %632 : vector<1x22x16xf32> to vector<22x16xf32>
    %c6_160 = arith.constant 6 : index
    %634 = memref.load %arg4[%c6_160] : memref<98xf32, #tpu.memory_space<smem>>
    %635 = vector.extract_strided_slice %633 {offsets = [0, 0], sizes = [16, 16], strides = [1, 1]} : vector<22x16xf32> to vector<16x16xf32>
    %636 = vector.broadcast %634 : f32 to vector<16x16xf32>
    %637 = arith.mulf %636, %635 : vector<16x16xf32>
    %638 = arith.addf %631, %637 : vector<16x16xf32>
    %c13_161 = arith.constant 13 : index
    %639 = memref.load %arg4[%c13_161] : memref<98xf32, #tpu.memory_space<smem>>
    %640 = vector.extract_strided_slice %633 {offsets = [1, 0], sizes = [16, 16], strides = [1, 1]} : vector<22x16xf32> to vector<16x16xf32>
    %641 = vector.broadcast %639 : f32 to vector<16x16xf32>
    %642 = arith.mulf %641, %640 : vector<16x16xf32>
    %643 = arith.addf %638, %642 : vector<16x16xf32>
    %c20 = arith.constant 20 : index
    %644 = memref.load %arg4[%c20] : memref<98xf32, #tpu.memory_space<smem>>
    %645 = vector.extract_strided_slice %633 {offsets = [2, 0], sizes = [16, 16], strides = [1, 1]} : vector<22x16xf32> to vector<16x16xf32>
    %646 = vector.broadcast %644 : f32 to vector<16x16xf32>
    %647 = arith.mulf %646, %645 : vector<16x16xf32>
    %648 = arith.addf %643, %647 : vector<16x16xf32>
    %c27 = arith.constant 27 : index
    %649 = memref.load %arg4[%c27] : memref<98xf32, #tpu.memory_space<smem>>
    %650 = vector.extract_strided_slice %633 {offsets = [3, 0], sizes = [16, 16], strides = [1, 1]} : vector<22x16xf32> to vector<16x16xf32>
    %651 = vector.broadcast %649 : f32 to vector<16x16xf32>
    %652 = arith.mulf %651, %650 : vector<16x16xf32>
    %653 = arith.addf %648, %652 : vector<16x16xf32>
    %c34 = arith.constant 34 : index
    %654 = memref.load %arg4[%c34] : memref<98xf32, #tpu.memory_space<smem>>
    %655 = vector.extract_strided_slice %633 {offsets = [4, 0], sizes = [16, 16], strides = [1, 1]} : vector<22x16xf32> to vector<16x16xf32>
    %656 = vector.broadcast %654 : f32 to vector<16x16xf32>
    %657 = arith.mulf %656, %655 : vector<16x16xf32>
    %658 = arith.addf %653, %657 : vector<16x16xf32>
    %c41 = arith.constant 41 : index
    %659 = memref.load %arg4[%c41] : memref<98xf32, #tpu.memory_space<smem>>
    %660 = vector.extract_strided_slice %633 {offsets = [5, 0], sizes = [16, 16], strides = [1, 1]} : vector<22x16xf32> to vector<16x16xf32>
    %661 = vector.broadcast %659 : f32 to vector<16x16xf32>
    %662 = arith.mulf %661, %660 : vector<16x16xf32>
    %663 = arith.addf %658, %662 : vector<16x16xf32>
    %c48 = arith.constant 48 : index
    %664 = memref.load %arg4[%c48] : memref<98xf32, #tpu.memory_space<smem>>
    %665 = vector.extract_strided_slice %633 {offsets = [6, 0], sizes = [16, 16], strides = [1, 1]} : vector<22x16xf32> to vector<16x16xf32>
    %666 = vector.broadcast %664 : f32 to vector<16x16xf32>
    %667 = arith.mulf %666, %665 : vector<16x16xf32>
    %668 = arith.addf %663, %667 : vector<16x16xf32>
    %c1_162 = arith.constant 1 : index
    %c0_163 = arith.constant 0 : index
    %c6_164 = arith.constant 6 : index
    %669 = vector.load %arg7[%c1_162, %c0_163, %c6_164] : memref<2x22x22xf32, #tpu.memory_space<vmem>>, vector<1x22x16xf32>
    %670 = vector.shape_cast %669 : vector<1x22x16xf32> to vector<22x16xf32>
    %c55 = arith.constant 55 : index
    %671 = memref.load %arg4[%c55] : memref<98xf32, #tpu.memory_space<smem>>
    %672 = vector.extract_strided_slice %670 {offsets = [0, 0], sizes = [16, 16], strides = [1, 1]} : vector<22x16xf32> to vector<16x16xf32>
    %673 = vector.broadcast %671 : f32 to vector<16x16xf32>
    %674 = arith.mulf %673, %672 : vector<16x16xf32>
    %675 = arith.addf %668, %674 : vector<16x16xf32>
    %c62 = arith.constant 62 : index
    %676 = memref.load %arg4[%c62] : memref<98xf32, #tpu.memory_space<smem>>
    %677 = vector.extract_strided_slice %670 {offsets = [1, 0], sizes = [16, 16], strides = [1, 1]} : vector<22x16xf32> to vector<16x16xf32>
    %678 = vector.broadcast %676 : f32 to vector<16x16xf32>
    %679 = arith.mulf %678, %677 : vector<16x16xf32>
    %680 = arith.addf %675, %679 : vector<16x16xf32>
    %c69 = arith.constant 69 : index
    %681 = memref.load %arg4[%c69] : memref<98xf32, #tpu.memory_space<smem>>
    %682 = vector.extract_strided_slice %670 {offsets = [2, 0], sizes = [16, 16], strides = [1, 1]} : vector<22x16xf32> to vector<16x16xf32>
    %683 = vector.broadcast %681 : f32 to vector<16x16xf32>
    %684 = arith.mulf %683, %682 : vector<16x16xf32>
    %685 = arith.addf %680, %684 : vector<16x16xf32>
    %c76 = arith.constant 76 : index
    %686 = memref.load %arg4[%c76] : memref<98xf32, #tpu.memory_space<smem>>
    %687 = vector.extract_strided_slice %670 {offsets = [3, 0], sizes = [16, 16], strides = [1, 1]} : vector<22x16xf32> to vector<16x16xf32>
    %688 = vector.broadcast %686 : f32 to vector<16x16xf32>
    %689 = arith.mulf %688, %687 : vector<16x16xf32>
    %690 = arith.addf %685, %689 : vector<16x16xf32>
    %c83 = arith.constant 83 : index
    %691 = memref.load %arg4[%c83] : memref<98xf32, #tpu.memory_space<smem>>
    %692 = vector.extract_strided_slice %670 {offsets = [4, 0], sizes = [16, 16], strides = [1, 1]} : vector<22x16xf32> to vector<16x16xf32>
    %693 = vector.broadcast %691 : f32 to vector<16x16xf32>
    %694 = arith.mulf %693, %692 : vector<16x16xf32>
    %695 = arith.addf %690, %694 : vector<16x16xf32>
    %c90 = arith.constant 90 : index
    %696 = memref.load %arg4[%c90] : memref<98xf32, #tpu.memory_space<smem>>
    %697 = vector.extract_strided_slice %670 {offsets = [5, 0], sizes = [16, 16], strides = [1, 1]} : vector<22x16xf32> to vector<16x16xf32>
    %698 = vector.broadcast %696 : f32 to vector<16x16xf32>
    %699 = arith.mulf %698, %697 : vector<16x16xf32>
    %700 = arith.addf %695, %699 : vector<16x16xf32>
    %c97 = arith.constant 97 : index
    %701 = memref.load %arg4[%c97] : memref<98xf32, #tpu.memory_space<smem>>
    %702 = vector.extract_strided_slice %670 {offsets = [6, 0], sizes = [16, 16], strides = [1, 1]} : vector<22x16xf32> to vector<16x16xf32>
    %703 = vector.broadcast %701 : f32 to vector<16x16xf32>
    %704 = arith.mulf %703, %702 : vector<16x16xf32>
    %705 = arith.addf %700, %704 : vector<16x16xf32>
    %706 = arith.negf %705 : vector<16x16xf32>
    %707 = math.exp %706 : vector<16x16xf32>
    %cst_165 = arith.constant 1.000000e+00 : f32
    %708 = vector.broadcast %cst_165 : f32 to vector<16x16xf32>
    %709 = arith.addf %708, %707 : vector<16x16xf32>
    %710 = arith.divf %708, %709 : vector<16x16xf32>
    %711 = vector.extract_strided_slice %710 {offsets = [0, 0], sizes = [1, 16], strides = [1, 1]} : vector<16x16xf32> to vector<1x16xf32>
    %c0_166 = arith.constant 0 : index
    %c0_167 = arith.constant 0 : index
    %712 = vector.load %arg8[%c0_166, %c0_167] : memref<1x256xf32, #tpu.memory_space<vmem>>, vector<1x16xf32>
    tpu.vector_store %arg8[%c0_166, %c0_167], %711 {strides = array<i32>} : memref<1x256xf32, #tpu.memory_space<vmem>>, vector<1x16xf32>,
    %713 = vector.extract_strided_slice %710 {offsets = [1, 0], sizes = [1, 16], strides = [1, 1]} : vector<16x16xf32> to vector<1x16xf32>
    %c0_168 = arith.constant 0 : index
    %c16_169 = arith.constant 16 : index
    %714 = vector.load %arg8[%c0_168, %c16_169] : memref<1x256xf32, #tpu.memory_space<vmem>>, vector<1x16xf32>
    tpu.vector_store %arg8[%c0_168, %c16_169], %713 {strides = array<i32>} : memref<1x256xf32, #tpu.memory_space<vmem>>, vector<1x16xf32>,
    %715 = vector.extract_strided_slice %710 {offsets = [2, 0], sizes = [1, 16], strides = [1, 1]} : vector<16x16xf32> to vector<1x16xf32>
    %c0_170 = arith.constant 0 : index
    %c32_171 = arith.constant 32 : index
    %716 = vector.load %arg8[%c0_170, %c32_171] : memref<1x256xf32, #tpu.memory_space<vmem>>, vector<1x16xf32>
    tpu.vector_store %arg8[%c0_170, %c32_171], %715 {strides = array<i32>} : memref<1x256xf32, #tpu.memory_space<vmem>>, vector<1x16xf32>,
    %717 = vector.extract_strided_slice %710 {offsets = [3, 0], sizes = [1, 16], strides = [1, 1]} : vector<16x16xf32> to vector<1x16xf32>
    %c0_172 = arith.constant 0 : index
    %c48_173 = arith.constant 48 : index
    %718 = vector.load %arg8[%c0_172, %c48_173] : memref<1x256xf32, #tpu.memory_space<vmem>>, vector<1x16xf32>
    tpu.vector_store %arg8[%c0_172, %c48_173], %717 {strides = array<i32>} : memref<1x256xf32, #tpu.memory_space<vmem>>, vector<1x16xf32>,
    %719 = vector.extract_strided_slice %710 {offsets = [4, 0], sizes = [1, 16], strides = [1, 1]} : vector<16x16xf32> to vector<1x16xf32>
    %c0_174 = arith.constant 0 : index
    %c64_175 = arith.constant 64 : index
    %720 = vector.load %arg8[%c0_174, %c64_175] : memref<1x256xf32, #tpu.memory_space<vmem>>, vector<1x16xf32>
    tpu.vector_store %arg8[%c0_174, %c64_175], %719 {strides = array<i32>} : memref<1x256xf32, #tpu.memory_space<vmem>>, vector<1x16xf32>,
    %721 = vector.extract_strided_slice %710 {offsets = [5, 0], sizes = [1, 16], strides = [1, 1]} : vector<16x16xf32> to vector<1x16xf32>
    %c0_176 = arith.constant 0 : index
    %c80_177 = arith.constant 80 : index
    %722 = vector.load %arg8[%c0_176, %c80_177] : memref<1x256xf32, #tpu.memory_space<vmem>>, vector<1x16xf32>
    tpu.vector_store %arg8[%c0_176, %c80_177], %721 {strides = array<i32>} : memref<1x256xf32, #tpu.memory_space<vmem>>, vector<1x16xf32>,
    %723 = vector.extract_strided_slice %710 {offsets = [6, 0], sizes = [1, 16], strides = [1, 1]} : vector<16x16xf32> to vector<1x16xf32>
    %c0_178 = arith.constant 0 : index
    %c96_179 = arith.constant 96 : index
    %724 = vector.load %arg8[%c0_178, %c96_179] : memref<1x256xf32, #tpu.memory_space<vmem>>, vector<1x16xf32>
    tpu.vector_store %arg8[%c0_178, %c96_179], %723 {strides = array<i32>} : memref<1x256xf32, #tpu.memory_space<vmem>>, vector<1x16xf32>,
    %725 = vector.extract_strided_slice %710 {offsets = [7, 0], sizes = [1, 16], strides = [1, 1]} : vector<16x16xf32> to vector<1x16xf32>
    %c0_180 = arith.constant 0 : index
    %c112 = arith.constant 112 : index
    %726 = vector.load %arg8[%c0_180, %c112] : memref<1x256xf32, #tpu.memory_space<vmem>>, vector<1x16xf32>
    tpu.vector_store %arg8[%c0_180, %c112], %725 {strides = array<i32>} : memref<1x256xf32, #tpu.memory_space<vmem>>, vector<1x16xf32>,
    %727 = vector.extract_strided_slice %710 {offsets = [8, 0], sizes = [1, 16], strides = [1, 1]} : vector<16x16xf32> to vector<1x16xf32>
    %c0_181 = arith.constant 0 : index
    %c128 = arith.constant 128 : index
    %728 = vector.load %arg8[%c0_181, %c128] : memref<1x256xf32, #tpu.memory_space<vmem>>, vector<1x16xf32>
    tpu.vector_store %arg8[%c0_181, %c128], %727 {strides = array<i32>} : memref<1x256xf32, #tpu.memory_space<vmem>>, vector<1x16xf32>,
    %729 = vector.extract_strided_slice %710 {offsets = [9, 0], sizes = [1, 16], strides = [1, 1]} : vector<16x16xf32> to vector<1x16xf32>
    %c0_182 = arith.constant 0 : index
    %c144 = arith.constant 144 : index
    %730 = vector.load %arg8[%c0_182, %c144] : memref<1x256xf32, #tpu.memory_space<vmem>>, vector<1x16xf32>
    tpu.vector_store %arg8[%c0_182, %c144], %729 {strides = array<i32>} : memref<1x256xf32, #tpu.memory_space<vmem>>, vector<1x16xf32>,
    %731 = vector.extract_strided_slice %710 {offsets = [10, 0], sizes = [1, 16], strides = [1, 1]} : vector<16x16xf32> to vector<1x16xf32>
    %c0_183 = arith.constant 0 : index
    %c160 = arith.constant 160 : index
    %732 = vector.load %arg8[%c0_183, %c160] : memref<1x256xf32, #tpu.memory_space<vmem>>, vector<1x16xf32>
    tpu.vector_store %arg8[%c0_183, %c160], %731 {strides = array<i32>} : memref<1x256xf32, #tpu.memory_space<vmem>>, vector<1x16xf32>,
    %733 = vector.extract_strided_slice %710 {offsets = [11, 0], sizes = [1, 16], strides = [1, 1]} : vector<16x16xf32> to vector<1x16xf32>
    %c0_184 = arith.constant 0 : index
    %c176 = arith.constant 176 : index
    %734 = vector.load %arg8[%c0_184, %c176] : memref<1x256xf32, #tpu.memory_space<vmem>>, vector<1x16xf32>
    tpu.vector_store %arg8[%c0_184, %c176], %733 {strides = array<i32>} : memref<1x256xf32, #tpu.memory_space<vmem>>, vector<1x16xf32>,
    %735 = vector.extract_strided_slice %710 {offsets = [12, 0], sizes = [1, 16], strides = [1, 1]} : vector<16x16xf32> to vector<1x16xf32>
    %c0_185 = arith.constant 0 : index
    %c192 = arith.constant 192 : index
    %736 = vector.load %arg8[%c0_185, %c192] : memref<1x256xf32, #tpu.memory_space<vmem>>, vector<1x16xf32>
    tpu.vector_store %arg8[%c0_185, %c192], %735 {strides = array<i32>} : memref<1x256xf32, #tpu.memory_space<vmem>>, vector<1x16xf32>,
    %737 = vector.extract_strided_slice %710 {offsets = [13, 0], sizes = [1, 16], strides = [1, 1]} : vector<16x16xf32> to vector<1x16xf32>
    %c0_186 = arith.constant 0 : index
    %c208 = arith.constant 208 : index
    %738 = vector.load %arg8[%c0_186, %c208] : memref<1x256xf32, #tpu.memory_space<vmem>>, vector<1x16xf32>
    tpu.vector_store %arg8[%c0_186, %c208], %737 {strides = array<i32>} : memref<1x256xf32, #tpu.memory_space<vmem>>, vector<1x16xf32>,
    %739 = vector.extract_strided_slice %710 {offsets = [14, 0], sizes = [1, 16], strides = [1, 1]} : vector<16x16xf32> to vector<1x16xf32>
    %c0_187 = arith.constant 0 : index
    %c224 = arith.constant 224 : index
    %740 = vector.load %arg8[%c0_187, %c224] : memref<1x256xf32, #tpu.memory_space<vmem>>, vector<1x16xf32>
    tpu.vector_store %arg8[%c0_187, %c224], %739 {strides = array<i32>} : memref<1x256xf32, #tpu.memory_space<vmem>>, vector<1x16xf32>,
    %741 = vector.extract_strided_slice %710 {offsets = [15, 0], sizes = [1, 16], strides = [1, 1]} : vector<16x16xf32> to vector<1x16xf32>
    %c0_188 = arith.constant 0 : index
    %c240 = arith.constant 240 : index
    %742 = vector.load %arg8[%c0_188, %c240] : memref<1x256xf32, #tpu.memory_space<vmem>>, vector<1x16xf32>
    tpu.vector_store %arg8[%c0_188, %c240], %741 {strides = array<i32>} : memref<1x256xf32, #tpu.memory_space<vmem>>, vector<1x16xf32>,
    %c0_189 = arith.constant 0 : index
    %c0_190 = arith.constant 0 : index
    %743 = vector.load %arg8[%c0_189, %c0_190] : memref<1x256xf32, #tpu.memory_space<vmem>>, vector<1x256xf32>
    %c0_191 = arith.constant 0 : index
    %c0_192 = arith.constant 0 : index
    %c0_193 = arith.constant 0 : index
    %744 = vector.load %arg1[%c0_191, %c0_192, %c0_193] : memref<1x32x256xf32, #tpu.memory_space<vmem>>, vector<1x32x256xf32>
    %745 = vector.shape_cast %744 : vector<1x32x256xf32> to vector<32x256xf32>
    %746 = vector.broadcast %50 : vector<32x1xf32> to vector<32x256xf32>
    %747 = arith.mulf %745, %746 : vector<32x256xf32>
    %748 = vector.broadcast %743 : vector<1x256xf32> to vector<32x256xf32>
    %749 = arith.mulf %747, %748 : vector<32x256xf32>
    %c0_194 = arith.constant 0 : index
    %c0_195 = arith.constant 0 : index
    %c0_196 = arith.constant 0 : index
    %750 = vector.load %arg6[%c0_194, %c0_195, %c0_196] : memref<1x32x256xf32, #tpu.memory_space<vmem>>, vector<1x32x256xf32>
    %751 = vector.shape_cast %750 : vector<1x32x256xf32> to vector<32x256xf32>
    %752 = vector.shape_cast %749 : vector<32x256xf32> to vector<1x32x256xf32>
    tpu.vector_store %arg6[%c0_194, %c0_195, %c0_196], %752 {strides = array<i32>} : memref<1x32x256xf32, #tpu.memory_space<vmem>>, vector<1x32x256xf32>,
    return
  }
  func.func @transform_0(%arg0: i32) -> (i32, i32, i32) {
    %c0_i32 = arith.constant 0 : i32
    %c0_i32_0 = arith.constant 0 : i32
    %c0_i32_1 = arith.constant 0 : i32
    return %arg0, %c0_i32, %c0_i32_0 : i32, i32, i32
  }
  func.func @transform_1(%arg0: i32) -> (i32, i32) {
    %c0_i32 = arith.constant 0 : i32
    %c0_i32_0 = arith.constant 0 : i32
    %c0_i32_1 = arith.constant 0 : i32
    return %c0_i32, %c0_i32_0 : i32, i32
  }
  func.func @transform_2(%arg0: i32) -> (i32, i32) {
    %c0_i32 = arith.constant 0 : i32
    %c0_i32_0 = arith.constant 0 : i32
    %c0_i32_1 = arith.constant 0 : i32
    return %c0_i32, %c0_i32_0 : i32, i32
  }
  func.func @transform_3(%arg0: i32) -> i32 {
    %c0_i32 = arith.constant 0 : i32
    %c0_i32_0 = arith.constant 0 : i32
    return %c0_i32 : i32
  }
  func.func @transform_4(%arg0: i32) -> i32 {
    %c0_i32 = arith.constant 0 : i32
    %c0_i32_0 = arith.constant 0 : i32
    return %c0_i32 : i32
  }
  func.func @transform_5(%arg0: i32) -> (i32, i32, i32) {
    %c0_i32 = arith.constant 0 : i32
    %c0_i32_0 = arith.constant 0 : i32
    %c0_i32_1 = arith.constant 0 : i32
    return %arg0, %c0_i32, %c0_i32_0 : i32, i32, i32
  }
}

</mosaic_0001>

<llo_original>
// kernel: cbam_forward.1
$region0: #{cbam_forward.1}
  #allocation0 [shape = 'u32[]', space=smem, size = 0x4, offset = 0x4, fixed_abs, tag = 'smem constant byte address 0x4 - core index']
  #allocation1 [shape = 'u32[144,128]{1,0:T(1,128)}', space=vmem, size = 0x12000, scoped, tag = 'internal scratch']
  #allocation2 [shape = 'f32[2,22,22]{2,1,0:T(8,128)}', space=vmem, size = 0x6000, scoped, tag = 'scratch operand']
  #allocation3 [shape = 'f32[1,256]{1,0:T(1,128)}', space=vmem, size = 0x400, scoped, tag = 'scratch operand']
  #allocation4 [shape = 'f32[1]{0:T(128)S(6)}', space=smem, size = 0x200, scoped, tag = 'scoped memory for cbam_forward.1']
  %s0 = inlined_call_operand.vmem [shape: f32[2,32,256], index: 0, kind: input, shape index: {}]
  %s1 = inlined_call_operand.vmem [shape: f32[32,2], index: 1, kind: input, shape index: {}]
  %s2 = inlined_call_operand.vmem [shape: f32[32,2], index: 2, kind: input, shape index: {}]
  %s3 = inlined_call_operand.vmem [shape: f32[98], index: 3, kind: input, shape index: {}]
  %s4 = inlined_call_operand.<no memory space> [shape: f32[1], index: 4, kind: input, shape index: {}]
  %s5 = inlined_call_operand.vmem [shape: f32[2,32,256], index: 5, kind: output, shape index: {}]
  %s6 = sld [smem:[#allocation0]]
  $region57: #{cbam_forward.1} parent=0
    _
  %s8 = ssub.s32 1, %s6
  %s9 = scalar_select 0, %s8, %s6
  %10 = sst [smem:[#allocation4]] %s4
  $region1: #{cbam_forward.1} parent=0
    #allocation5 [shape = 'u8[512]{0}', space=smem, size = 0x200, scoped, tag = 'input window, operand 3, single buffered']
    #allocation6 [shape = 's32[2]{0}', space=sflag, size = 0x8, scoped, tag = 'scoped memory for cbam_forward.1']
    %11 = vsyncpa [#allocation6], 0
    loop: start=0, step=1, limit=4
    $region2: #{cbam_forward.1} parent=1 // loop_pre_header
      _
    $region3: #{cbam_forward.1} parent=1 // loop_header
      %s13 = sphi 0, %s17
      %p14 = scmp.ge.s32.totalorder %s13, 4
      %s23 = sphi 0, %s25
      %s26 = sphi 0, %s23
      %s27 = sphi 0, %s26
      %s43 = sphi 0, %s27
      %s47 = sphi 0, %s47
      %s49 = sphi 0, %s47
      %s50 = sphi 0, %s49
      %s64 = sphi 0, %s50
      %s68 = sphi 0, %s68
      %s70 = sphi 0, %s68
      %s71 = sphi 0, %s70
      %s85 = sphi 0, %s71
      %s89 = sphi 0, %s89
      %s91 = sphi 0, %s89
      %s92 = sphi 0, %s91
      %s106 = sphi 0, %s92
      %s110 = sphi 0, %s110
      %s112 = sphi 0, %s110
      %s113 = sphi 0, %s112
      %s127 = sphi 0, %s113
      %s133 = sphi 0, %s135
      %s136 = sphi 0, %s133
      %s137 = sphi 0, %s136
      %s153 = sphi 0, %s137
    $region4: #{cbam_forward.1} parent=1 // loop_header_branch
      %16 = sbr.rel (%p14) target = $region8
    $region5: #{cbam_forward.1} parent=1 // loop_body
      %s18 = ssub.s32 %s13, 1
      %s19 = ssub.s32 %s13, 2
      %s20 = sadd.s32 %s13, 1
      %s21 = ssub.s32 %s13, %s20
      %p22 = scmp.eq.s32.totalorder %s21, 0
      %s24 = sadd.s32 %s23, 1
      %s25 = scalar_select %p22, %s23, %s24
      %p28 = pneg %p22
      %p29 = scmp.eq.s32.totalorder %s13, 1
      %p30 = por %p28, %p29
      %p31 = scmp.ne.s32.totalorder %s23, %s26
      %p32 = scmp.eq.s32.totalorder %s13, 0
      %p33 = por %p31, %p32
      %p34 = scmp.ne.s32.totalorder %s23, %s26
      %p35 = scmp.eq.s32.totalorder %s18, 1
      %p36 = por %p34, %p35
      %p37 = scmp.ne.s32.totalorder %s26, %s27
      %p38 = scmp.eq.s32.totalorder %s18, 0
      %p39 = por %p37, %p38
      %p40 = scmp.ne.s32.totalorder %s26, %s27
      %p41 = scmp.eq.s32.totalorder %s19, 1
      %p42 = por %p40, %p41
      %p44 = scmp.ne.s32.totalorder %s27, %s43
      %p45 = scmp.eq.s32.totalorder %s19, 0
      %p46 = por %p44, %p45
      %s48 = sadd.s32 %s47, 1
      %p51 = scmp.eq.s32.totalorder %s13, 1
      %p52 = scmp.ne.s32.totalorder %s47, %s49
      %p53 = scmp.eq.s32.totalorder %s13, 0
      %p54 = por %p52, %p53
      %p55 = scmp.ne.s32.totalorder %s47, %s49
      %p56 = scmp.eq.s32.totalorder %s18, 1
      %p57 = por %p55, %p56
      %p58 = scmp.ne.s32.totalorder %s49, %s50
      %p59 = scmp.eq.s32.totalorder %s18, 0
      %p60 = por %p58, %p59
      %p61 = scmp.ne.s32.totalorder %s49, %s50
      %p62 = scmp.eq.s32.totalorder %s19, 1
      %p63 = por %p61, %p62
      %p65 = scmp.ne.s32.totalorder %s50, %s64
      %p66 = scmp.eq.s32.totalorder %s19, 0
      %p67 = por %p65, %p66
      %s69 = sadd.s32 %s68, 1
      %p72 = scmp.eq.s32.totalorder %s13, 1
      %p73 = scmp.ne.s32.totalorder %s68, %s70
      %p74 = scmp.eq.s32.totalorder %s13, 0
      %p75 = por %p73, %p74
      %p76 = scmp.ne.s32.totalorder %s68, %s70
      %p77 = scmp.eq.s32.totalorder %s18, 1
      %p78 = por %p76, %p77
      %p79 = scmp.ne.s32.totalorder %s70, %s71
      %p80 = scmp.eq.s32.totalorder %s18, 0
      %p81 = por %p79, %p80
      %p82 = scmp.ne.s32.totalorder %s70, %s71
      %p83 = scmp.eq.s32.totalorder %s19, 1
      %p84 = por %p82, %p83
      %p86 = scmp.ne.s32.totalorder %s71, %s85
      %p87 = scmp.eq.s32.totalorder %s19, 0
      %p88 = por %p86, %p87
      %s90 = sadd.s32 %s89, 1
      %p93 = scmp.eq.s32.totalorder %s13, 1
      %p94 = scmp.ne.s32.totalorder %s89, %s91
      %p95 = scmp.eq.s32.totalorder %s13, 0
      %p96 = por %p94, %p95
      %p97 = scmp.ne.s32.totalorder %s89, %s91
      %p98 = scmp.eq.s32.totalorder %s18, 1
      %p99 = por %p97, %p98
      %p100 = scmp.ne.s32.totalorder %s91, %s92
      %p101 = scmp.eq.s32.totalorder %s18, 0
      %p102 = por %p100, %p101
      %p103 = scmp.ne.s32.totalorder %s91, %s92
      %p104 = scmp.eq.s32.totalorder %s19, 1
      %p105 = por %p103, %p104
      %p107 = scmp.ne.s32.totalorder %s92, %s106
      %p108 = scmp.eq.s32.totalorder %s19, 0
      %p109 = por %p107, %p108
      %s111 = sadd.s32 %s110, 1
      %p114 = scmp.eq.s32.totalorder %s13, 1
      %p115 = scmp.ne.s32.totalorder %s110, %s112
      %p116 = scmp.eq.s32.totalorder %s13, 0
      %p117 = por %p115, %p116
      %p118 = scmp.ne.s32.totalorder %s110, %s112
      %p119 = scmp.eq.s32.totalorder %s18, 1
      %p120 = por %p118, %p119
      %p121 = scmp.ne.s32.totalorder %s112, %s113
      %p122 = scmp.eq.s32.totalorder %s18, 0
      %p123 = por %p121, %p122
      %p124 = scmp.ne.s32.totalorder %s112, %s113
      %p125 = scmp.eq.s32.totalorder %s19, 1
      %p126 = por %p124, %p125
      %p128 = scmp.ne.s32.totalorder %s113, %s127
      %p129 = scmp.eq.s32.totalorder %s19, 0
      %p130 = por %p128, %p129
      %s131 = ssub.s32 %s13, %s20
      %p132 = scmp.eq.s32.totalorder %s131, 0
      %s134 = sadd.s32 %s133, 1
      %s135 = scalar_select %p132, %s133, %s134
      %p138 = pneg %p132
      %p139 = scmp.eq.s32.totalorder %s13, 1
      %p140 = por %p138, %p139
      %p141 = scmp.ne.s32.totalorder %s133, %s136
      %p142 = scmp.eq.s32.totalorder %s13, 0
      %p143 = por %p141, %p142
      %p144 = scmp.ne.s32.totalorder %s133, %s136
      %p145 = scmp.eq.s32.totalorder %s18, 1
      %p146 = por %p144, %p145
      %p147 = scmp.ne.s32.totalorder %s136, %s137
      %p148 = scmp.eq.s32.totalorder %s18, 0
      %p149 = por %p147, %p148
      %p150 = scmp.ne.s32.totalorder %s136, %s137
      %p151 = scmp.eq.s32.totalorder %s19, 1
      %p152 = por %p150, %p151
      %p154 = scmp.ne.s32.totalorder %s137, %s153
      %p155 = scmp.eq.s32.totalorder %s19, 0
      %p156 = por %p154, %p155
      %p157 = scmp.le.s32.totalorder 1, %s13
      %p158 = scmp.lt.s32.totalorder %s13, 3
      %p159 = pnand %p157, %p158
      %p160 = pneg %p159
      // Predicated region
      $region9: #{cbam_forward.1} parent=5 // pred_check
        _
      $region10: #{cbam_forward.1} parent=5 // pred_check_branch
        %162 = sbr.rel (%p159) target = $region12
      $region11: #{cbam_forward.1} parent=5 // pred_region
        %s163 = ssub.s32 %s13, 1
        // Predicated region
        $region13: #{cbam_forward.1} parent=11 // pred_check
          %p164 = pneg %p60
        $region14: #{cbam_forward.1} parent=11 // pred_check_branch
          %166 = sbr.rel (%p164) target = $region16
        $region15: #{cbam_forward.1} parent=11 // pred_region
          _
        $region16: #{cbam_forward.1} parent=11 // pred_fallthru
          _
        // Predicated region
        $region17: #{cbam_forward.1} parent=11 // pred_check
          %p167 = pneg %p81
        $region18: #{cbam_forward.1} parent=11 // pred_check_branch
          %169 = sbr.rel (%p167) target = $region20
        $region19: #{cbam_forward.1} parent=11 // pred_region
          _
        $region20: #{cbam_forward.1} parent=11 // pred_fallthru
          _
        // Predicated region
        $region21: #{cbam_forward.1} parent=11 // pred_check
          %p170 = pneg %p102
        $region22: #{cbam_forward.1} parent=11 // pred_check_branch
          %172 = sbr.rel (%p170) target = $region24
        $region23: #{cbam_forward.1} parent=11 // pred_region
          %s174 = ssub.s32 16, 16
          %175 = vsyncadd [#allocation6], %s174
          %s177 = sshll.u32 %s3, 4
          %s178 = int_to_ptr.vmem [resolvable:$true] %s177
          %180 = dma.vmem_to_smem %s178, 16, [#allocation5], [#allocation6]
        $region24: #{cbam_forward.1} parent=11 // pred_fallthru
          _
        // Predicated region
        $region25: #{cbam_forward.1} parent=11 // pred_check
          %p181 = pneg %p123
        $region26: #{cbam_forward.1} parent=11 // pred_check_branch
          %183 = sbr.rel (%p181) target = $region28
        $region27: #{cbam_forward.1} parent=11 // pred_region
          _
        $region28: #{cbam_forward.1} parent=11 // pred_fallthru
          _
      $region12: #{cbam_forward.1} parent=5 // pred_fallthru
        _
      %p184 = scmp.lt.s32.totalorder %s13, 2
      // Predicated region
      $region29: #{cbam_forward.1} parent=5 // pred_check
        %p185 = pneg %p184
      $region30: #{cbam_forward.1} parent=5 // pred_check_branch
        %187 = sbr.rel (%p185) target = $region32
      $region31: #{cbam_forward.1} parent=5 // pred_region
        // Predicated region
        $region33: #{cbam_forward.1} parent=31 // pred_check
          %p188 = pneg %p33
        $region34: #{cbam_forward.1} parent=31 // pred_check_branch
          %190 = sbr.rel (%p188) target = $region36
        $region35: #{cbam_forward.1} parent=31 // pred_region
          %p191 = scmp.lt.s32.totalorder %s13, 1
          %s192 = scalar_select %p191, %s13, 1
          %s193 = smul.addr %s192, 8
          %s194 = smul.addr %s193, 8
          %s195 = scalar_lea.vmem %s0, %s194
        $region36: #{cbam_forward.1} parent=31 // pred_fallthru
          _
      $region32: #{cbam_forward.1} parent=5 // pred_fallthru
        _
      %p196 = scmp.le.s32.totalorder 1, %s13
      %p197 = scmp.lt.s32.totalorder %s13, 3
      %p198 = pnand %p196, %p197
      %p199 = pneg %p198
      // Predicated region
      $region37: #{cbam_forward.1} parent=5 // pred_check
        _
      $region38: #{cbam_forward.1} parent=5 // pred_check_branch
        %201 = sbr.rel (%p198) target = $region40
      $region39: #{cbam_forward.1} parent=5 // pred_region
        %s202 = ssub.s32 %s13, 1
        // Predicated region
        $region41: #{cbam_forward.1} parent=39 // pred_check
          %p203 = pneg %p102
        $region42: #{cbam_forward.1} parent=39 // pred_check_branch
          %205 = sbr.rel (%p203) target = $region44
        $region43: #{cbam_forward.1} parent=39 // pred_region
          %206 = dma.done [#allocation6], 16
        $region44: #{cbam_forward.1} parent=39 // pred_fallthru
          _
        %207 = sfence
        %p208 = scmp.lt.s32.totalorder %s18, 1
        %s209 = scalar_select %p208, %s18, 1
        %s210 = smul.addr %s209, 8
        %s211 = smul.addr %s210, 8
        %s212 = scalar_lea.vmem %s0, %s211
        %p213 = pneg %p39
        %p214 = pneg %p36
        %p215 = pneg %p60
        %p216 = pneg %p57
        %p217 = pneg %p81
        %p218 = pneg %p78
        %p219 = pneg %p102
        %p220 = pneg %p99
        %p221 = pneg %p123
        %p222 = pneg %p120
        %p223 = pneg %p149
        %p224 = pneg %p146
        %p225 = scmp.lt.s32.totalorder %s18, 1
        %s226 = scalar_select %p225, %s18, 1
        %s227 = smul.addr %s226, 8
        %s228 = smul.addr %s227, 8
        %s229 = scalar_lea.vmem %s5, %s228
        %p230 = scmp.lt.s32.totalorder %s18, 1
        %s231 = scalar_select %p230, %s18, 1
        %s232 = smul.addr %s231, 8
        %s233 = smul.addr %s232, 8
        %s234 = scalar_lea.vmem %s0, %s233
        %p235 = scmp.lt.s32.totalorder %s18, 1
        %s236 = scalar_select %p235, %s18, 1
        %s237 = smul.addr %s236, 8
        %s238 = smul.addr %s237, 8
        %s239 = scalar_lea.vmem %s5, %s238
        %v240 = vld [vmem:[%s1] sm:$0xff]
        %v241 = vld [vmem:[%s1 + $0x8] sm:$0xff]
        %v242 = vld [vmem:[%s1 + $0x10] sm:$0xff]
        %v243 = vld [vmem:[%s1 + $0x18] sm:$0xff]
        %v244 = vld [vmem:[%s2] sm:$0xff]
        %v245 = vld [vmem:[%s2 + $0x8] sm:$0xff]
        %v246 = vld [vmem:[%s2 + $0x10] sm:$0xff]
        %v247 = vld [vmem:[%s2 + $0x18] sm:$0xff]
        %s248 = sld [smem:[#allocation4]]
        %vm249 = vcmask 179200
        %250 = vst.msk [vmem:[#allocation2] sm:$0xff] %vm249, 0.0
        %251 = vst.msk [vmem:[#allocation2 + $0x8] sm:$0xff] %vm249, 0.0
        %vm252 = vcmask 177152
        %253 = vst.msk [vmem:[#allocation2 + $0x10] sm:$0x3f] %vm252, 0.0
        %254 = vst.msk [vmem:[#allocation2 + $0x18] sm:$0xff] %vm249, 0.0
        %255 = vst.msk [vmem:[#allocation2 + $0x20] sm:$0xff] %vm249, 0.0
        %256 = vst.msk [vmem:[#allocation2 + $0x28] sm:$0x3f] %vm252, 0.0
        %v257 = vld [vmem:[%s234] sm:$0xff]
        %v258 = vld [vmem:[%s234 + $0x8] sm:$0xff]
        %v259 = vld [vmem:[%s234 + $0x10] sm:$0xff]
        %v260 = vld [vmem:[%s234 + $0x18] sm:$0xff]
        %v261 = vld [vmem:[%s234 + $0x20] sm:$0xff]
        %v262 = vld [vmem:[%s234 + $0x28] sm:$0xff]
        %v263 = vld [vmem:[%s234 + $0x30] sm:$0xff]
        %v264 = vld [vmem:[%s234 + $0x38] sm:$0xff]
        %v265 = vadd.f32 %v257, %v258
        %266 = vadd.xlane.f32.xlu0 %v265
        %v267 = vpop.xlane.xlu0 %266
        %v268 = vadd.f32 %v259, %v260
        %269 = vadd.xlane.f32.xlu0 %v268
        %v270 = vpop.xlane.xlu0 %269
        %v271 = vadd.f32 %v261, %v262
        %272 = vadd.xlane.f32.xlu0 %v271
        %v273 = vpop.xlane.xlu0 %272
        %v274 = vadd.f32 %v263, %v264
        %275 = vadd.xlane.f32.xlu0 %v274
        %v276 = vpop.xlane.xlu0 %275
        %v277 = vmul.f32 %v267, 0.00390625
        %v278 = vmul.f32 %v270, 0.00390625
        %v279 = vmul.f32 %v273, 0.00390625
        %v280 = vmul.f32 %v276, 0.00390625
        %v281 = vmax.f32 %v257, %v258
        %282 = vmax.xlane.f32.xlu0 %v281
        %v283 = vpop.xlane.xlu0 %282
        %v284 = vmax.f32 %v259, %v260
        %285 = vmax.xlane.f32.xlu0 %v284
        %v286 = vpop.xlane.xlu0 %285
        %v287 = vmax.f32 %v261, %v262
        %288 = vmax.xlane.f32.xlu0 %v287
        %v289 = vpop.xlane.xlu0 %288
        %v290 = vmax.f32 %v263, %v264
        %291 = vmax.xlane.f32.xlu0 %v290
        %v292 = vpop.xlane.xlu0 %291
        %v293 = vmul.f32 %v240, %v277
        %v294 = vmul.f32 %v241, %v278
        %v295 = vmul.f32 %v242, %v279
        %v296 = vmul.f32 %v243, %v280
        %vm297 = vcmask 7168
        %v298 = vsel %vm297, %v293, 0.0
        %v299 = vsel %vm297, %v294, 0.0
        %v300 = vadd.f32 %v298, %v299
        %v301 = vsel %vm297, %v295, 0.0
        %v302 = vadd.f32 %v300, %v301
        %v303 = vsel %vm297, %v296, 0.0
        %v304 = vadd.f32 %v302, %v303
        %v305 = vrot.slane %v304, 4
        %v306 = vadd.f32 %v304, %v305
        %v307 = vrot.slane %v306, 2
        %v308 = vadd.f32 %v306, %v307
        %v309 = vrot.slane %v308, 1
        %v310 = vadd.f32 %v308, %v309
        %v311 = vmax.f32 %v310, 0.0
        %v312 = vmul.f32 %v240, %v283
        %v313 = vmul.f32 %v241, %v286
        %v314 = vmul.f32 %v242, %v289
        %v315 = vmul.f32 %v243, %v292
        %v316 = vsel %vm297, %v312, 0.0
        %v317 = vsel %vm297, %v313, 0.0
        %v318 = vadd.f32 %v316, %v317
        %v319 = vsel %vm297, %v314, 0.0
        %v320 = vadd.f32 %v318, %v319
        %v321 = vsel %vm297, %v315, 0.0
        %v322 = vadd.f32 %v320, %v321
        %v323 = vrot.slane %v322, 4
        %v324 = vadd.f32 %v322, %v323
        %v325 = vrot.slane %v324, 2
        %v326 = vadd.f32 %v324, %v325
        %v327 = vrot.slane %v326, 1
        %v328 = vadd.f32 %v326, %v327
        %v329 = vmax.f32 %v328, 0.0
        %v330 = vadd.f32 %v311, %v329
        %v331 = vmul.f32 %v244, %v330
        %v332 = vmul.f32 %v245, %v330
        %v333 = vmul.f32 %v246, %v330
        %v334 = vmul.f32 %v247, %v330
        %v335 = vadd.f32 %v331, 0.0
        %v336 = vadd.f32 %v332, 0.0
        %v337 = vadd.f32 %v333, 0.0
        %v338 = vadd.f32 %v334, 0.0
        %vm339 = vcmask 15368
        %v340 = vsel %vm339, %v293, 0.0
        %v341 = vsel %vm339, %v294, 0.0
        %v342 = vadd.f32 %v340, %v341
        %v343 = vsel %vm339, %v295, 0.0
        %v344 = vadd.f32 %v342, %v343
        %v345 = vsel %vm339, %v296, 0.0
        %v346 = vadd.f32 %v344, %v345
        %v347 = vrot.slane %v346, 4
        %v348 = vadd.f32 %v346, %v347
        %v349 = vrot.slane %v348, 2
        %v350 = vadd.f32 %v348, %v349
        %v351 = vrot.slane %v350, 1
        %v352 = vadd.f32 %v350, %v351
        %v353 = vmax.f32 %v352, 0.0
        %v354 = vsel %vm339, %v312, 0.0
        %v355 = vsel %vm339, %v313, 0.0
        %v356 = vadd.f32 %v354, %v355
        %v357 = vsel %vm339, %v314, 0.0
        %v358 = vadd.f32 %v356, %v357
        %v359 = vsel %vm339, %v315, 0.0
        %v360 = vadd.f32 %v358, %v359
        %v361 = vrot.slane %v360, 4
        %v362 = vadd.f32 %v360, %v361
        %v363 = vrot.slane %v362, 2
        %v364 = vadd.f32 %v362, %v363
        %v365 = vrot.slane %v364, 1
        %v366 = vadd.f32 %v364, %v365
        %v367 = vmax.f32 %v366, 0.0
        %v368 = vadd.f32 %v353, %v367
        %v369 = vmul.f32 %v244, %v368
        %v370 = vmul.f32 %v245, %v368
        %v371 = vmul.f32 %v246, %v368
        %v372 = vmul.f32 %v247, %v368
        %377 = vrot.lane.b32.xlu0 %v369, 127
        %v378 = vpop.permute.xlu0 %377
        %379 = vrot.lane.b32.xlu0 %v370, 127
        %v380 = vpop.permute.xlu0 %379
        %381 = vrot.lane.b32.xlu0 %v371, 127
        %v382 = vpop.permute.xlu0 %381
        %383 = vrot.lane.b32.xlu0 %v372, 127
        %v384 = vpop.permute.xlu0 %383
        %v389 = vadd.f32 %v335, %v378
        %v390 = vadd.f32 %v336, %v380
        %v391 = vadd.f32 %v337, %v382
        %v392 = vadd.f32 %v338, %v384
        %v393 = vxor.u32 %v389, 2147483648
        %v394 = vxor.u32 %v390, 2147483648
        %v395 = vxor.u32 %v391, 2147483648
        %v396 = vxor.u32 %v392, 2147483648
        %v397 = vmul.f32 %v393, 1.442695
        %v398 = vpow.pop %v397
        %v399 = vmul.f32 %v394, 1.442695
        %v400 = vpow.pop %v399
        %v401 = vmul.f32 %v395, 1.442695
        %v402 = vpow.pop %v401
        %v403 = vmul.f32 %v396, 1.442695
        %v404 = vpow.pop %v403
        %v405 = vadd.f32 %v398, 1.0
        %v406 = vadd.f32 %v400, 1.0
        %v407 = vadd.f32 %v402, 1.0
        %v408 = vadd.f32 %v404, 1.0
        %v409 = vrcp.pop %v405
        %v410 = vmul.f32 1.0, %v409
        %v411 = vrcp.pop %v406
        %v412 = vmul.f32 1.0, %v411
        %v413 = vrcp.pop %v407
        %v414 = vmul.f32 1.0, %v413
        %v415 = vrcp.pop %v408
        %v416 = vmul.f32 1.0, %v415
        %418 = vset.pattern.permute.xlu0 0
        %419 = vperm.xlu0 %418, %v410
        %v420 = vpop.permute.xlu0 %419
        %423 = vset.pattern.permute.xlu0 0
        %424 = vperm.xlu0 %423, %v412
        %v425 = vpop.permute.xlu0 %424
        %428 = vset.pattern.permute.xlu0 0
        %429 = vperm.xlu0 %428, %v414
        %v430 = vpop.permute.xlu0 %429
        %433 = vset.pattern.permute.xlu0 0
        %434 = vperm.xlu0 %433, %v416
        %v435 = vpop.permute.xlu0 %434
        %v437 = vmul.f32 %v257, %v420
        %v438 = vmul.f32 %v258, %v420
        %v439 = vmul.f32 %v259, %v425
        %v440 = vmul.f32 %v260, %v425
        %v441 = vmul.f32 %v261, %v430
        %v442 = vmul.f32 %v262, %v430
        %v443 = vmul.f32 %v263, %v435
        %v444 = vmul.f32 %v264, %v435
        %v445 = vadd.f32 %v437, %v439
        %v446 = vadd.f32 %v445, %v441
        %v447 = vadd.f32 %v446, %v443
        %v448 = vrot.slane %v447, 4
        %v449 = vadd.f32 %v447, %v448
        %v450 = vrot.slane %v449, 2
        %v451 = vadd.f32 %v449, %v450
        %v452 = vrot.slane %v451, 1
        %v453 = vadd.f32 %v451, %v452
        %v454 = vadd.f32 %v438, %v440
        %v455 = vadd.f32 %v454, %v442
        %v456 = vadd.f32 %v455, %v444
        %v457 = vrot.slane %v456, 4
        %v458 = vadd.f32 %v456, %v457
        %v459 = vrot.slane %v458, 2
        %v460 = vadd.f32 %v458, %v459
        %v461 = vrot.slane %v460, 1
        %v462 = vadd.f32 %v460, %v461
        %v463 = vmul.f32 %v453, 0.03125
        %v464 = vmul.f32 %v462, 0.03125
        %v465 = vmax.f32 %v437, %v441
        %v466 = vmax.f32 %v439, %v443
        %v467 = vmax.f32 %v465, %v466
        %v468 = vrot.slane %v467, 4
        %v469 = vmax.f32 %v467, %v468
        %v470 = vrot.slane %v469, 2
        %v471 = vmax.f32 %v469, %v470
        %v472 = vrot.slane %v471, 1
        %v473 = vmax.f32 %v471, %v472
        %v474 = vmax.f32 %v438, %v442
        %v475 = vmax.f32 %v440, %v444
        %v476 = vmax.f32 %v474, %v475
        %v477 = vrot.slane %v476, 4
        %v478 = vmax.f32 %v476, %v477
        %v479 = vrot.slane %v478, 2
        %v480 = vmax.f32 %v478, %v479
        %v481 = vrot.slane %v480, 1
        %v482 = vmax.f32 %v480, %v481
        %484 = vrot.lane.b32.xlu0 %v463, 3
        %v485 = vpop.permute.xlu0 %484
        %vm487 = vcmask 147480
        %488 = vst.msk [vmem:[#allocation2 + $0x3] sm:$0x1] %vm487, %v485
        %490 = vrot.lane.b32.xlu0 %v473, 3
        %v491 = vpop.permute.xlu0 %490
        %s493 = scalar_lea.vmem [#allocation2], 24
        %494 = vst.msk [vmem:[%s493 + $0x3] sm:$0x1] %vm487, %v491
        %495 = vrot.lane.b32.xlu0 %v463, 115
        %v496 = vpop.permute.xlu0 %495
        %498 = vst.msk [vmem:[#allocation2 + $0x4] sm:$0x1] %vm487, %v496
        %499 = vrot.lane.b32.xlu0 %v473, 115
        %v500 = vpop.permute.xlu0 %499
        %502 = vst.msk [vmem:[%s493 + $0x4] sm:$0x1] %vm487, %v500
        %503 = vrot.lane.b32.xlu0 %v463, 99
        %v504 = vpop.permute.xlu0 %503
        %506 = vst.msk [vmem:[#allocation2 + $0x5] sm:$0x1] %vm487, %v504
        %507 = vrot.lane.b32.xlu0 %v473, 99
        %v508 = vpop.permute.xlu0 %507
        %510 = vst.msk [vmem:[%s493 + $0x5] sm:$0x1] %vm487, %v508
        %511 = vrot.lane.b32.xlu0 %v463, 83
        %v512 = vpop.permute.xlu0 %511
        %514 = vst.msk [vmem:[#allocation2 + $0x6] sm:$0x1] %vm487, %v512
        %515 = vrot.lane.b32.xlu0 %v473, 83
        %v516 = vpop.permute.xlu0 %515
        %518 = vst.msk [vmem:[%s493 + $0x6] sm:$0x1] %vm487, %v516
        %519 = vrot.lane.b32.xlu0 %v463, 67
        %v520 = vpop.permute.xlu0 %519
        %522 = vst.msk [vmem:[#allocation2 + $0x7] sm:$0x1] %vm487, %v520
        %523 = vrot.lane.b32.xlu0 %v473, 67
        %v524 = vpop.permute.xlu0 %523
        %526 = vst.msk [vmem:[%s493 + $0x7] sm:$0x1] %vm487, %v524
        %527 = vrot.lane.b32.xlu0 %v463, 51
        %v528 = vpop.permute.xlu0 %527
        %530 = vst.msk [vmem:[#allocation2 + $0x8] sm:$0x1] %vm487, %v528
        %531 = vrot.lane.b32.xlu0 %v473, 51
        %v532 = vpop.permute.xlu0 %531
        %534 = vst.msk [vmem:[%s493 + $0x8] sm:$0x1] %vm487, %v532
        %535 = vrot.lane.b32.xlu0 %v463, 35
        %v536 = vpop.permute.xlu0 %535
        %538 = vst.msk [vmem:[#allocation2 + $0x9] sm:$0x1] %vm487, %v536
        %539 = vrot.lane.b32.xlu0 %v473, 35
        %v540 = vpop.permute.xlu0 %539
        %542 = vst.msk [vmem:[%s493 + $0x9] sm:$0x1] %vm487, %v540
        %543 = vrot.lane.b32.xlu0 %v463, 19
        %v544 = vpop.permute.xlu0 %543
        %546 = vst.msk [vmem:[#allocation2 + $0xa] sm:$0x1] %vm487, %v544
        %547 = vrot.lane.b32.xlu0 %v473, 19
        %v548 = vpop.permute.xlu0 %547
        %550 = vst.msk [vmem:[%s493 + $0xa] sm:$0x1] %vm487, %v548
        %552 = vrot.lane.b32.xlu0 %v464, 3
        %v553 = vpop.permute.xlu0 %552
        %555 = vst.msk [vmem:[#allocation2 + $0xb] sm:$0x1] %vm487, %v553
        %557 = vrot.lane.b32.xlu0 %v482, 3
        %v558 = vpop.permute.xlu0 %557
        %560 = vst.msk [vmem:[%s493 + $0xb] sm:$0x1] %vm487, %v558
        %561 = vrot.lane.b32.xlu0 %v464, 115
        %v562 = vpop.permute.xlu0 %561
        %564 = vst.msk [vmem:[#allocation2 + $0xc] sm:$0x1] %vm487, %v562
        %565 = vrot.lane.b32.xlu0 %v482, 115
        %v566 = vpop.permute.xlu0 %565
        %568 = vst.msk [vmem:[%s493 + $0xc] sm:$0x1] %vm487, %v566
        %569 = vrot.lane.b32.xlu0 %v464, 99
        %v570 = vpop.permute.xlu0 %569
        %572 = vst.msk [vmem:[#allocation2 + $0xd] sm:$0x1] %vm487, %v570
        %573 = vrot.lane.b32.xlu0 %v482, 99
        %v574 = vpop.permute.xlu0 %573
        %576 = vst.msk [vmem:[%s493 + $0xd] sm:$0x1] %vm487, %v574
        %577 = vrot.lane.b32.xlu0 %v464, 83
        %v578 = vpop.permute.xlu0 %577
        %580 = vst.msk [vmem:[#allocation2 + $0xe] sm:$0x1] %vm487, %v578
        %581 = vrot.lane.b32.xlu0 %v482, 83
        %v582 = vpop.permute.xlu0 %581
        %584 = vst.msk [vmem:[%s493 + $0xe] sm:$0x1] %vm487, %v582
        %585 = vrot.lane.b32.xlu0 %v464, 67
        %v586 = vpop.permute.xlu0 %585
        %588 = vst.msk [vmem:[#allocation2 + $0xf] sm:$0x1] %vm487, %v586
        %589 = vrot.lane.b32.xlu0 %v482, 67
        %v590 = vpop.permute.xlu0 %589
        %592 = vst.msk [vmem:[%s493 + $0xf] sm:$0x1] %vm487, %v590
        %593 = vrot.lane.b32.xlu0 %v464, 51
        %v594 = vpop.permute.xlu0 %593
        %596 = vst.msk [vmem:[#allocation2 + $0x10] sm:$0x1] %vm487, %v594
        %597 = vrot.lane.b32.xlu0 %v482, 51
        %v598 = vpop.permute.xlu0 %597
        %600 = vst.msk [vmem:[%s493 + $0x10] sm:$0x1] %vm487, %v598
        %601 = vrot.lane.b32.xlu0 %v464, 35
        %v602 = vpop.permute.xlu0 %601
        %604 = vst.msk [vmem:[#allocation2 + $0x11] sm:$0x1] %vm487, %v602
        %605 = vrot.lane.b32.xlu0 %v482, 35
        %v606 = vpop.permute.xlu0 %605
        %608 = vst.msk [vmem:[%s493 + $0x11] sm:$0x1] %vm487, %v606
        %609 = vrot.lane.b32.xlu0 %v464, 19
        %v610 = vpop.permute.xlu0 %609
        %612 = vst.msk [vmem:[#allocation2 + $0x12] sm:$0x1] %vm487, %v610
        %613 = vrot.lane.b32.xlu0 %v482, 19
        %v614 = vpop.permute.xlu0 %613
        %616 = vst.msk [vmem:[%s493 + $0x12] sm:$0x1] %vm487, %v614
        %v617 = vstv %s248
        %v618 = vld [vmem:[#allocation2] sm:$0xff]
        %v619 = vld [vmem:[#allocation2 + $0x8] sm:$0xff]
        %v620 = vld [vmem:[#allocation2 + $0x10] sm:$0x3f]
        %s621 = sld [smem:[#allocation5]]
        %v622 = vstv %s621
        %v623 = vmul.f32 %v622, %v618
        %v624 = vmul.f32 %v622, %v619
        %v625 = vadd.f32 %v617, %v623
        %v626 = vadd.f32 %v617, %v624
        %s627 = sld [smem:[#allocation5 + $0x7]]
        %v628 = vstv %s627
        %v629 = vmul.f32 %v628, %v618
        %v630 = vmul.f32 %v628, %v619
        %v631 = vmul.f32 %v628, %v620
        %vm635 = vcmask 1046528
        %v636 = vrot.slane %v629, 1
        %v637 = vrot.slane %v630, 1
        %v638 = vsel %vm635, %v636, %v637
        %v639 = vrot.slane %v631, 1
        %v640 = vsel %vm635, %v637, %v639
        %v643 = vadd.f32 %v625, %v638
        %v644 = vadd.f32 %v626, %v640
        %s645 = sld [smem:[#allocation5 + $0xe]]
        %v646 = vstv %s645
        %v647 = vmul.f32 %v646, %v618
        %v648 = vmul.f32 %v646, %v619
        %v649 = vmul.f32 %v646, %v620
        %vm653 = vcmask 1045504
        %v654 = vrot.slane %v647, 2
        %v655 = vrot.slane %v648, 2
        %v656 = vsel %vm653, %v654, %v655
        %v657 = vrot.slane %v649, 2
        %v658 = vsel %vm653, %v655, %v657
        %v661 = vadd.f32 %v643, %v656
        %v662 = vadd.f32 %v644, %v658
        %s663 = sld [smem:[#allocation5 + $0x15]]
        %v664 = vstv %s663
        %v665 = vmul.f32 %v664, %v618
        %v666 = vmul.f32 %v664, %v619
        %v667 = vmul.f32 %v664, %v620
        %vm671 = vcmask 1044480
        %v672 = vrot.slane %v665, 3
        %v673 = vrot.slane %v666, 3
        %v674 = vsel %vm671, %v672, %v673
        %v675 = vrot.slane %v667, 3
        %v676 = vsel %vm671, %v673, %v675
        %v679 = vadd.f32 %v661, %v674
        %v680 = vadd.f32 %v662, %v676
        %s681 = sld [smem:[#allocation5 + $0x1c]]
        %v682 = vstv %s681
        %v683 = vmul.f32 %v682, %v618
        %v684 = vmul.f32 %v682, %v619
        %v685 = vmul.f32 %v682, %v620
        %vm689 = vcmask 1043456
        %v690 = vrot.slane %v683, 4
        %v691 = vrot.slane %v684, 4
        %v692 = vsel %vm689, %v690, %v691
        %v693 = vrot.slane %v685, 4
        %v694 = vsel %vm689, %v691, %v693
        %v697 = vadd.f32 %v679, %v692
        %v698 = vadd.f32 %v680, %v694
        %s699 = sld [smem:[#allocation5 + $0x23]]
        %v700 = vstv %s699
        %v701 = vmul.f32 %v700, %v618
        %v702 = vmul.f32 %v700, %v619
        %v703 = vmul.f32 %v700, %v620
        %vm707 = vcmask 1042432
        %v708 = vrot.slane %v701, 5
        %v709 = vrot.slane %v702, 5
        %v710 = vsel %vm707, %v708, %v709
        %v711 = vrot.slane %v703, 5
        %v712 = vsel %vm707, %v709, %v711
        %v715 = vadd.f32 %v697, %v710
        %v716 = vadd.f32 %v698, %v712
        %s717 = sld [smem:[#allocation5 + $0x2a]]
        %v718 = vstv %s717
        %v719 = vmul.f32 %v718, %v618
        %v720 = vmul.f32 %v718, %v619
        %v721 = vmul.f32 %v718, %v620
        %vm725 = vcmask 1041408
        %v726 = vrot.slane %v719, 6
        %v727 = vrot.slane %v720, 6
        %v728 = vsel %vm725, %v726, %v727
        %v729 = vrot.slane %v721, 6
        %v730 = vsel %vm725, %v727, %v729
        %v733 = vadd.f32 %v715, %v728
        %v734 = vadd.f32 %v716, %v730
        %v735 = vld [vmem:[%s493] sm:$0xff]
        %v736 = vld [vmem:[%s493 + $0x8] sm:$0xff]
        %v737 = vld [vmem:[%s493 + $0x10] sm:$0x3f]
        %s738 = sld [smem:[#allocation5 + $0x31]]
        %v739 = vstv %s738
        %v740 = vmul.f32 %v739, %v735
        %v741 = vmul.f32 %v739, %v736
        %v742 = vadd.f32 %v733, %v740
        %v743 = vadd.f32 %v734, %v741
        %s744 = sld [smem:[#allocation5 + $0x38]]
        %v745 = vstv %s744
        %v746 = vmul.f32 %v745, %v735
        %v747 = vmul.f32 %v745, %v736
        %v748 = vmul.f32 %v745, %v737
        %v752 = vrot.slane %v746, 1
        %v753 = vrot.slane %v747, 1
        %v754 = vsel %vm635, %v752, %v753
        %v755 = vrot.slane %v748, 1
        %v756 = vsel %vm635, %v753, %v755
        %v759 = vadd.f32 %v742, %v754
        %v760 = vadd.f32 %v743, %v756
        %s761 = sld [smem:[#allocation5 + $0x3f]]
        %v762 = vstv %s761
        %v763 = vmul.f32 %v762, %v735
        %v764 = vmul.f32 %v762, %v736
        %v765 = vmul.f32 %v762, %v737
        %v769 = vrot.slane %v763, 2
        %v770 = vrot.slane %v764, 2
        %v771 = vsel %vm653, %v769, %v770
        %v772 = vrot.slane %v765, 2
        %v773 = vsel %vm653, %v770, %v772
        %v776 = vadd.f32 %v759, %v771
        %v777 = vadd.f32 %v760, %v773
        %s778 = sld [smem:[#allocation5 + $0x46]]
        %v779 = vstv %s778
        %v780 = vmul.f32 %v779, %v735
        %v781 = vmul.f32 %v779, %v736
        %v782 = vmul.f32 %v779, %v737
        %v786 = vrot.slane %v780, 3
        %v787 = vrot.slane %v781, 3
        %v788 = vsel %vm671, %v786, %v787
        %v789 = vrot.slane %v782, 3
        %v790 = vsel %vm671, %v787, %v789
        %v793 = vadd.f32 %v776, %v788
        %v794 = vadd.f32 %v777, %v790
        %s795 = sld [smem:[#allocation5 + $0x4d]]
        %v796 = vstv %s795
        %v797 = vmul.f32 %v796, %v735
        %v798 = vmul.f32 %v796, %v736
        %v799 = vmul.f32 %v796, %v737
        %v803 = vrot.slane %v797, 4
        %v804 = vrot.slane %v798, 4
        %v805 = vsel %vm689, %v803, %v804
        %v806 = vrot.slane %v799, 4
        %v807 = vsel %vm689, %v804, %v806
        %v810 = vadd.f32 %v793, %v805
        %v811 = vadd.f32 %v794, %v807
        %s812 = sld [smem:[#allocation5 + $0x54]]
        %v813 = vstv %s812
        %v814 = vmul.f32 %v813, %v735
        %v815 = vmul.f32 %v813, %v736
        %v816 = vmul.f32 %v813, %v737
        %v820 = vrot.slane %v814, 5
        %v821 = vrot.slane %v815, 5
        %v822 = vsel %vm707, %v820, %v821
        %v823 = vrot.slane %v816, 5
        %v824 = vsel %vm707, %v821, %v823
        %v827 = vadd.f32 %v810, %v822
        %v828 = vadd.f32 %v811, %v824
        %s829 = sld [smem:[#allocation5 + $0x5b]]
        %v830 = vstv %s829
        %v831 = vmul.f32 %v830, %v735
        %v832 = vmul.f32 %v830, %v736
        %v833 = vmul.f32 %v830, %v737
        %v837 = vrot.slane %v831, 6
        %v838 = vrot.slane %v832, 6
        %v839 = vsel %vm725, %v837, %v838
        %v840 = vrot.slane %v833, 6
        %v841 = vsel %vm725, %v838, %v840
        %v844 = vadd.f32 %v827, %v839
        %v845 = vadd.f32 %v828, %v841
        %s846 = sld [smem:[#allocation5 + $0x1]]
        %v847 = vstv %s846
        %v848 = vmul.f32 %v847, %v618
        %v849 = vmul.f32 %v847, %v619
        %852 = vrot.lane.b32.xlu0 %v848, 127
        %v853 = vpop.permute.xlu0 %852
        %854 = vrot.lane.b32.xlu0 %v849, 127
        %v855 = vpop.permute.xlu0 %854
        %v858 = vadd.f32 %v844, %v853
        %v859 = vadd.f32 %v845, %v855
        %s860 = sld [smem:[#allocation5 + $0x8]]
        %v861 = vstv %s860
        %v862 = vmul.f32 %v861, %v618
        %v863 = vmul.f32 %v861, %v619
        %v864 = vmul.f32 %v861, %v620
        %v868 = vrot.slane %v862, 1
        %v869 = vrot.slane %v863, 1
        %v870 = vsel %vm635, %v868, %v869
        %v871 = vrot.slane %v864, 1
        %v872 = vsel %vm635, %v869, %v871
        %873 = vrot.lane.b32.xlu0 %v870, 127
        %v874 = vpop.permute.xlu0 %873
        %875 = vrot.lane.b32.xlu0 %v872, 127
        %v876 = vpop.permute.xlu0 %875
        %v879 = vadd.f32 %v858, %v874
        %v880 = vadd.f32 %v859, %v876
        %s881 = sld [smem:[#allocation5 + $0xf]]
        %v882 = vstv %s881
        %v883 = vmul.f32 %v882, %v618
        %v884 = vmul.f32 %v882, %v619
        %v885 = vmul.f32 %v882, %v620
        %v889 = vrot.slane %v883, 2
        %v890 = vrot.slane %v884, 2
        %v891 = vsel %vm653, %v889, %v890
        %v892 = vrot.slane %v885, 2
        %v893 = vsel %vm653, %v890, %v892
        %894 = vrot.lane.b32.xlu0 %v891, 127
        %v895 = vpop.permute.xlu0 %894
        %896 = vrot.lane.b32.xlu0 %v893, 127
        %v897 = vpop.permute.xlu0 %896
        %v900 = vadd.f32 %v879, %v895
        %v901 = vadd.f32 %v880, %v897
        %s902 = sld [smem:[#allocation5 + $0x16]]
        %v903 = vstv %s902
        %v904 = vmul.f32 %v903, %v618
        %v905 = vmul.f32 %v903, %v619
        %v906 = vmul.f32 %v903, %v620
        %v910 = vrot.slane %v904, 3
        %v911 = vrot.slane %v905, 3
        %v912 = vsel %vm671, %v910, %v911
        %v913 = vrot.slane %v906, 3
        %v914 = vsel %vm671, %v911, %v913
        %915 = vrot.lane.b32.xlu0 %v912, 127
        %v916 = vpop.permute.xlu0 %915
        %917 = vrot.lane.b32.xlu0 %v914, 127
        %v918 = vpop.permute.xlu0 %917
        %v921 = vadd.f32 %v900, %v916
        %v922 = vadd.f32 %v901, %v918
        %s923 = sld [smem:[#allocation5 + $0x1d]]
        %v924 = vstv %s923
        %v925 = vmul.f32 %v924, %v618
        %v926 = vmul.f32 %v924, %v619
        %v927 = vmul.f32 %v924, %v620
        %v931 = vrot.slane %v925, 4
        %v932 = vrot.slane %v926, 4
        %v933 = vsel %vm689, %v931, %v932
        %v934 = vrot.slane %v927, 4
        %v935 = vsel %vm689, %v932, %v934
        %936 = vrot.lane.b32.xlu0 %v933, 127
        %v937 = vpop.permute.xlu0 %936
        %938 = vrot.lane.b32.xlu0 %v935, 127
        %v939 = vpop.permute.xlu0 %938
        %v942 = vadd.f32 %v921, %v937
        %v943 = vadd.f32 %v922, %v939
        %s944 = sld [smem:[#allocation5 + $0x24]]
        %v945 = vstv %s944
        %v946 = vmul.f32 %v945, %v618
        %v947 = vmul.f32 %v945, %v619
        %v948 = vmul.f32 %v945, %v620
        %v952 = vrot.slane %v946, 5
        %v953 = vrot.slane %v947, 5
        %v954 = vsel %vm707, %v952, %v953
        %v955 = vrot.slane %v948, 5
        %v956 = vsel %vm707, %v953, %v955
        %957 = vrot.lane.b32.xlu0 %v954, 127
        %v958 = vpop.permute.xlu0 %957
        %959 = vrot.lane.b32.xlu0 %v956, 127
        %v960 = vpop.permute.xlu0 %959
        %v963 = vadd.f32 %v942, %v958
        %v964 = vadd.f32 %v943, %v960
        %s965 = sld [smem:[#allocation5 + $0x2b]]
        %v966 = vstv %s965
        %v967 = vmul.f32 %v966, %v618
        %v968 = vmul.f32 %v966, %v619
        %v969 = vmul.f32 %v966, %v620
        %v973 = vrot.slane %v967, 6
        %v974 = vrot.slane %v968, 6
        %v975 = vsel %vm725, %v973, %v974
        %v976 = vrot.slane %v969, 6
        %v977 = vsel %vm725, %v974, %v976
        %978 = vrot.lane.b32.xlu0 %v975, 127
        %v979 = vpop.permute.xlu0 %978
        %980 = vrot.lane.b32.xlu0 %v977, 127
        %v981 = vpop.permute.xlu0 %980
        %v984 = vadd.f32 %v963, %v979
        %v985 = vadd.f32 %v964, %v981
        %s986 = sld [smem:[#allocation5 + $0x32]]
        %v987 = vstv %s986
        %v988 = vmul.f32 %v987, %v735
        %v989 = vmul.f32 %v987, %v736
        %992 = vrot.lane.b32.xlu0 %v988, 127
        %v993 = vpop.permute.xlu0 %992
        %994 = vrot.lane.b32.xlu0 %v989, 127
        %v995 = vpop.permute.xlu0 %994
        %v998 = vadd.f32 %v984, %v993
        %v999 = vadd.f32 %v985, %v995
        %s1000 = sld [smem:[#allocation5 + $0x39]]
        %v1001 = vstv %s1000
        %v1002 = vmul.f32 %v1001, %v735
        %v1003 = vmul.f32 %v1001, %v736
        %v1004 = vmul.f32 %v1001, %v737
        %v1008 = vrot.slane %v1002, 1
        %v1009 = vrot.slane %v1003, 1
        %v1010 = vsel %vm635, %v1008, %v1009
        %v1011 = vrot.slane %v1004, 1
        %v1012 = vsel %vm635, %v1009, %v1011
        %1013 = vrot.lane.b32.xlu0 %v1010, 127
        %v1014 = vpop.permute.xlu0 %1013
        %1015 = vrot.lane.b32.xlu0 %v1012, 127
        %v1016 = vpop.permute.xlu0 %1015
        %v1019 = vadd.f32 %v998, %v1014
        %v1020 = vadd.f32 %v999, %v1016
        %s1021 = sld [smem:[#allocation5 + $0x40]]
        %v1022 = vstv %s1021
        %v1023 = vmul.f32 %v1022, %v735
        %v1024 = vmul.f32 %v1022, %v736
        %v1025 = vmul.f32 %v1022, %v737
        %v1029 = vrot.slane %v1023, 2
        %v1030 = vrot.slane %v1024, 2
        %v1031 = vsel %vm653, %v1029, %v1030
        %v1032 = vrot.slane %v1025, 2
        %v1033 = vsel %vm653, %v1030, %v1032
        %1034 = vrot.lane.b32.xlu0 %v1031, 127
        %v1035 = vpop.permute.xlu0 %1034
        %1036 = vrot.lane.b32.xlu0 %v1033, 127
        %v1037 = vpop.permute.xlu0 %1036
        %v1040 = vadd.f32 %v1019, %v1035
        %v1041 = vadd.f32 %v1020, %v1037
        %s1042 = sld [smem:[#allocation5 + $0x47]]
        %v1043 = vstv %s1042
        %v1044 = vmul.f32 %v1043, %v735
        %v1045 = vmul.f32 %v1043, %v736
        %v1046 = vmul.f32 %v1043, %v737
        %v1050 = vrot.slane %v1044, 3
        %v1051 = vrot.slane %v1045, 3
        %v1052 = vsel %vm671, %v1050, %v1051
        %v1053 = vrot.slane %v1046, 3
        %v1054 = vsel %vm671, %v1051, %v1053
        %1055 = vrot.lane.b32.xlu0 %v1052, 127
        %v1056 = vpop.permute.xlu0 %1055
        %1057 = vrot.lane.b32.xlu0 %v1054, 127
        %v1058 = vpop.permute.xlu0 %1057
        %v1061 = vadd.f32 %v1040, %v1056
        %v1062 = vadd.f32 %v1041, %v1058
        %s1063 = sld [smem:[#allocation5 + $0x4e]]
        %v1064 = vstv %s1063
        %v1065 = vmul.f32 %v1064, %v735
        %v1066 = vmul.f32 %v1064, %v736
        %v1067 = vmul.f32 %v1064, %v737
        %v1071 = vrot.slane %v1065, 4
        %v1072 = vrot.slane %v1066, 4
        %v1073 = vsel %vm689, %v1071, %v1072
        %v1074 = vrot.slane %v1067, 4
        %v1075 = vsel %vm689, %v1072, %v1074
        %1076 = vrot.lane.b32.xlu0 %v1073, 127
        %v1077 = vpop.permute.xlu0 %1076
        %1078 = vrot.lane.b32.xlu0 %v1075, 127
        %v1079 = vpop.permute.xlu0 %1078
        %v1082 = vadd.f32 %v1061, %v1077
        %v1083 = vadd.f32 %v1062, %v1079
        %s1084 = sld [smem:[#allocation5 + $0x55]]
        %v1085 = vstv %s1084
        %v1086 = vmul.f32 %v1085, %v735
        %v1087 = vmul.f32 %v1085, %v736
        %v1088 = vmul.f32 %v1085, %v737
        %v1092 = vrot.slane %v1086, 5
        %v1093 = vrot.slane %v1087, 5
        %v1094 = vsel %vm707, %v1092, %v1093
        %v1095 = vrot.slane %v1088, 5
        %v1096 = vsel %vm707, %v1093, %v1095
        %1097 = vrot.lane.b32.xlu0 %v1094, 127
        %v1098 = vpop.permute.xlu0 %1097
        %1099 = vrot.lane.b32.xlu0 %v1096, 127
        %v1100 = vpop.permute.xlu0 %1099
        %v1103 = vadd.f32 %v1082, %v1098
        %v1104 = vadd.f32 %v1083, %v1100
        %s1105 = sld [smem:[#allocation5 + $0x5c]]
        %v1106 = vstv %s1105
        %v1107 = vmul.f32 %v1106, %v735
        %v1108 = vmul.f32 %v1106, %v736
        %v1109 = vmul.f32 %v1106, %v737
        %v1113 = vrot.slane %v1107, 6
        %v1114 = vrot.slane %v1108, 6
        %v1115 = vsel %vm725, %v1113, %v1114
        %v1116 = vrot.slane %v1109, 6
        %v1117 = vsel %vm725, %v1114, %v1116
        %1118 = vrot.lane.b32.xlu0 %v1115, 127
        %v1119 = vpop.permute.xlu0 %1118
        %1120 = vrot.lane.b32.xlu0 %v1117, 127
        %v1121 = vpop.permute.xlu0 %1120
        %v1124 = vadd.f32 %v1103, %v1119
        %v1125 = vadd.f32 %v1104, %v1121
        %s1126 = sld [smem:[#allocation5 + $0x2]]
        %v1127 = vstv %s1126
        %v1128 = vmul.f32 %v1127, %v618
        %v1129 = vmul.f32 %v1127, %v619
        %1132 = vrot.lane.b32.xlu0 %v1128, 126
        %v1133 = vpop.permute.xlu0 %1132
        %1134 = vrot.lane.b32.xlu0 %v1129, 126
        %v1135 = vpop.permute.xlu0 %1134
        %v1138 = vadd.f32 %v1124, %v1133
        %v1139 = vadd.f32 %v1125, %v1135
        %s1140 = sld [smem:[#allocation5 + $0x9]]
        %v1141 = vstv %s1140
        %v1142 = vmul.f32 %v1141, %v618
        %v1143 = vmul.f32 %v1141, %v619
        %v1144 = vmul.f32 %v1141, %v620
        %v1148 = vrot.slane %v1142, 1
        %v1149 = vrot.slane %v1143, 1
        %v1150 = vsel %vm635, %v1148, %v1149
        %v1151 = vrot.slane %v1144, 1
        %v1152 = vsel %vm635, %v1149, %v1151
        %1153 = vrot.lane.b32.xlu0 %v1150, 126
        %v1154 = vpop.permute.xlu0 %1153
        %1155 = vrot.lane.b32.xlu0 %v1152, 126
        %v1156 = vpop.permute.xlu0 %1155
        %v1159 = vadd.f32 %v1138, %v1154
        %v1160 = vadd.f32 %v1139, %v1156
        %s1161 = sld [smem:[#allocation5 + $0x10]]
        %v1162 = vstv %s1161
        %v1163 = vmul.f32 %v1162, %v618
        %v1164 = vmul.f32 %v1162, %v619
        %v1165 = vmul.f32 %v1162, %v620
        %v1169 = vrot.slane %v1163, 2
        %v1170 = vrot.slane %v1164, 2
        %v1171 = vsel %vm653, %v1169, %v1170
        %v1172 = vrot.slane %v1165, 2
        %v1173 = vsel %vm653, %v1170, %v1172
        %1174 = vrot.lane.b32.xlu0 %v1171, 126
        %v1175 = vpop.permute.xlu0 %1174
        %1176 = vrot.lane.b32.xlu0 %v1173, 126
        %v1177 = vpop.permute.xlu0 %1176
        %v1180 = vadd.f32 %v1159, %v1175
        %v1181 = vadd.f32 %v1160, %v1177
        %s1182 = sld [smem:[#allocation5 + $0x17]]
        %v1183 = vstv %s1182
        %v1184 = vmul.f32 %v1183, %v618
        %v1185 = vmul.f32 %v1183, %v619
        %v1186 = vmul.f32 %v1183, %v620
        %v1190 = vrot.slane %v1184, 3
        %v1191 = vrot.slane %v1185, 3
        %v1192 = vsel %vm671, %v1190, %v1191
        %v1193 = vrot.slane %v1186, 3
        %v1194 = vsel %vm671, %v1191, %v1193
        %1195 = vrot.lane.b32.xlu0 %v1192, 126
        %v1196 = vpop.permute.xlu0 %1195
        %1197 = vrot.lane.b32.xlu0 %v1194, 126
        %v1198 = vpop.permute.xlu0 %1197
        %v1201 = vadd.f32 %v1180, %v1196
        %v1202 = vadd.f32 %v1181, %v1198
        %s1203 = sld [smem:[#allocation5 + $0x1e]]
        %v1204 = vstv %s1203
        %v1205 = vmul.f32 %v1204, %v618
        %v1206 = vmul.f32 %v1204, %v619
        %v1207 = vmul.f32 %v1204, %v620
        %v1211 = vrot.slane %v1205, 4
        %v1212 = vrot.slane %v1206, 4
        %v1213 = vsel %vm689, %v1211, %v1212
        %v1214 = vrot.slane %v1207, 4
        %v1215 = vsel %vm689, %v1212, %v1214
        %1216 = vrot.lane.b32.xlu0 %v1213, 126
        %v1217 = vpop.permute.xlu0 %1216
        %1218 = vrot.lane.b32.xlu0 %v1215, 126
        %v1219 = vpop.permute.xlu0 %1218
        %v1222 = vadd.f32 %v1201, %v1217
        %v1223 = vadd.f32 %v1202, %v1219
        %s1224 = sld [smem:[#allocation5 + $0x25]]
        %v1225 = vstv %s1224
        %v1226 = vmul.f32 %v1225, %v618
        %v1227 = vmul.f32 %v1225, %v619
        %v1228 = vmul.f32 %v1225, %v620
        %v1232 = vrot.slane %v1226, 5
        %v1233 = vrot.slane %v1227, 5
        %v1234 = vsel %vm707, %v1232, %v1233
        %v1235 = vrot.slane %v1228, 5
        %v1236 = vsel %vm707, %v1233, %v1235
        %1237 = vrot.lane.b32.xlu0 %v1234, 126
        %v1238 = vpop.permute.xlu0 %1237
        %1239 = vrot.lane.b32.xlu0 %v1236, 126
        %v1240 = vpop.permute.xlu0 %1239
        %v1243 = vadd.f32 %v1222, %v1238
        %v1244 = vadd.f32 %v1223, %v1240
        %s1245 = sld [smem:[#allocation5 + $0x2c]]
        %v1246 = vstv %s1245
        %v1247 = vmul.f32 %v1246, %v618
        %v1248 = vmul.f32 %v1246, %v619
        %v1249 = vmul.f32 %v1246, %v620
        %v1253 = vrot.slane %v1247, 6
        %v1254 = vrot.slane %v1248, 6
        %v1255 = vsel %vm725, %v1253, %v1254
        %v1256 = vrot.slane %v1249, 6
        %v1257 = vsel %vm725, %v1254, %v1256
        %1258 = vrot.lane.b32.xlu0 %v1255, 126
        %v1259 = vpop.permute.xlu0 %1258
        %1260 = vrot.lane.b32.xlu0 %v1257, 126
        %v1261 = vpop.permute.xlu0 %1260
        %v1264 = vadd.f32 %v1243, %v1259
        %v1265 = vadd.f32 %v1244, %v1261
        %s1266 = sld [smem:[#allocation5 + $0x33]]
        %v1267 = vstv %s1266
        %v1268 = vmul.f32 %v1267, %v735
        %v1269 = vmul.f32 %v1267, %v736
        %1272 = vrot.lane.b32.xlu0 %v1268, 126
        %v1273 = vpop.permute.xlu0 %1272
        %1274 = vrot.lane.b32.xlu0 %v1269, 126
        %v1275 = vpop.permute.xlu0 %1274
        %v1278 = vadd.f32 %v1264, %v1273
        %v1279 = vadd.f32 %v1265, %v1275
        %s1280 = sld [smem:[#allocation5 + $0x3a]]
        %v1281 = vstv %s1280
        %v1282 = vmul.f32 %v1281, %v735
        %v1283 = vmul.f32 %v1281, %v736
        %v1284 = vmul.f32 %v1281, %v737
        %v1288 = vrot.slane %v1282, 1
        %v1289 = vrot.slane %v1283, 1
        %v1290 = vsel %vm635, %v1288, %v1289
        %v1291 = vrot.slane %v1284, 1
        %v1292 = vsel %vm635, %v1289, %v1291
        %1293 = vrot.lane.b32.xlu0 %v1290, 126
        %v1294 = vpop.permute.xlu0 %1293
        %1295 = vrot.lane.b32.xlu0 %v1292, 126
        %v1296 = vpop.permute.xlu0 %1295
        %v1299 = vadd.f32 %v1278, %v1294
        %v1300 = vadd.f32 %v1279, %v1296
        %s1301 = sld [smem:[#allocation5 + $0x41]]
        %v1302 = vstv %s1301
        %v1303 = vmul.f32 %v1302, %v735
        %v1304 = vmul.f32 %v1302, %v736
        %v1305 = vmul.f32 %v1302, %v737
        %v1309 = vrot.slane %v1303, 2
        %v1310 = vrot.slane %v1304, 2
        %v1311 = vsel %vm653, %v1309, %v1310
        %v1312 = vrot.slane %v1305, 2
        %v1313 = vsel %vm653, %v1310, %v1312
        %1314 = vrot.lane.b32.xlu0 %v1311, 126
        %v1315 = vpop.permute.xlu0 %1314
        %1316 = vrot.lane.b32.xlu0 %v1313, 126
        %v1317 = vpop.permute.xlu0 %1316
        %v1320 = vadd.f32 %v1299, %v1315
        %v1321 = vadd.f32 %v1300, %v1317
        %s1322 = sld [smem:[#allocation5 + $0x48]]
        %v1323 = vstv %s1322
        %v1324 = vmul.f32 %v1323, %v735
        %v1325 = vmul.f32 %v1323, %v736
        %v1326 = vmul.f32 %v1323, %v737
        %v1330 = vrot.slane %v1324, 3
        %v1331 = vrot.slane %v1325, 3
        %v1332 = vsel %vm671, %v1330, %v1331
        %v1333 = vrot.slane %v1326, 3
        %v1334 = vsel %vm671, %v1331, %v1333
        %1335 = vrot.lane.b32.xlu0 %v1332, 126
        %v1336 = vpop.permute.xlu0 %1335
        %1337 = vrot.lane.b32.xlu0 %v1334, 126
        %v1338 = vpop.permute.xlu0 %1337
        %v1341 = vadd.f32 %v1320, %v1336
        %v1342 = vadd.f32 %v1321, %v1338
        %s1343 = sld [smem:[#allocation5 + $0x4f]]
        %v1344 = vstv %s1343
        %v1345 = vmul.f32 %v1344, %v735
        %v1346 = vmul.f32 %v1344, %v736
        %v1347 = vmul.f32 %v1344, %v737
        %v1351 = vrot.slane %v1345, 4
        %v1352 = vrot.slane %v1346, 4
        %v1353 = vsel %vm689, %v1351, %v1352
        %v1354 = vrot.slane %v1347, 4
        %v1355 = vsel %vm689, %v1352, %v1354
        %1356 = vrot.lane.b32.xlu0 %v1353, 126
        %v1357 = vpop.permute.xlu0 %1356
        %1358 = vrot.lane.b32.xlu0 %v1355, 126
        %v1359 = vpop.permute.xlu0 %1358
        %v1362 = vadd.f32 %v1341, %v1357
        %v1363 = vadd.f32 %v1342, %v1359
        %s1364 = sld [smem:[#allocation5 + $0x56]]
        %v1365 = vstv %s1364
        %v1366 = vmul.f32 %v1365, %v735
        %v1367 = vmul.f32 %v1365, %v736
        %v1368 = vmul.f32 %v1365, %v737
        %v1372 = vrot.slane %v1366, 5
        %v1373 = vrot.slane %v1367, 5
        %v1374 = vsel %vm707, %v1372, %v1373
        %v1375 = vrot.slane %v1368, 5
        %v1376 = vsel %vm707, %v1373, %v1375
        %1377 = vrot.lane.b32.xlu0 %v1374, 126
        %v1378 = vpop.permute.xlu0 %1377
        %1379 = vrot.lane.b32.xlu0 %v1376, 126
        %v1380 = vpop.permute.xlu0 %1379
        %v1383 = vadd.f32 %v1362, %v1378
        %v1384 = vadd.f32 %v1363, %v1380
        %s1385 = sld [smem:[#allocation5 + $0x5d]]
        %v1386 = vstv %s1385
        %v1387 = vmul.f32 %v1386, %v735
        %v1388 = vmul.f32 %v1386, %v736
        %v1389 = vmul.f32 %v1386, %v737
        %v1393 = vrot.slane %v1387, 6
        %v1394 = vrot.slane %v1388, 6
        %v1395 = vsel %vm725, %v1393, %v1394
        %v1396 = vrot.slane %v1389, 6
        %v1397 = vsel %vm725, %v1394, %v1396
        %1398 = vrot.lane.b32.xlu0 %v1395, 126
        %v1399 = vpop.permute.xlu0 %1398
        %1400 = vrot.lane.b32.xlu0 %v1397, 126
        %v1401 = vpop.permute.xlu0 %1400
        %v1404 = vadd.f32 %v1383, %v1399
        %v1405 = vadd.f32 %v1384, %v1401
        %s1406 = sld [smem:[#allocation5 + $0x3]]
        %v1407 = vstv %s1406
        %v1408 = vmul.f32 %v1407, %v618
        %v1409 = vmul.f32 %v1407, %v619
        %1412 = vrot.lane.b32.xlu0 %v1408, 125
        %v1413 = vpop.permute.xlu0 %1412
        %1414 = vrot.lane.b32.xlu0 %v1409, 125
        %v1415 = vpop.permute.xlu0 %1414
        %v1418 = vadd.f32 %v1404, %v1413
        %v1419 = vadd.f32 %v1405, %v1415
        %s1420 = sld [smem:[#allocation5 + $0xa]]
        %v1421 = vstv %s1420
        %v1422 = vmul.f32 %v1421, %v618
        %v1423 = vmul.f32 %v1421, %v619
        %v1424 = vmul.f32 %v1421, %v620
        %v1428 = vrot.slane %v1422, 1
        %v1429 = vrot.slane %v1423, 1
        %v1430 = vsel %vm635, %v1428, %v1429
        %v1431 = vrot.slane %v1424, 1
        %v1432 = vsel %vm635, %v1429, %v1431
        %1433 = vrot.lane.b32.xlu0 %v1430, 125
        %v1434 = vpop.permute.xlu0 %1433
        %1435 = vrot.lane.b32.xlu0 %v1432, 125
        %v1436 = vpop.permute.xlu0 %1435
        %v1439 = vadd.f32 %v1418, %v1434
        %v1440 = vadd.f32 %v1419, %v1436
        %s1441 = sld [smem:[#allocation5 + $0x11]]
        %v1442 = vstv %s1441
        %v1443 = vmul.f32 %v1442, %v618
        %v1444 = vmul.f32 %v1442, %v619
        %v1445 = vmul.f32 %v1442, %v620
        %v1449 = vrot.slane %v1443, 2
        %v1450 = vrot.slane %v1444, 2
        %v1451 = vsel %vm653, %v1449, %v1450
        %v1452 = vrot.slane %v1445, 2
        %v1453 = vsel %vm653, %v1450, %v1452
        %1454 = vrot.lane.b32.xlu0 %v1451, 125
        %v1455 = vpop.permute.xlu0 %1454
        %1456 = vrot.lane.b32.xlu0 %v1453, 125
        %v1457 = vpop.permute.xlu0 %1456
        %v1460 = vadd.f32 %v1439, %v1455
        %v1461 = vadd.f32 %v1440, %v1457
        %s1462 = sld [smem:[#allocation5 + $0x18]]
        %v1463 = vstv %s1462
        %v1464 = vmul.f32 %v1463, %v618
        %v1465 = vmul.f32 %v1463, %v619
        %v1466 = vmul.f32 %v1463, %v620
        %v1470 = vrot.slane %v1464, 3
        %v1471 = vrot.slane %v1465, 3
        %v1472 = vsel %vm671, %v1470, %v1471
        %v1473 = vrot.slane %v1466, 3
        %v1474 = vsel %vm671, %v1471, %v1473
        %1475 = vrot.lane.b32.xlu0 %v1472, 125
        %v1476 = vpop.permute.xlu0 %1475
        %1477 = vrot.lane.b32.xlu0 %v1474, 125
        %v1478 = vpop.permute.xlu0 %1477
        %v1481 = vadd.f32 %v1460, %v1476
        %v1482 = vadd.f32 %v1461, %v1478
        %s1483 = sld [smem:[#allocation5 + $0x1f]]
        %v1484 = vstv %s1483
        %v1485 = vmul.f32 %v1484, %v618
        %v1486 = vmul.f32 %v1484, %v619
        %v1487 = vmul.f32 %v1484, %v620
        %v1491 = vrot.slane %v1485, 4
        %v1492 = vrot.slane %v1486, 4
        %v1493 = vsel %vm689, %v1491, %v1492
        %v1494 = vrot.slane %v1487, 4
        %v1495 = vsel %vm689, %v1492, %v1494
        %1496 = vrot.lane.b32.xlu0 %v1493, 125
        %v1497 = vpop.permute.xlu0 %1496
        %1498 = vrot.lane.b32.xlu0 %v1495, 125
        %v1499 = vpop.permute.xlu0 %1498
        %v1502 = vadd.f32 %v1481, %v1497
        %v1503 = vadd.f32 %v1482, %v1499
        %s1504 = sld [smem:[#allocation5 + $0x26]]
        %v1505 = vstv %s1504
        %v1506 = vmul.f32 %v1505, %v618
        %v1507 = vmul.f32 %v1505, %v619
        %v1508 = vmul.f32 %v1505, %v620
        %v1512 = vrot.slane %v1506, 5
        %v1513 = vrot.slane %v1507, 5
        %v1514 = vsel %vm707, %v1512, %v1513
        %v1515 = vrot.slane %v1508, 5
        %v1516 = vsel %vm707, %v1513, %v1515
        %1517 = vrot.lane.b32.xlu0 %v1514, 125
        %v1518 = vpop.permute.xlu0 %1517
        %1519 = vrot.lane.b32.xlu0 %v1516, 125
        %v1520 = vpop.permute.xlu0 %1519
        %v1523 = vadd.f32 %v1502, %v1518
        %v1524 = vadd.f32 %v1503, %v1520
        %s1525 = sld [smem:[#allocation5 + $0x2d]]
        %v1526 = vstv %s1525
        %v1527 = vmul.f32 %v1526, %v618
        %v1528 = vmul.f32 %v1526, %v619
        %v1529 = vmul.f32 %v1526, %v620
        %v1533 = vrot.slane %v1527, 6
        %v1534 = vrot.slane %v1528, 6
        %v1535 = vsel %vm725, %v1533, %v1534
        %v1536 = vrot.slane %v1529, 6
        %v1537 = vsel %vm725, %v1534, %v1536
        %1538 = vrot.lane.b32.xlu0 %v1535, 125
        %v1539 = vpop.permute.xlu0 %1538
        %1540 = vrot.lane.b32.xlu0 %v1537, 125
        %v1541 = vpop.permute.xlu0 %1540
        %v1544 = vadd.f32 %v1523, %v1539
        %v1545 = vadd.f32 %v1524, %v1541
        %s1546 = sld [smem:[#allocation5 + $0x34]]
        %v1547 = vstv %s1546
        %v1548 = vmul.f32 %v1547, %v735
        %v1549 = vmul.f32 %v1547, %v736
        %1552 = vrot.lane.b32.xlu0 %v1548, 125
        %v1553 = vpop.permute.xlu0 %1552
        %1554 = vrot.lane.b32.xlu0 %v1549, 125
        %v1555 = vpop.permute.xlu0 %1554
        %v1558 = vadd.f32 %v1544, %v1553
        %v1559 = vadd.f32 %v1545, %v1555
        %s1560 = sld [smem:[#allocation5 + $0x3b]]
        %v1561 = vstv %s1560
        %v1562 = vmul.f32 %v1561, %v735
        %v1563 = vmul.f32 %v1561, %v736
        %v1564 = vmul.f32 %v1561, %v737
        %v1568 = vrot.slane %v1562, 1
        %v1569 = vrot.slane %v1563, 1
        %v1570 = vsel %vm635, %v1568, %v1569
        %v1571 = vrot.slane %v1564, 1
        %v1572 = vsel %vm635, %v1569, %v1571
        %1573 = vrot.lane.b32.xlu0 %v1570, 125
        %v1574 = vpop.permute.xlu0 %1573
        %1575 = vrot.lane.b32.xlu0 %v1572, 125
        %v1576 = vpop.permute.xlu0 %1575
        %v1579 = vadd.f32 %v1558, %v1574
        %v1580 = vadd.f32 %v1559, %v1576
        %s1581 = sld [smem:[#allocation5 + $0x42]]
        %v1582 = vstv %s1581
        %v1583 = vmul.f32 %v1582, %v735
        %v1584 = vmul.f32 %v1582, %v736
        %v1585 = vmul.f32 %v1582, %v737
        %v1589 = vrot.slane %v1583, 2
        %v1590 = vrot.slane %v1584, 2
        %v1591 = vsel %vm653, %v1589, %v1590
        %v1592 = vrot.slane %v1585, 2
        %v1593 = vsel %vm653, %v1590, %v1592
        %1594 = vrot.lane.b32.xlu0 %v1591, 125
        %v1595 = vpop.permute.xlu0 %1594
        %1596 = vrot.lane.b32.xlu0 %v1593, 125
        %v1597 = vpop.permute.xlu0 %1596
        %v1600 = vadd.f32 %v1579, %v1595
        %v1601 = vadd.f32 %v1580, %v1597
        %s1602 = sld [smem:[#allocation5 + $0x49]]
        %v1603 = vstv %s1602
        %v1604 = vmul.f32 %v1603, %v735
        %v1605 = vmul.f32 %v1603, %v736
        %v1606 = vmul.f32 %v1603, %v737
        %v1610 = vrot.slane %v1604, 3
        %v1611 = vrot.slane %v1605, 3
        %v1612 = vsel %vm671, %v1610, %v1611
        %v1613 = vrot.slane %v1606, 3
        %v1614 = vsel %vm671, %v1611, %v1613
        %1615 = vrot.lane.b32.xlu0 %v1612, 125
        %v1616 = vpop.permute.xlu0 %1615
        %1617 = vrot.lane.b32.xlu0 %v1614, 125
        %v1618 = vpop.permute.xlu0 %1617
        %v1621 = vadd.f32 %v1600, %v1616
        %v1622 = vadd.f32 %v1601, %v1618
        %s1623 = sld [smem:[#allocation5 + $0x50]]
        %v1624 = vstv %s1623
        %v1625 = vmul.f32 %v1624, %v735
        %v1626 = vmul.f32 %v1624, %v736
        %v1627 = vmul.f32 %v1624, %v737
        %v1631 = vrot.slane %v1625, 4
        %v1632 = vrot.slane %v1626, 4
        %v1633 = vsel %vm689, %v1631, %v1632
        %v1634 = vrot.slane %v1627, 4
        %v1635 = vsel %vm689, %v1632, %v1634
        %1636 = vrot.lane.b32.xlu0 %v1633, 125
        %v1637 = vpop.permute.xlu0 %1636
        %1638 = vrot.lane.b32.xlu0 %v1635, 125
        %v1639 = vpop.permute.xlu0 %1638
        %v1642 = vadd.f32 %v1621, %v1637
        %v1643 = vadd.f32 %v1622, %v1639
        %s1644 = sld [smem:[#allocation5 + $0x57]]
        %v1645 = vstv %s1644
        %v1646 = vmul.f32 %v1645, %v735
        %v1647 = vmul.f32 %v1645, %v736
        %v1648 = vmul.f32 %v1645, %v737
        %v1652 = vrot.slane %v1646, 5
        %v1653 = vrot.slane %v1647, 5
        %v1654 = vsel %vm707, %v1652, %v1653
        %v1655 = vrot.slane %v1648, 5
        %v1656 = vsel %vm707, %v1653, %v1655
        %1657 = vrot.lane.b32.xlu0 %v1654, 125
        %v1658 = vpop.permute.xlu0 %1657
        %1659 = vrot.lane.b32.xlu0 %v1656, 125
        %v1660 = vpop.permute.xlu0 %1659
        %v1663 = vadd.f32 %v1642, %v1658
        %v1664 = vadd.f32 %v1643, %v1660
        %s1665 = sld [smem:[#allocation5 + $0x5e]]
        %v1666 = vstv %s1665
        %v1667 = vmul.f32 %v1666, %v735
        %v1668 = vmul.f32 %v1666, %v736
        %v1669 = vmul.f32 %v1666, %v737
        %v1673 = vrot.slane %v1667, 6
        %v1674 = vrot.slane %v1668, 6
        %v1675 = vsel %vm725, %v1673, %v1674
        %v1676 = vrot.slane %v1669, 6
        %v1677 = vsel %vm725, %v1674, %v1676
        %1678 = vrot.lane.b32.xlu0 %v1675, 125
        %v1679 = vpop.permute.xlu0 %1678
        %1680 = vrot.lane.b32.xlu0 %v1677, 125
        %v1681 = vpop.permute.xlu0 %1680
        %v1684 = vadd.f32 %v1663, %v1679
        %v1685 = vadd.f32 %v1664, %v1681
        %s1686 = sld [smem:[#allocation5 + $0x4]]
        %v1687 = vstv %s1686
        %v1688 = vmul.f32 %v1687, %v618
        %v1689 = vmul.f32 %v1687, %v619
        %1692 = vrot.lane.b32.xlu0 %v1688, 124
        %v1693 = vpop.permute.xlu0 %1692
        %1694 = vrot.lane.b32.xlu0 %v1689, 124
        %v1695 = vpop.permute.xlu0 %1694
        %v1698 = vadd.f32 %v1684, %v1693
        %v1699 = vadd.f32 %v1685, %v1695
        %s1700 = sld [smem:[#allocation5 + $0xb]]
        %v1701 = vstv %s1700
        %v1702 = vmul.f32 %v1701, %v618
        %v1703 = vmul.f32 %v1701, %v619
        %v1704 = vmul.f32 %v1701, %v620
        %v1708 = vrot.slane %v1702, 1
        %v1709 = vrot.slane %v1703, 1
        %v1710 = vsel %vm635, %v1708, %v1709
        %v1711 = vrot.slane %v1704, 1
        %v1712 = vsel %vm635, %v1709, %v1711
        %1713 = vrot.lane.b32.xlu0 %v1710, 124
        %v1714 = vpop.permute.xlu0 %1713
        %1715 = vrot.lane.b32.xlu0 %v1712, 124
        %v1716 = vpop.permute.xlu0 %1715
        %v1719 = vadd.f32 %v1698, %v1714
        %v1720 = vadd.f32 %v1699, %v1716
        %s1721 = sld [smem:[#allocation5 + $0x12]]
        %v1722 = vstv %s1721
        %v1723 = vmul.f32 %v1722, %v618
        %v1724 = vmul.f32 %v1722, %v619
        %v1725 = vmul.f32 %v1722, %v620
        %v1729 = vrot.slane %v1723, 2
        %v1730 = vrot.slane %v1724, 2
        %v1731 = vsel %vm653, %v1729, %v1730
        %v1732 = vrot.slane %v1725, 2
        %v1733 = vsel %vm653, %v1730, %v1732
        %1734 = vrot.lane.b32.xlu0 %v1731, 124
        %v1735 = vpop.permute.xlu0 %1734
        %1736 = vrot.lane.b32.xlu0 %v1733, 124
        %v1737 = vpop.permute.xlu0 %1736
        %v1740 = vadd.f32 %v1719, %v1735
        %v1741 = vadd.f32 %v1720, %v1737
        %s1742 = sld [smem:[#allocation5 + $0x19]]
        %v1743 = vstv %s1742
        %v1744 = vmul.f32 %v1743, %v618
        %v1745 = vmul.f32 %v1743, %v619
        %v1746 = vmul.f32 %v1743, %v620
        %v1750 = vrot.slane %v1744, 3
        %v1751 = vrot.slane %v1745, 3
        %v1752 = vsel %vm671, %v1750, %v1751
        %v1753 = vrot.slane %v1746, 3
        %v1754 = vsel %vm671, %v1751, %v1753
        %1755 = vrot.lane.b32.xlu0 %v1752, 124
        %v1756 = vpop.permute.xlu0 %1755
        %1757 = vrot.lane.b32.xlu0 %v1754, 124
        %v1758 = vpop.permute.xlu0 %1757
        %v1761 = vadd.f32 %v1740, %v1756
        %v1762 = vadd.f32 %v1741, %v1758
        %s1763 = sld [smem:[#allocation5 + $0x20]]
        %v1764 = vstv %s1763
        %v1765 = vmul.f32 %v1764, %v618
        %v1766 = vmul.f32 %v1764, %v619
        %v1767 = vmul.f32 %v1764, %v620
        %v1771 = vrot.slane %v1765, 4
        %v1772 = vrot.slane %v1766, 4
        %v1773 = vsel %vm689, %v1771, %v1772
        %v1774 = vrot.slane %v1767, 4
        %v1775 = vsel %vm689, %v1772, %v1774
        %1776 = vrot.lane.b32.xlu0 %v1773, 124
        %v1777 = vpop.permute.xlu0 %1776
        %1778 = vrot.lane.b32.xlu0 %v1775, 124
        %v1779 = vpop.permute.xlu0 %1778
        %v1782 = vadd.f32 %v1761, %v1777
        %v1783 = vadd.f32 %v1762, %v1779
        %s1784 = sld [smem:[#allocation5 + $0x27]]
        %v1785 = vstv %s1784
        %v1786 = vmul.f32 %v1785, %v618
        %v1787 = vmul.f32 %v1785, %v619
        %v1788 = vmul.f32 %v1785, %v620
        %v1792 = vrot.slane %v1786, 5
        %v1793 = vrot.slane %v1787, 5
        %v1794 = vsel %vm707, %v1792, %v1793
        %v1795 = vrot.slane %v1788, 5
        %v1796 = vsel %vm707, %v1793, %v1795
        %1797 = vrot.lane.b32.xlu0 %v1794, 124
        %v1798 = vpop.permute.xlu0 %1797
        %1799 = vrot.lane.b32.xlu0 %v1796, 124
        %v1800 = vpop.permute.xlu0 %1799
        %v1803 = vadd.f32 %v1782, %v1798
        %v1804 = vadd.f32 %v1783, %v1800
        %s1805 = sld [smem:[#allocation5 + $0x2e]]
        %v1806 = vstv %s1805
        %v1807 = vmul.f32 %v1806, %v618
        %v1808 = vmul.f32 %v1806, %v619
        %v1809 = vmul.f32 %v1806, %v620
        %v1813 = vrot.slane %v1807, 6
        %v1814 = vrot.slane %v1808, 6
        %v1815 = vsel %vm725, %v1813, %v1814
        %v1816 = vrot.slane %v1809, 6
        %v1817 = vsel %vm725, %v1814, %v1816
        %1818 = vrot.lane.b32.xlu0 %v1815, 124
        %v1819 = vpop.permute.xlu0 %1818
        %1820 = vrot.lane.b32.xlu0 %v1817, 124
        %v1821 = vpop.permute.xlu0 %1820
        %v1824 = vadd.f32 %v1803, %v1819
        %v1825 = vadd.f32 %v1804, %v1821
        %s1826 = sld [smem:[#allocation5 + $0x35]]
        %v1827 = vstv %s1826
        %v1828 = vmul.f32 %v1827, %v735
        %v1829 = vmul.f32 %v1827, %v736
        %1832 = vrot.lane.b32.xlu0 %v1828, 124
        %v1833 = vpop.permute.xlu0 %1832
        %1834 = vrot.lane.b32.xlu0 %v1829, 124
        %v1835 = vpop.permute.xlu0 %1834
        %v1838 = vadd.f32 %v1824, %v1833
        %v1839 = vadd.f32 %v1825, %v1835
        %s1840 = sld [smem:[#allocation5 + $0x3c]]
        %v1841 = vstv %s1840
        %v1842 = vmul.f32 %v1841, %v735
        %v1843 = vmul.f32 %v1841, %v736
        %v1844 = vmul.f32 %v1841, %v737
        %v1848 = vrot.slane %v1842, 1
        %v1849 = vrot.slane %v1843, 1
        %v1850 = vsel %vm635, %v1848, %v1849
        %v1851 = vrot.slane %v1844, 1
        %v1852 = vsel %vm635, %v1849, %v1851
        %1853 = vrot.lane.b32.xlu0 %v1850, 124
        %v1854 = vpop.permute.xlu0 %1853
        %1855 = vrot.lane.b32.xlu0 %v1852, 124
        %v1856 = vpop.permute.xlu0 %1855
        %v1859 = vadd.f32 %v1838, %v1854
        %v1860 = vadd.f32 %v1839, %v1856
        %s1861 = sld [smem:[#allocation5 + $0x43]]
        %v1862 = vstv %s1861
        %v1863 = vmul.f32 %v1862, %v735
        %v1864 = vmul.f32 %v1862, %v736
        %v1865 = vmul.f32 %v1862, %v737
        %v1869 = vrot.slane %v1863, 2
        %v1870 = vrot.slane %v1864, 2
        %v1871 = vsel %vm653, %v1869, %v1870
        %v1872 = vrot.slane %v1865, 2
        %v1873 = vsel %vm653, %v1870, %v1872
        %1874 = vrot.lane.b32.xlu0 %v1871, 124
        %v1875 = vpop.permute.xlu0 %1874
        %1876 = vrot.lane.b32.xlu0 %v1873, 124
        %v1877 = vpop.permute.xlu0 %1876
        %v1880 = vadd.f32 %v1859, %v1875
        %v1881 = vadd.f32 %v1860, %v1877
        %s1882 = sld [smem:[#allocation5 + $0x4a]]
        %v1883 = vstv %s1882
        %v1884 = vmul.f32 %v1883, %v735
        %v1885 = vmul.f32 %v1883, %v736
        %v1886 = vmul.f32 %v1883, %v737
        %v1890 = vrot.slane %v1884, 3
        %v1891 = vrot.slane %v1885, 3
        %v1892 = vsel %vm671, %v1890, %v1891
        %v1893 = vrot.slane %v1886, 3
        %v1894 = vsel %vm671, %v1891, %v1893
        %1895 = vrot.lane.b32.xlu0 %v1892, 124
        %v1896 = vpop.permute.xlu0 %1895
        %1897 = vrot.lane.b32.xlu0 %v1894, 124
        %v1898 = vpop.permute.xlu0 %1897
        %v1901 = vadd.f32 %v1880, %v1896
        %v1902 = vadd.f32 %v1881, %v1898
        %s1903 = sld [smem:[#allocation5 + $0x51]]
        %v1904 = vstv %s1903
        %v1905 = vmul.f32 %v1904, %v735
        %v1906 = vmul.f32 %v1904, %v736
        %v1907 = vmul.f32 %v1904, %v737
        %v1911 = vrot.slane %v1905, 4
        %v1912 = vrot.slane %v1906, 4
        %v1913 = vsel %vm689, %v1911, %v1912
        %v1914 = vrot.slane %v1907, 4
        %v1915 = vsel %vm689, %v1912, %v1914
        %1916 = vrot.lane.b32.xlu0 %v1913, 124
        %v1917 = vpop.permute.xlu0 %1916
        %1918 = vrot.lane.b32.xlu0 %v1915, 124
        %v1919 = vpop.permute.xlu0 %1918
        %v1922 = vadd.f32 %v1901, %v1917
        %v1923 = vadd.f32 %v1902, %v1919
        %s1924 = sld [smem:[#allocation5 + $0x58]]
        %v1925 = vstv %s1924
        %v1926 = vmul.f32 %v1925, %v735
        %v1927 = vmul.f32 %v1925, %v736
        %v1928 = vmul.f32 %v1925, %v737
        %v1932 = vrot.slane %v1926, 5
        %v1933 = vrot.slane %v1927, 5
        %v1934 = vsel %vm707, %v1932, %v1933
        %v1935 = vrot.slane %v1928, 5
        %v1936 = vsel %vm707, %v1933, %v1935
        %1937 = vrot.lane.b32.xlu0 %v1934, 124
        %v1938 = vpop.permute.xlu0 %1937
        %1939 = vrot.lane.b32.xlu0 %v1936, 124
        %v1940 = vpop.permute.xlu0 %1939
        %v1943 = vadd.f32 %v1922, %v1938
        %v1944 = vadd.f32 %v1923, %v1940
        %s1945 = sld [smem:[#allocation5 + $0x5f]]
        %v1946 = vstv %s1945
        %v1947 = vmul.f32 %v1946, %v735
        %v1948 = vmul.f32 %v1946, %v736
        %v1949 = vmul.f32 %v1946, %v737
        %v1953 = vrot.slane %v1947, 6
        %v1954 = vrot.slane %v1948, 6
        %v1955 = vsel %vm725, %v1953, %v1954
        %v1956 = vrot.slane %v1949, 6
        %v1957 = vsel %vm725, %v1954, %v1956
        %1958 = vrot.lane.b32.xlu0 %v1955, 124
        %v1959 = vpop.permute.xlu0 %1958
        %1960 = vrot.lane.b32.xlu0 %v1957, 124
        %v1961 = vpop.permute.xlu0 %1960
        %v1964 = vadd.f32 %v1943, %v1959
        %v1965 = vadd.f32 %v1944, %v1961
        %s1966 = sld [smem:[#allocation5 + $0x5]]
        %v1967 = vstv %s1966
        %v1968 = vmul.f32 %v1967, %v618
        %v1969 = vmul.f32 %v1967, %v619
        %1972 = vrot.lane.b32.xlu0 %v1968, 123
        %v1973 = vpop.permute.xlu0 %1972
        %1974 = vrot.lane.b32.xlu0 %v1969, 123
        %v1975 = vpop.permute.xlu0 %1974
        %v1978 = vadd.f32 %v1964, %v1973
        %v1979 = vadd.f32 %v1965, %v1975
        %s1980 = sld [smem:[#allocation5 + $0xc]]
        %v1981 = vstv %s1980
        %v1982 = vmul.f32 %v1981, %v618
        %v1983 = vmul.f32 %v1981, %v619
        %v1984 = vmul.f32 %v1981, %v620
        %v1988 = vrot.slane %v1982, 1
        %v1989 = vrot.slane %v1983, 1
        %v1990 = vsel %vm635, %v1988, %v1989
        %v1991 = vrot.slane %v1984, 1
        %v1992 = vsel %vm635, %v1989, %v1991
        %1993 = vrot.lane.b32.xlu0 %v1990, 123
        %v1994 = vpop.permute.xlu0 %1993
        %1995 = vrot.lane.b32.xlu0 %v1992, 123
        %v1996 = vpop.permute.xlu0 %1995
        %v1999 = vadd.f32 %v1978, %v1994
        %v2000 = vadd.f32 %v1979, %v1996
        %s2001 = sld [smem:[#allocation5 + $0x13]]
        %v2002 = vstv %s2001
        %v2003 = vmul.f32 %v2002, %v618
        %v2004 = vmul.f32 %v2002, %v619
        %v2005 = vmul.f32 %v2002, %v620
        %v2009 = vrot.slane %v2003, 2
        %v2010 = vrot.slane %v2004, 2
        %v2011 = vsel %vm653, %v2009, %v2010
        %v2012 = vrot.slane %v2005, 2
        %v2013 = vsel %vm653, %v2010, %v2012
        %2014 = vrot.lane.b32.xlu0 %v2011, 123
        %v2015 = vpop.permute.xlu0 %2014
        %2016 = vrot.lane.b32.xlu0 %v2013, 123
        %v2017 = vpop.permute.xlu0 %2016
        %v2020 = vadd.f32 %v1999, %v2015
        %v2021 = vadd.f32 %v2000, %v2017
        %s2022 = sld [smem:[#allocation5 + $0x1a]]
        %v2023 = vstv %s2022
        %v2024 = vmul.f32 %v2023, %v618
        %v2025 = vmul.f32 %v2023, %v619
        %v2026 = vmul.f32 %v2023, %v620
        %v2030 = vrot.slane %v2024, 3
        %v2031 = vrot.slane %v2025, 3
        %v2032 = vsel %vm671, %v2030, %v2031
        %v2033 = vrot.slane %v2026, 3
        %v2034 = vsel %vm671, %v2031, %v2033
        %2035 = vrot.lane.b32.xlu0 %v2032, 123
        %v2036 = vpop.permute.xlu0 %2035
        %2037 = vrot.lane.b32.xlu0 %v2034, 123
        %v2038 = vpop.permute.xlu0 %2037
        %v2041 = vadd.f32 %v2020, %v2036
        %v2042 = vadd.f32 %v2021, %v2038
        %s2043 = sld [smem:[#allocation5 + $0x21]]
        %v2044 = vstv %s2043
        %v2045 = vmul.f32 %v2044, %v618
        %v2046 = vmul.f32 %v2044, %v619
        %v2047 = vmul.f32 %v2044, %v620
        %v2051 = vrot.slane %v2045, 4
        %v2052 = vrot.slane %v2046, 4
        %v2053 = vsel %vm689, %v2051, %v2052
        %v2054 = vrot.slane %v2047, 4
        %v2055 = vsel %vm689, %v2052, %v2054
        %2056 = vrot.lane.b32.xlu0 %v2053, 123
        %v2057 = vpop.permute.xlu0 %2056
        %2058 = vrot.lane.b32.xlu0 %v2055, 123
        %v2059 = vpop.permute.xlu0 %2058
        %v2062 = vadd.f32 %v2041, %v2057
        %v2063 = vadd.f32 %v2042, %v2059
        %s2064 = sld [smem:[#allocation5 + $0x28]]
        %v2065 = vstv %s2064
        %v2066 = vmul.f32 %v2065, %v618
        %v2067 = vmul.f32 %v2065, %v619
        %v2068 = vmul.f32 %v2065, %v620
        %v2072 = vrot.slane %v2066, 5
        %v2073 = vrot.slane %v2067, 5
        %v2074 = vsel %vm707, %v2072, %v2073
        %v2075 = vrot.slane %v2068, 5
        %v2076 = vsel %vm707, %v2073, %v2075
        %2077 = vrot.lane.b32.xlu0 %v2074, 123
        %v2078 = vpop.permute.xlu0 %2077
        %2079 = vrot.lane.b32.xlu0 %v2076, 123
        %v2080 = vpop.permute.xlu0 %2079
        %v2083 = vadd.f32 %v2062, %v2078
        %v2084 = vadd.f32 %v2063, %v2080
        %s2085 = sld [smem:[#allocation5 + $0x2f]]
        %v2086 = vstv %s2085
        %v2087 = vmul.f32 %v2086, %v618
        %v2088 = vmul.f32 %v2086, %v619
        %v2089 = vmul.f32 %v2086, %v620
        %v2093 = vrot.slane %v2087, 6
        %v2094 = vrot.slane %v2088, 6
        %v2095 = vsel %vm725, %v2093, %v2094
        %v2096 = vrot.slane %v2089, 6
        %v2097 = vsel %vm725, %v2094, %v2096
        %2098 = vrot.lane.b32.xlu0 %v2095, 123
        %v2099 = vpop.permute.xlu0 %2098
        %2100 = vrot.lane.b32.xlu0 %v2097, 123
        %v2101 = vpop.permute.xlu0 %2100
        %v2104 = vadd.f32 %v2083, %v2099
        %v2105 = vadd.f32 %v2084, %v2101
        %s2106 = sld [smem:[#allocation5 + $0x36]]
        %v2107 = vstv %s2106
        %v2108 = vmul.f32 %v2107, %v735
        %v2109 = vmul.f32 %v2107, %v736
        %2112 = vrot.lane.b32.xlu0 %v2108, 123
        %v2113 = vpop.permute.xlu0 %2112
        %2114 = vrot.lane.b32.xlu0 %v2109, 123
        %v2115 = vpop.permute.xlu0 %2114
        %v2118 = vadd.f32 %v2104, %v2113
        %v2119 = vadd.f32 %v2105, %v2115
        %s2120 = sld [smem:[#allocation5 + $0x3d]]
        %v2121 = vstv %s2120
        %v2122 = vmul.f32 %v2121, %v735
        %v2123 = vmul.f32 %v2121, %v736
        %v2124 = vmul.f32 %v2121, %v737
        %v2128 = vrot.slane %v2122, 1
        %v2129 = vrot.slane %v2123, 1
        %v2130 = vsel %vm635, %v2128, %v2129
        %v2131 = vrot.slane %v2124, 1
        %v2132 = vsel %vm635, %v2129, %v2131
        %2133 = vrot.lane.b32.xlu0 %v2130, 123
        %v2134 = vpop.permute.xlu0 %2133
        %2135 = vrot.lane.b32.xlu0 %v2132, 123
        %v2136 = vpop.permute.xlu0 %2135
        %v2139 = vadd.f32 %v2118, %v2134
        %v2140 = vadd.f32 %v2119, %v2136
        %s2141 = sld [smem:[#allocation5 + $0x44]]
        %v2142 = vstv %s2141
        %v2143 = vmul.f32 %v2142, %v735
        %v2144 = vmul.f32 %v2142, %v736
        %v2145 = vmul.f32 %v2142, %v737
        %v2149 = vrot.slane %v2143, 2
        %v2150 = vrot.slane %v2144, 2
        %v2151 = vsel %vm653, %v2149, %v2150
        %v2152 = vrot.slane %v2145, 2
        %v2153 = vsel %vm653, %v2150, %v2152
        %2154 = vrot.lane.b32.xlu0 %v2151, 123
        %v2155 = vpop.permute.xlu0 %2154
        %2156 = vrot.lane.b32.xlu0 %v2153, 123
        %v2157 = vpop.permute.xlu0 %2156
        %v2160 = vadd.f32 %v2139, %v2155
        %v2161 = vadd.f32 %v2140, %v2157
        %s2162 = sld [smem:[#allocation5 + $0x4b]]
        %v2163 = vstv %s2162
        %v2164 = vmul.f32 %v2163, %v735
        %v2165 = vmul.f32 %v2163, %v736
        %v2166 = vmul.f32 %v2163, %v737
        %v2170 = vrot.slane %v2164, 3
        %v2171 = vrot.slane %v2165, 3
        %v2172 = vsel %vm671, %v2170, %v2171
        %v2173 = vrot.slane %v2166, 3
        %v2174 = vsel %vm671, %v2171, %v2173
        %2175 = vrot.lane.b32.xlu0 %v2172, 123
        %v2176 = vpop.permute.xlu0 %2175
        %2177 = vrot.lane.b32.xlu0 %v2174, 123
        %v2178 = vpop.permute.xlu0 %2177
        %v2181 = vadd.f32 %v2160, %v2176
        %v2182 = vadd.f32 %v2161, %v2178
        %s2183 = sld [smem:[#allocation5 + $0x52]]
        %v2184 = vstv %s2183
        %v2185 = vmul.f32 %v2184, %v735
        %v2186 = vmul.f32 %v2184, %v736
        %v2187 = vmul.f32 %v2184, %v737
        %v2191 = vrot.slane %v2185, 4
        %v2192 = vrot.slane %v2186, 4
        %v2193 = vsel %vm689, %v2191, %v2192
        %v2194 = vrot.slane %v2187, 4
        %v2195 = vsel %vm689, %v2192, %v2194
        %2196 = vrot.lane.b32.xlu0 %v2193, 123
        %v2197 = vpop.permute.xlu0 %2196
        %2198 = vrot.lane.b32.xlu0 %v2195, 123
        %v2199 = vpop.permute.xlu0 %2198
        %v2202 = vadd.f32 %v2181, %v2197
        %v2203 = vadd.f32 %v2182, %v2199
        %s2204 = sld [smem:[#allocation5 + $0x59]]
        %v2205 = vstv %s2204
        %v2206 = vmul.f32 %v2205, %v735
        %v2207 = vmul.f32 %v2205, %v736
        %v2208 = vmul.f32 %v2205, %v737
        %v2212 = vrot.slane %v2206, 5
        %v2213 = vrot.slane %v2207, 5
        %v2214 = vsel %vm707, %v2212, %v2213
        %v2215 = vrot.slane %v2208, 5
        %v2216 = vsel %vm707, %v2213, %v2215
        %2217 = vrot.lane.b32.xlu0 %v2214, 123
        %v2218 = vpop.permute.xlu0 %2217
        %2219 = vrot.lane.b32.xlu0 %v2216, 123
        %v2220 = vpop.permute.xlu0 %2219
        %v2223 = vadd.f32 %v2202, %v2218
        %v2224 = vadd.f32 %v2203, %v2220
        %s2225 = sld [smem:[#allocation5 + $0x60]]
        %v2226 = vstv %s2225
        %v2227 = vmul.f32 %v2226, %v735
        %v2228 = vmul.f32 %v2226, %v736
        %v2229 = vmul.f32 %v2226, %v737
        %v2233 = vrot.slane %v2227, 6
        %v2234 = vrot.slane %v2228, 6
        %v2235 = vsel %vm725, %v2233, %v2234
        %v2236 = vrot.slane %v2229, 6
        %v2237 = vsel %vm725, %v2234, %v2236
        %2238 = vrot.lane.b32.xlu0 %v2235, 123
        %v2239 = vpop.permute.xlu0 %2238
        %2240 = vrot.lane.b32.xlu0 %v2237, 123
        %v2241 = vpop.permute.xlu0 %2240
        %v2244 = vadd.f32 %v2223, %v2239
        %v2245 = vadd.f32 %v2224, %v2241
        %s2246 = sld [smem:[#allocation5 + $0x6]]
        %v2247 = vstv %s2246
        %v2248 = vmul.f32 %v2247, %v618
        %v2249 = vmul.f32 %v2247, %v619
        %2252 = vrot.lane.b32.xlu0 %v2248, 122
        %v2253 = vpop.permute.xlu0 %2252
        %2254 = vrot.lane.b32.xlu0 %v2249, 122
        %v2255 = vpop.permute.xlu0 %2254
        %v2258 = vadd.f32 %v2244, %v2253
        %v2259 = vadd.f32 %v2245, %v2255
        %s2260 = sld [smem:[#allocation5 + $0xd]]
        %v2261 = vstv %s2260
        %v2262 = vmul.f32 %v2261, %v618
        %v2263 = vmul.f32 %v2261, %v619
        %v2264 = vmul.f32 %v2261, %v620
        %v2268 = vrot.slane %v2262, 1
        %v2269 = vrot.slane %v2263, 1
        %v2270 = vsel %vm635, %v2268, %v2269
        %v2271 = vrot.slane %v2264, 1
        %v2272 = vsel %vm635, %v2269, %v2271
        %2273 = vrot.lane.b32.xlu0 %v2270, 122
        %v2274 = vpop.permute.xlu0 %2273
        %2275 = vrot.lane.b32.xlu0 %v2272, 122
        %v2276 = vpop.permute.xlu0 %2275
        %v2279 = vadd.f32 %v2258, %v2274
        %v2280 = vadd.f32 %v2259, %v2276
        %s2281 = sld [smem:[#allocation5 + $0x14]]
        %v2282 = vstv %s2281
        %v2283 = vmul.f32 %v2282, %v618
        %v2284 = vmul.f32 %v2282, %v619
        %v2285 = vmul.f32 %v2282, %v620
        %v2289 = vrot.slane %v2283, 2
        %v2290 = vrot.slane %v2284, 2
        %v2291 = vsel %vm653, %v2289, %v2290
        %v2292 = vrot.slane %v2285, 2
        %v2293 = vsel %vm653, %v2290, %v2292
        %2294 = vrot.lane.b32.xlu0 %v2291, 122
        %v2295 = vpop.permute.xlu0 %2294
        %2296 = vrot.lane.b32.xlu0 %v2293, 122
        %v2297 = vpop.permute.xlu0 %2296
        %v2300 = vadd.f32 %v2279, %v2295
        %v2301 = vadd.f32 %v2280, %v2297
        %s2302 = sld [smem:[#allocation5 + $0x1b]]
        %v2303 = vstv %s2302
        %v2304 = vmul.f32 %v2303, %v618
        %v2305 = vmul.f32 %v2303, %v619
        %v2306 = vmul.f32 %v2303, %v620
        %v2310 = vrot.slane %v2304, 3
        %v2311 = vrot.slane %v2305, 3
        %v2312 = vsel %vm671, %v2310, %v2311
        %v2313 = vrot.slane %v2306, 3
        %v2314 = vsel %vm671, %v2311, %v2313
        %2315 = vrot.lane.b32.xlu0 %v2312, 122
        %v2316 = vpop.permute.xlu0 %2315
        %2317 = vrot.lane.b32.xlu0 %v2314, 122
        %v2318 = vpop.permute.xlu0 %2317
        %v2321 = vadd.f32 %v2300, %v2316
        %v2322 = vadd.f32 %v2301, %v2318
        %s2323 = sld [smem:[#allocation5 + $0x22]]
        %v2324 = vstv %s2323
        %v2325 = vmul.f32 %v2324, %v618
        %v2326 = vmul.f32 %v2324, %v619
        %v2327 = vmul.f32 %v2324, %v620
        %v2331 = vrot.slane %v2325, 4
        %v2332 = vrot.slane %v2326, 4
        %v2333 = vsel %vm689, %v2331, %v2332
        %v2334 = vrot.slane %v2327, 4
        %v2335 = vsel %vm689, %v2332, %v2334
        %2336 = vrot.lane.b32.xlu0 %v2333, 122
        %v2337 = vpop.permute.xlu0 %2336
        %2338 = vrot.lane.b32.xlu0 %v2335, 122
        %v2339 = vpop.permute.xlu0 %2338
        %v2342 = vadd.f32 %v2321, %v2337
        %v2343 = vadd.f32 %v2322, %v2339
        %s2344 = sld [smem:[#allocation5 + $0x29]]
        %v2345 = vstv %s2344
        %v2346 = vmul.f32 %v2345, %v618
        %v2347 = vmul.f32 %v2345, %v619
        %v2348 = vmul.f32 %v2345, %v620
        %v2352 = vrot.slane %v2346, 5
        %v2353 = vrot.slane %v2347, 5
        %v2354 = vsel %vm707, %v2352, %v2353
        %v2355 = vrot.slane %v2348, 5
        %v2356 = vsel %vm707, %v2353, %v2355
        %2357 = vrot.lane.b32.xlu0 %v2354, 122
        %v2358 = vpop.permute.xlu0 %2357
        %2359 = vrot.lane.b32.xlu0 %v2356, 122
        %v2360 = vpop.permute.xlu0 %2359
        %v2363 = vadd.f32 %v2342, %v2358
        %v2364 = vadd.f32 %v2343, %v2360
        %s2365 = sld [smem:[#allocation5 + $0x30]]
        %v2366 = vstv %s2365
        %v2367 = vmul.f32 %v2366, %v618
        %v2368 = vmul.f32 %v2366, %v619
        %v2369 = vmul.f32 %v2366, %v620
        %v2373 = vrot.slane %v2367, 6
        %v2374 = vrot.slane %v2368, 6
        %v2375 = vsel %vm725, %v2373, %v2374
        %v2376 = vrot.slane %v2369, 6
        %v2377 = vsel %vm725, %v2374, %v2376
        %2378 = vrot.lane.b32.xlu0 %v2375, 122
        %v2379 = vpop.permute.xlu0 %2378
        %2380 = vrot.lane.b32.xlu0 %v2377, 122
        %v2381 = vpop.permute.xlu0 %2380
        %v2384 = vadd.f32 %v2363, %v2379
        %v2385 = vadd.f32 %v2364, %v2381
        %s2386 = sld [smem:[#allocation5 + $0x37]]
        %v2387 = vstv %s2386
        %v2388 = vmul.f32 %v2387, %v735
        %v2389 = vmul.f32 %v2387, %v736
        %2392 = vrot.lane.b32.xlu0 %v2388, 122
        %v2393 = vpop.permute.xlu0 %2392
        %2394 = vrot.lane.b32.xlu0 %v2389, 122
        %v2395 = vpop.permute.xlu0 %2394
        %v2398 = vadd.f32 %v2384, %v2393
        %v2399 = vadd.f32 %v2385, %v2395
        %s2400 = sld [smem:[#allocation5 + $0x3e]]
        %v2401 = vstv %s2400
        %v2402 = vmul.f32 %v2401, %v735
        %v2403 = vmul.f32 %v2401, %v736
        %v2404 = vmul.f32 %v2401, %v737
        %v2408 = vrot.slane %v2402, 1
        %v2409 = vrot.slane %v2403, 1
        %v2410 = vsel %vm635, %v2408, %v2409
        %v2411 = vrot.slane %v2404, 1
        %v2412 = vsel %vm635, %v2409, %v2411
        %2413 = vrot.lane.b32.xlu0 %v2410, 122
        %v2414 = vpop.permute.xlu0 %2413
        %2415 = vrot.lane.b32.xlu0 %v2412, 122
        %v2416 = vpop.permute.xlu0 %2415
        %v2419 = vadd.f32 %v2398, %v2414
        %v2420 = vadd.f32 %v2399, %v2416
        %s2421 = sld [smem:[#allocation5 + $0x45]]
        %v2422 = vstv %s2421
        %v2423 = vmul.f32 %v2422, %v735
        %v2424 = vmul.f32 %v2422, %v736
        %v2425 = vmul.f32 %v2422, %v737
        %v2429 = vrot.slane %v2423, 2
        %v2430 = vrot.slane %v2424, 2
        %v2431 = vsel %vm653, %v2429, %v2430
        %v2432 = vrot.slane %v2425, 2
        %v2433 = vsel %vm653, %v2430, %v2432
        %2434 = vrot.lane.b32.xlu0 %v2431, 122
        %v2435 = vpop.permute.xlu0 %2434
        %2436 = vrot.lane.b32.xlu0 %v2433, 122
        %v2437 = vpop.permute.xlu0 %2436
        %v2440 = vadd.f32 %v2419, %v2435
        %v2441 = vadd.f32 %v2420, %v2437
        %s2442 = sld [smem:[#allocation5 + $0x4c]]
        %v2443 = vstv %s2442
        %v2444 = vmul.f32 %v2443, %v735
        %v2445 = vmul.f32 %v2443, %v736
        %v2446 = vmul.f32 %v2443, %v737
        %v2450 = vrot.slane %v2444, 3
        %v2451 = vrot.slane %v2445, 3
        %v2452 = vsel %vm671, %v2450, %v2451
        %v2453 = vrot.slane %v2446, 3
        %v2454 = vsel %vm671, %v2451, %v2453
        %2455 = vrot.lane.b32.xlu0 %v2452, 122
        %v2456 = vpop.permute.xlu0 %2455
        %2457 = vrot.lane.b32.xlu0 %v2454, 122
        %v2458 = vpop.permute.xlu0 %2457
        %v2461 = vadd.f32 %v2440, %v2456
        %v2462 = vadd.f32 %v2441, %v2458
        %s2463 = sld [smem:[#allocation5 + $0x53]]
        %v2464 = vstv %s2463
        %v2465 = vmul.f32 %v2464, %v735
        %v2466 = vmul.f32 %v2464, %v736
        %v2467 = vmul.f32 %v2464, %v737
        %v2471 = vrot.slane %v2465, 4
        %v2472 = vrot.slane %v2466, 4
        %v2473 = vsel %vm689, %v2471, %v2472
        %v2474 = vrot.slane %v2467, 4
        %v2475 = vsel %vm689, %v2472, %v2474
        %2476 = vrot.lane.b32.xlu0 %v2473, 122
        %v2477 = vpop.permute.xlu0 %2476
        %2478 = vrot.lane.b32.xlu0 %v2475, 122
        %v2479 = vpop.permute.xlu0 %2478
        %v2482 = vadd.f32 %v2461, %v2477
        %v2483 = vadd.f32 %v2462, %v2479
        %s2484 = sld [smem:[#allocation5 + $0x5a]]
        %v2485 = vstv %s2484
        %v2486 = vmul.f32 %v2485, %v735
        %v2487 = vmul.f32 %v2485, %v736
        %v2488 = vmul.f32 %v2485, %v737
        %v2492 = vrot.slane %v2486, 5
        %v2493 = vrot.slane %v2487, 5
        %v2494 = vsel %vm707, %v2492, %v2493
        %v2495 = vrot.slane %v2488, 5
        %v2496 = vsel %vm707, %v2493, %v2495
        %2497 = vrot.lane.b32.xlu0 %v2494, 122
        %v2498 = vpop.permute.xlu0 %2497
        %2499 = vrot.lane.b32.xlu0 %v2496, 122
        %v2500 = vpop.permute.xlu0 %2499
        %v2503 = vadd.f32 %v2482, %v2498
        %v2504 = vadd.f32 %v2483, %v2500
        %s2505 = sld [smem:[#allocation5 + $0x61]]
        %v2506 = vstv %s2505
        %v2507 = vmul.f32 %v2506, %v735
        %v2508 = vmul.f32 %v2506, %v736
        %v2509 = vmul.f32 %v2506, %v737
        %v2513 = vrot.slane %v2507, 6
        %v2514 = vrot.slane %v2508, 6
        %v2515 = vsel %vm725, %v2513, %v2514
        %v2516 = vrot.slane %v2509, 6
        %v2517 = vsel %vm725, %v2514, %v2516
        %2518 = vrot.lane.b32.xlu0 %v2515, 122
        %v2519 = vpop.permute.xlu0 %2518
        %2520 = vrot.lane.b32.xlu0 %v2517, 122
        %v2521 = vpop.permute.xlu0 %2520
        %v2524 = vadd.f32 %v2503, %v2519
        %v2525 = vadd.f32 %v2504, %v2521
        %v2526 = vxor.u32 %v2524, 2147483648
        %v2527 = vxor.u32 %v2525, 2147483648
        %v2528 = vmul.f32 %v2526, 1.442695
        %v2529 = vpow.pop %v2528
        %v2530 = vmul.f32 %v2527, 1.442695
        %v2531 = vpow.pop %v2530
        %v2532 = vadd.f32 %v2529, 1.0
        %v2533 = vadd.f32 %v2531, 1.0
        %v2534 = vrcp.pop %v2532
        %v2535 = vmul.f32 1.0, %v2534
        %v2536 = vrcp.pop %v2533
        %v2537 = vmul.f32 1.0, %v2536
        %v2538 = vlaneseq
        %vm2539 = vcmp.ge.s32.totalorder %v2538, 0
        %vm2540 = vcmp.lt.s32.totalorder %v2538, 16
        %vm2541 = vmand %vm2539, %vm2540
        %2542 = vst.msk [vmem:[#allocation3] sm:$0x1] %vm2541, %v2535
        %v2545 = vunpack.c.l.s4 1966171168
        %v2546 = vunpack.c.0.s8 %v2545
        %v2547 = vlaneseq
        %v2548 = vshrl.u32 %v2547, 7
        %v2549 = vsub.s32 %v2546, %v2548
        %v2550 = vrot.slane %v2535, %v2549
        %v2551 = vcombine.high %v2550, %v2550
        %v2553 = vunpack.c.l.s4 1966171168
        %v2554 = vunpack.c.0.s8 %v2553
        %v2555 = vlaneseq
        %v2556 = vshrl.u32 %v2555, 7
        %v2557 = vsub.s32 %v2554, %v2556
        %v2558 = vrot.slane %v2550, %v2557
        %v2560 = vunpack.c.l.s4 1966171168
        %v2561 = vunpack.c.0.s8 %v2560
        %v2562 = vlaneseq
        %v2563 = vshrl.u32 %v2562, 7
        %v2564 = vsub.s32 %v2561, %v2563
        %v2565 = vrot.slane %v2551, %v2564
        %2566 = vrot.lane.b32.xlu0 %v2565, 16
        %v2567 = vpop.permute.xlu0 %2566
        %vm2569 = vcmp.ge.s32.totalorder %v2538, 16
        %vm2570 = vcmp.lt.s32.totalorder %v2538, 32
        %vm2571 = vmand %vm2569, %vm2570
        %2572 = vst.msk [vmem:[#allocation3] sm:$0x1] %vm2571, %v2567
        %v2573 = vcombine.high %v2558, %v2558
        %2574 = vrot.lane.b32.xlu0 %v2573, 32
        %v2575 = vpop.permute.xlu0 %2574
        %vm2577 = vcmp.ge.s32.totalorder %v2538, 32
        %vm2578 = vcmp.lt.s32.totalorder %v2538, 48
        %vm2579 = vmand %vm2577, %vm2578
        %2580 = vst.msk [vmem:[#allocation3] sm:$0x1] %vm2579, %v2575
        %v2581 = vcombine.high %v2565, %v2565
        %2582 = vrot.lane.b32.xlu0 %v2581, 48
        %v2583 = vpop.permute.xlu0 %2582
        %vm2585 = vcmp.ge.s32.totalorder %v2538, 48
        %vm2586 = vcmp.lt.s32.totalorder %v2538, 64
        %vm2587 = vmand %vm2585, %vm2586
        %2588 = vst.msk [vmem:[#allocation3] sm:$0x1] %vm2587, %v2583
        %v2589 = vcombine.high %v2535, %v2535
        %v2591 = vunpack.c.l.s4 1966171168
        %v2592 = vunpack.c.0.s8 %v2591
        %v2593 = vlaneseq
        %v2594 = vshrl.u32 %v2593, 7
        %v2595 = vsub.s32 %v2592, %v2594
        %v2596 = vrot.slane %v2589, %v2595
        %v2598 = vunpack.c.l.s4 1966171168
        %v2599 = vunpack.c.0.s8 %v2598
        %v2600 = vlaneseq
        %v2601 = vshrl.u32 %v2600, 7
        %v2602 = vsub.s32 %v2599, %v2601
        %v2603 = vrot.slane %v2596, %v2602
        %2604 = vrot.lane.b32.xlu0 %v2603, 64
        %v2605 = vpop.permute.xlu0 %2604
        %vm2607 = vcmp.ge.s32.totalorder %v2538, 64
        %vm2608 = vcmp.lt.s32.totalorder %v2538, 80
        %vm2609 = vmand %vm2607, %vm2608
        %2610 = vst.msk [vmem:[#allocation3] sm:$0x1] %vm2609, %v2605
        %v2611 = vcombine.high %v2596, %v2596
        %v2613 = vunpack.c.l.s4 1966171168
        %v2614 = vunpack.c.0.s8 %v2613
        %v2615 = vlaneseq
        %v2616 = vshrl.u32 %v2615, 7
        %v2617 = vsub.s32 %v2614, %v2616
        %v2618 = vrot.slane %v2611, %v2617
        %2619 = vrot.lane.b32.xlu0 %v2618, 80
        %v2620 = vpop.permute.xlu0 %2619
        %vm2622 = vcmp.ge.s32.totalorder %v2538, 80
        %vm2623 = vcmp.lt.s32.totalorder %v2538, 96
        %vm2624 = vmand %vm2622, %vm2623
        %2625 = vst.msk [vmem:[#allocation3] sm:$0x1] %vm2624, %v2620
        %v2626 = vcombine.high %v2603, %v2603
        %2627 = vrot.lane.b32.xlu0 %v2626, 96
        %v2628 = vpop.permute.xlu0 %2627
        %vm2630 = vcmp.ge.s32.totalorder %v2538, 96
        %vm2631 = vcmp.lt.s32.totalorder %v2538, 112
        %vm2632 = vmand %vm2630, %vm2631
        %2633 = vst.msk [vmem:[#allocation3] sm:$0x1] %vm2632, %v2628
        %v2634 = vcombine.high %v2618, %v2618
        %2635 = vrot.lane.b32.xlu0 %v2634, 112
        %v2636 = vpop.permute.xlu0 %2635
        %vm2638 = vcmp.ge.s32.totalorder %v2538, 112
        %vm2639 = vcmp.lt.s32.totalorder %v2538, 128
        %vm2640 = vmand %vm2638, %vm2639
        %2641 = vst.msk [vmem:[#allocation3] sm:$0x1] %vm2640, %v2636
        %2642 = vst.msk [vmem:[#allocation3 + $0x1] sm:$0x1] %vm2541, %v2537
        %v2645 = vunpack.c.l.s4 1966171168
        %v2646 = vunpack.c.0.s8 %v2645
        %v2647 = vlaneseq
        %v2648 = vshrl.u32 %v2647, 7
        %v2649 = vsub.s32 %v2646, %v2648
        %v2650 = vrot.slane %v2537, %v2649
        %v2651 = vcombine.high %v2650, %v2650
        %v2653 = vunpack.c.l.s4 1966171168
        %v2654 = vunpack.c.0.s8 %v2653
        %v2655 = vlaneseq
        %v2656 = vshrl.u32 %v2655, 7
        %v2657 = vsub.s32 %v2654, %v2656
        %v2658 = vrot.slane %v2650, %v2657
        %v2660 = vunpack.c.l.s4 1966171168
        %v2661 = vunpack.c.0.s8 %v2660
        %v2662 = vlaneseq
        %v2663 = vshrl.u32 %v2662, 7
        %v2664 = vsub.s32 %v2661, %v2663
        %v2665 = vrot.slane %v2651, %v2664
        %2666 = vrot.lane.b32.xlu0 %v2665, 16
        %v2667 = vpop.permute.xlu0 %2666
        %2669 = vst.msk [vmem:[#allocation3 + $0x1] sm:$0x1] %vm2571, %v2667
        %v2670 = vcombine.high %v2658, %v2658
        %2671 = vrot.lane.b32.xlu0 %v2670, 32
        %v2672 = vpop.permute.xlu0 %2671
        %2674 = vst.msk [vmem:[#allocation3 + $0x1] sm:$0x1] %vm2579, %v2672
        %v2675 = vcombine.high %v2665, %v2665
        %2676 = vrot.lane.b32.xlu0 %v2675, 48
        %v2677 = vpop.permute.xlu0 %2676
        %2679 = vst.msk [vmem:[#allocation3 + $0x1] sm:$0x1] %vm2587, %v2677
        %v2680 = vcombine.high %v2537, %v2537
        %v2682 = vunpack.c.l.s4 1966171168
        %v2683 = vunpack.c.0.s8 %v2682
        %v2684 = vlaneseq
        %v2685 = vshrl.u32 %v2684, 7
        %v2686 = vsub.s32 %v2683, %v2685
        %v2687 = vrot.slane %v2680, %v2686
        %v2689 = vunpack.c.l.s4 1966171168
        %v2690 = vunpack.c.0.s8 %v2689
        %v2691 = vlaneseq
        %v2692 = vshrl.u32 %v2691, 7
        %v2693 = vsub.s32 %v2690, %v2692
        %v2694 = vrot.slane %v2687, %v2693
        %2695 = vrot.lane.b32.xlu0 %v2694, 64
        %v2696 = vpop.permute.xlu0 %2695
        %2698 = vst.msk [vmem:[#allocation3 + $0x1] sm:$0x1] %vm2609, %v2696
        %v2699 = vcombine.high %v2687, %v2687
        %v2701 = vunpack.c.l.s4 1966171168
        %v2702 = vunpack.c.0.s8 %v2701
        %v2703 = vlaneseq
        %v2704 = vshrl.u32 %v2703, 7
        %v2705 = vsub.s32 %v2702, %v2704
        %v2706 = vrot.slane %v2699, %v2705
        %2707 = vrot.lane.b32.xlu0 %v2706, 80
        %v2708 = vpop.permute.xlu0 %2707
        %2710 = vst.msk [vmem:[#allocation3 + $0x1] sm:$0x1] %vm2624, %v2708
        %v2711 = vcombine.high %v2694, %v2694
        %2712 = vrot.lane.b32.xlu0 %v2711, 96
        %v2713 = vpop.permute.xlu0 %2712
        %2715 = vst.msk [vmem:[#allocation3 + $0x1] sm:$0x1] %vm2632, %v2713
        %v2716 = vcombine.high %v2706, %v2706
        %2717 = vrot.lane.b32.xlu0 %v2716, 112
        %v2718 = vpop.permute.xlu0 %2717
        %2720 = vst.msk [vmem:[#allocation3 + $0x1] sm:$0x1] %vm2640, %v2718
        %v2721 = vld [vmem:[#allocation3] sm:$0x3]
        %v2722 = vld [vmem:[%s234] sm:$0xff]
        %v2723 = vld [vmem:[%s234 + $0x8] sm:$0xff]
        %v2724 = vld [vmem:[%s234 + $0x10] sm:$0xff]
        %v2725 = vld [vmem:[%s234 + $0x18] sm:$0xff]
        %v2726 = vld [vmem:[%s234 + $0x20] sm:$0xff]
        %v2727 = vld [vmem:[%s234 + $0x28] sm:$0xff]
        %v2728 = vld [vmem:[%s234 + $0x30] sm:$0xff]
        %v2729 = vld [vmem:[%s234 + $0x38] sm:$0xff]
        %v2730 = vmul.f32 %v2722, %v420
        %v2731 = vmul.f32 %v2723, %v420
        %v2732 = vmul.f32 %v2724, %v425
        %v2733 = vmul.f32 %v2725, %v425
        %v2734 = vmul.f32 %v2726, %v430
        %v2735 = vmul.f32 %v2727, %v430
        %v2736 = vmul.f32 %v2728, %v435
        %v2737 = vmul.f32 %v2729, %v435
        %v2739 = vlaneseq
        %v2740 = vshrl.u32 %v2739, 7
        %v2741 = vsub.s32 0, %v2740
        %v2742 = vrot.slane %v2721, %v2741
        %v2743 = vlaneseq
        %v2744 = vshrl.u32 %v2743, 7
        %v2745 = vsub.s32 1, %v2744
        %v2746 = vrot.slane %v2721, %v2745
        %v2749 = vmul.f32 %v2730, %v2742
        %v2750 = vmul.f32 %v2731, %v2746
        %v2751 = vmul.f32 %v2732, %v2742
        %v2752 = vmul.f32 %v2733, %v2746
        %v2753 = vmul.f32 %v2734, %v2742
        %v2754 = vmul.f32 %v2735, %v2746
        %v2755 = vmul.f32 %v2736, %v2742
        %v2756 = vmul.f32 %v2737, %v2746
        %2757 = vst [vmem:[%s239] sm:$0xff] %v2749
        %2758 = vst [vmem:[%s239 + $0x8] sm:$0xff] %v2750
        %2759 = vst [vmem:[%s239 + $0x10] sm:$0xff] %v2751
        %2760 = vst [vmem:[%s239 + $0x18] sm:$0xff] %v2752
        %2761 = vst [vmem:[%s239 + $0x20] sm:$0xff] %v2753
        %2762 = vst [vmem:[%s239 + $0x28] sm:$0xff] %v2754
        %2763 = vst [vmem:[%s239 + $0x30] sm:$0xff] %v2755
        %2764 = vst [vmem:[%s239 + $0x38] sm:$0xff] %v2756
        %p2765 = scmp.lt.s32.totalorder %s18, 1
        %s2766 = scalar_select %p2765, %s18, 1
        %s2767 = smul.addr %s2766, 8
        %s2768 = smul.addr %s2767, 8
        %s2769 = scalar_lea.vmem %s5, %s2768
        // Predicated region
        $region45: #{cbam_forward.1} parent=39 // pred_check
          %p2770 = pneg %p146
        $region46: #{cbam_forward.1} parent=39 // pred_check_branch
          %2772 = sbr.rel (%p2770) target = $region48
        $region47: #{cbam_forward.1} parent=39 // pred_region
          _
        $region48: #{cbam_forward.1} parent=39 // pred_fallthru
          _
      $region40: #{cbam_forward.1} parent=5 // pred_fallthru
        _
      %p2773 = scmp.le.s32.totalorder 2, %s13
      // Predicated region
      $region49: #{cbam_forward.1} parent=5 // pred_check
        %p2774 = pneg %p2773
      $region50: #{cbam_forward.1} parent=5 // pred_check_branch
        %2776 = sbr.rel (%p2774) target = $region52
      $region51: #{cbam_forward.1} parent=5 // pred_region
        %s2777 = ssub.s32 %s13, 2
        // Predicated region
        $region53: #{cbam_forward.1} parent=51 // pred_check
          %p2778 = pneg %p152
        $region54: #{cbam_forward.1} parent=51 // pred_check_branch
          %2780 = sbr.rel (%p2778) target = $region56
        $region55: #{cbam_forward.1} parent=51 // pred_region
          %p2781 = scmp.lt.s32.totalorder %s19, 1
          %s2782 = scalar_select %p2781, %s19, 1
          %s2783 = smul.addr %s2782, 8
          %s2784 = smul.addr %s2783, 8
          %s2785 = scalar_lea.vmem %s5, %s2784
        $region56: #{cbam_forward.1} parent=51 // pred_fallthru
          _
      $region52: #{cbam_forward.1} parent=5 // pred_fallthru
        _
    $region6: #{cbam_forward.1} parent=1 // loop_footer
      %s17 = sadd.s32 1, %s13
    $region7: #{cbam_forward.1} parent=1 // loop_footer_branch
      %12 = sbr.rel target = $region3
    $region8: #{cbam_forward.1} parent=1 // loop_exit
      _
    %2786 = vsyncpa [#allocation6], 1
    %s2787 = scalar_lea.sflag [#allocation6], 1
    %2788 = vsyncpa %s2787, 1

</llo_original>
